<compile_context>
chip_gen: v6e
topology: v6e:2x2x1
jax: 0.10.0
libtpu: 0.0.40
codegen_flags: <defaults>
</compile_context>

<pallas_src>
import math
import functools

import jax
import jax.numpy as jnp
from jax.experimental import pallas as pl
from jax.experimental.pallas import tpu as pltpu


# ----------------------------------------------------------------------------- helpers

@functools.lru_cache(maxsize=None)
def _vmem_limit_bytes():
    """Generation-aware scoped-VMEM limit: ~3/4 of physical, clamped to 100 MiB."""
    try:
        cap = int(pltpu.get_tpu_info().vmem_capacity_bytes)
    except Exception:
        cap = 64 * 1024 * 1024          # conservative (v7x physical)
    return min(100 * 1024 * 1024, max(32 * 1024 * 1024, (cap * 3) // 4))


def _cparams(n_parallel):
    return pltpu.CompilerParams(
        dimension_semantics=("parallel",) * n_parallel,
        vmem_limit_bytes=_vmem_limit_bytes(),
    )


def _round_up(x, m):
    return ((x + m - 1) // m) * m


def _row_tile(M, cap):
    """Row tile: multiple of 8, <= cap, and >= 2 grid steps whenever M allows
    (so v7x megacore gets both cores busy and the pipeline double-buffers)."""
    if M <= 8:
        return 8
    if _round_up(M, 8) > cap:
        return cap                                   # already >= 2 steps
    return max(8, _round_up((M + 1) // 2, 8))        # split in ~half


def _col_tile(N, cap=512):
    """Column tile for the vocab axis of the logits projection."""
    if N <= cap:
        return N
    for tn in range(cap, 127, -128):
        if N % tn == 0:
            return tn
    return N


def _pad_rows(x, tile):
    M = x.shape[0]
    Mp = _round_up(M, tile)
    if Mp != M:
        x = jnp.pad(x, ((0, Mp - M), (0, 0)))
    return x, Mp


# ----------------------------------------------------------------------------- kernels

def _linear_bias_kernel(x_ref, w_ref, b_ref, o_ref):
    # x: (tm, K) bf16, w: (K, tn) bf16 (resident), b: (1, tn) f32 -> o: (tm, tn)
    o_ref[...] = (
        jnp.dot(x_ref[...], w_ref[...], preferred_element_type=jnp.float32)
        + b_ref[...]
    ).astype(o_ref.dtype)


def _layer_norm_f32(y, g, b):
    mu = jnp.mean(y, axis=-1, keepdims=True)
    var = jnp.mean((y - mu) ** 2, axis=-1, keepdims=True)
    return (y - mu) * jax.lax.rsqrt(var + 1e-5) * g + b


def _self_attn_block_kernel(x_ref, wqkv_ref, bqkv_ref, wo_ref, bo_ref,
                            g_ref, beta_ref, o_ref, *, heads, scale):
    # One batch element per grid step.  x: (L, D) bf16 -> o: (L, D) bf16
    # out = LayerNorm( x + OutProj( MHA_causal(x) ) )
    x = x_ref[...]
    L, D = x.shape
    Dh = D // heads

    qkv = (jnp.dot(x, wqkv_ref[...], preferred_element_type=jnp.float32)
           + bqkv_ref[...])                                   # (L, 3D) f32
    q = qkv[:, 0:D] * scale                                   # 128-aligned slices
    k_bf = qkv[:, D:2 * D].astype(jnp.bfloat16)
    v = qkv[:, 2 * D:3 * D]

    lane = jax.lax.broadcasted_iota(jnp.int32, (L, D), 1)
    row = jax.lax.broadcasted_iota(jnp.int32, (L, L), 0)
    col = jax.lax.broadcasted_iota(jnp.int32, (L, L), 1)

    ctx = jnp.zeros((L, D), jnp.float32)
    for h in range(heads):                                    # static unroll (small H)
        hmask = (lane >= h * Dh) & (lane < (h + 1) * Dh)      # head-h lanes
        qh = jnp.where(hmask, q, 0.0).astype(jnp.bfloat16)
        # scores_h = q_h . k_h  (masked q -> only head-h lanes contribute)
        s = jax.lax.dot_general(qh, k_bf, (((1,), (1,)), ((), ())),
                                preferred_element_type=jnp.float32)     # (L, L)
        s = jnp.where(col > row, -1e30, s)                    # causal mask, in-kernel
        m = jnp.max(s, axis=-1, keepdims=True)
        p = jnp.exp(s - m)
        p = p * pl.reciprocal(jnp.sum(p, axis=-1, keepdims=True), approx=True)
        vh = jnp.where(hmask, v, 0.0).astype(jnp.bfloat16)
        ctx = ctx + jnp.dot(p.astype(jnp.bfloat16), vh,
                            preferred_element_type=jnp.float32)

    y = (jnp.dot(ctx.astype(jnp.bfloat16), wo_ref[...],
                 preferred_element_type=jnp.float32) + bo_ref[...])
    y = y + x.astype(jnp.float32)                             # residual (dropout = id)
    o_ref[...] = _layer_norm_f32(y, g_ref[...], beta_ref[...]).astype(o_ref.dtype)


def _cross_attn_block_kernel(x_ref, e_ref, wq_ref, bq_ref, wkv_ref, bkv_ref,
                             wo_ref, bo_ref, g_ref, beta_ref, o_ref, *, heads, scale):
    # out = LayerNorm( x + OutProj( MHA(x, e, e) ) )   -- no mask
    x = x_ref[...]                                            # (L, D)  bf16
    e = e_ref[...]                                            # (Lk, D) bf16
    L, D = x.shape
    Lk = e.shape[0]
    Dh = D // heads

    q = (jnp.dot(x, wq_ref[...], preferred_element_type=jnp.float32)
         + bq_ref[...]) * scale                               # (L, D)  f32
    kv = (jnp.dot(e, wkv_ref[...], preferred_element_type=jnp.float32)
          + bkv_ref[...])                                     # (Lk, 2D) f32
    k_bf = kv[:, 0:D].astype(jnp.bfloat16)
    v = kv[:, D:2 * D]

    lane_q = jax.lax.broadcasted_iota(jnp.int32, (L, D), 1)
    lane_k = jax.lax.broadcasted_iota(jnp.int32, (Lk, D), 1)

    ctx = jnp.zeros((L, D), jnp.float32)
    for h in range(heads):
        mq = (lane_q >= h * Dh) & (lane_q < (h + 1) * Dh)
        mk = (lane_k >= h * Dh) & (lane_k < (h + 1) * Dh)
        qh = jnp.where(mq, q, 0.0).astype(jnp.bfloat16)
        s = jax.lax.dot_general(qh, k_bf, (((1,), (1,)), ((), ())),
                                preferred_element_type=jnp.float32)     # (L, Lk)
        m = jnp.max(s, axis=-1, keepdims=True)
        p = jnp.exp(s - m)
        p = p * pl.reciprocal(jnp.sum(p, axis=-1, keepdims=True), approx=True)
        vh = jnp.where(mk, v, 0.0).astype(jnp.bfloat16)
        ctx = ctx + jnp.dot(p.astype(jnp.bfloat16), vh,
                            preferred_element_type=jnp.float32)

    y = (jnp.dot(ctx.astype(jnp.bfloat16), wo_ref[...],
                 preferred_element_type=jnp.float32) + bo_ref[...])
    y = y + x.astype(jnp.float32)
    o_ref[...] = _layer_norm_f32(y, g_ref[...], beta_ref[...]).astype(o_ref.dtype)


def _ffn_add_ln_kernel(x_ref, w1_ref, b1_ref, w2_ref, b2_ref, g_ref, beta_ref, o_ref):
    # out = LayerNorm( x + W2 @ gelu(W1 @ x + b1) + b2 )
    x = x_ref[...]                                            # (tm, D) bf16
    h = (jnp.dot(x, w1_ref[...], preferred_element_type=jnp.float32)
         + b1_ref[...])                                       # (tm, 4D) f32
    # TODO(synk): PyTorch nn.GELU() is the exact erf GELU; tanh approximation
    # used for guaranteed Mosaic lowering (numerical difference ~1e-3).
    c = math.sqrt(2.0 / math.pi)
    h = 0.5 * h * (1.0 + jnp.tanh(c * (h + 0.044715 * h * h * h)))
    y = (jnp.dot(h.astype(jnp.bfloat16), w2_ref[...],
                 preferred_element_type=jnp.float32) + b2_ref[...])
    y = y + x.astype(jnp.float32)
    o_ref[...] = _layer_norm_f32(y, g_ref[...], beta_ref[...]).astype(o_ref.dtype)


# ----------------------------------------------------------------------------- wrappers

def linear_bias(x, w, b, out_dtype=jnp.float32, row_cap=256, col_cap=512):
    """x: (M, K) bf16; w: (K, N) bf16 (pre-transposed); b: (1, N) f32 -> (M, N)."""
    M, K = x.shape
    N = w.shape[1]
    tm = _row_tile(M, row_cap)
    tn = _col_tile(N, col_cap)
    xp, Mp = _pad_rows(x, tm)
    out = pl.pallas_call(
        _linear_bias_kernel,
        out_shape=jax.ShapeDtypeStruct((Mp, N), out_dtype),
        grid=(Mp // tm, N // tn),
        in_specs=[
            pl.BlockSpec((tm, K), lambda i, j: (i, 0)),
            pl.BlockSpec((K, tn), lambda i, j: (0, j)),   # weight resident per column tile
            pl.BlockSpec((1, tn), lambda i, j: (0, j)),
        ],
        out_specs=pl.BlockSpec((tm, tn), lambda i, j: (i, j)),
        compiler_params=_cparams(2),
    )(xp, w, b)
    return out[:M] if Mp != M else out


def self_attn_block(x2d, blk, *, B, L, heads):
    """Fused: QKV proj -> causal MHA -> out-proj -> residual -> LayerNorm."""
    M, D = x2d.shape
    kern = functools.partial(_self_attn_block_kernel, heads=heads,
                             scale=1.0 / math.sqrt(D // heads))
    return pl.pallas_call(
        kern,
        out_shape=jax.ShapeDtypeStruct((M, D), x2d.dtype),
        grid=(B,),                                            # one batch element / step
        in_specs=[
            pl.BlockSpec((L, D), lambda b: (b, 0)),
            pl.BlockSpec((D, 3 * D), lambda b: (0, 0)),       # weights VMEM-resident
            pl.BlockSpec((1, 3 * D), lambda b: (0, 0)),
            pl.BlockSpec((D, D), lambda b: (0, 0)),
            pl.BlockSpec((1, D), lambda b: (0, 0)),
            pl.BlockSpec((1, D), lambda b: (0, 0)),
            pl.BlockSpec((1, D), lambda b: (0, 0)),
        ],
        out_specs=pl.BlockSpec((L, D), lambda b: (b, 0)),
        compiler_params=_cparams(1),
    )(x2d, blk["w_qkv"], blk["b_qkv"], blk["w_o1"], blk["b_o1"],
      blk["ln1_g"], blk["ln1_b"])


def cross_attn_block(x2d, e2d, blk, *, B, L, Lk, heads):
    """Fused: Q proj + fused KV proj -> MHA -> out-proj -> residual -> LayerNorm."""
    M, D = x2d.shape
    kern = functools.partial(_cross_attn_block_kernel, heads=heads,
                             scale=1.0 / math.sqrt(D // heads))
    return pl.pallas_call(
        kern,
        out_shape=jax.ShapeDtypeStruct((M, D), x2d.dtype),
        grid=(B,),
        in_specs=[
            pl.BlockSpec((L, D), lambda b: (b, 0)),
            pl.BlockSpec((Lk, D), lambda b: (b, 0)),
            pl.BlockSpec((D, D), lambda b: (0, 0)),
            pl.BlockSpec((1, D), lambda b: (0, 0)),
            pl.BlockSpec((D, 2 * D), lambda b: (0, 0)),
            pl.BlockSpec((1, 2 * D), lambda b: (0, 0)),
            pl.BlockSpec((D, D), lambda b: (0, 0)),
            pl.BlockSpec((1, D), lambda b: (0, 0)),
            pl.BlockSpec((1, D), lambda b: (0, 0)),
            pl.BlockSpec((1, D), lambda b: (0, 0)),
        ],
        out_specs=pl.BlockSpec((L, D), lambda b: (b, 0)),
        compiler_params=_cparams(1),
    )(x2d, e2d, blk["w_q2"], blk["b_q2"], blk["w_kv2"], blk["b_kv2"],
      blk["w_o2"], blk["b_o2"], blk["ln2_g"], blk["ln2_b"])


def ffn_add_ln(x, w1, b1, w2, b2, gamma, beta):
    """LayerNorm(x + FFN(x)); row-tiled (tile capped at 128 to bound vreg pressure)."""
    M, D = x.shape
    H = w1.shape[1]
    tm = _row_tile(M, cap=128)
    xp, Mp = _pad_rows(x, tm)
    out = pl.pallas_call(
        _ffn_add_ln_kernel,
        out_shape=jax.ShapeDtypeStruct((Mp, D), x.dtype),
        grid=(Mp // tm,),
        in_specs=[
            pl.BlockSpec((tm, D), lambda i: (i, 0)),
            pl.BlockSpec((D, H), lambda i: (0, 0)),
            pl.BlockSpec((1, H), lambda i: (0, 0)),
            pl.BlockSpec((H, D), lambda i: (0, 0)),
            pl.BlockSpec((1, D), lambda i: (0, 0)),
            pl.BlockSpec((1, D), lambda i: (0, 0)),
            pl.BlockSpec((1, D), lambda i: (0, 0)),
        ],
        out_specs=pl.BlockSpec((tm, D), lambda i: (i, 0)),
        compiler_params=_cparams(1),
    )(xp, w1, b1, w2, b2, gamma, beta)
    return out[:M] if Mp != M else out


# ----------------------------------------------------------------------------- model

def make_positional_encoding(max_len, d_model):
    position = jnp.arange(max_len, dtype=jnp.float32)[:, None]
    div_term = jnp.exp(
        jnp.arange(0, d_model, 2, dtype=jnp.float32) * (-math.log(10000.0) / d_model)
    )
    pe = jnp.zeros((max_len, d_model), jnp.float32)
    pe = pe.at[:, 0::2].set(jnp.sin(position * div_term))
    pe = pe.at[:, 1::2].set(jnp.cos(position * div_term))
    return pe


def init_params(key, trg_vocab, trg_length, d_model, N, heads):
    def nrm(k, shape, scale=0.02):
        return scale * jax.random.normal(k, shape, jnp.float32)

    def wbf(k, shape, scale=0.02):
        # weights pre-transposed to (K, N) and stored bf16 (MXU operand layout)
        return nrm(k, shape, scale).astype(jnp.bfloat16)

    hidden = 4 * d_model
    keys = jax.random.split(key, 2 + N)
    params = {
        "emb": nrm(keys[0], (trg_vocab, d_model), 1.0),
        "pe": make_positional_encoding(trg_length, d_model),
        "out_w": wbf(keys[1], (d_model, trg_vocab)),
        "out_b": jnp.zeros((1, trg_vocab), jnp.float32),
        "blocks": [],
    }
    for i in range(N):
        ks = jax.random.split(keys[2 + i], 7)
        blk = {
            # self-attention: fused QKV projection, pre-transposed (D, 3D)
            "w_qkv": wbf(ks[0], (d_model, 3 * d_model)),
            "b_qkv": jnp.zeros((1, 3 * d_model), jnp.float32),
            "w_o1": wbf(ks[1], (d_model, d_model)),
            "b_o1": jnp.zeros((1, d_model), jnp.float32),
            # cross-attention: Q on x, fused KV on encoder memory
            "w_q2": wbf(ks[2], (d_model, d_model)),
            "b_q2": jnp.zeros((1, d_model), jnp.float32),
            "w_kv2": wbf(ks[3], (d_model, 2 * d_model)),
            "b_kv2": jnp.zeros((1, 2 * d_model), jnp.float32),
            "w_o2": wbf(ks[4], (d_model, d_model)),
            "b_o2": jnp.zeros((1, d_model), jnp.float32),
            # LayerNorms (f32)
            "ln1_g": jnp.ones((1, d_model), jnp.float32),
            "ln1_b": jnp.zeros((1, d_model), jnp.float32),
            "ln2_g": jnp.ones((1, d_model), jnp.float32),
            "ln2_b": jnp.zeros((1, d_model), jnp.float32),
            "ln3_g": jnp.ones((1, d_model), jnp.float32),
            "ln3_b": jnp.zeros((1, d_model), jnp.float32),
            # FFN, pre-transposed
            "ff_w1": wbf(ks[5], (d_model, hidden)),
            "ff_b1": jnp.zeros((1, hidden), jnp.float32),
            "ff_w2": wbf(ks[6], (hidden, d_model)),
            "ff_b2": jnp.zeros((1, d_model), jnp.float32),
        }
        params["blocks"].append(blk)
    return params


def decoder_block(x2d, e2d, blk, *, B, L, Lk, heads):
    # 3 fused pallas_calls, no XLA glue in between (everything stays (rows, D) bf16)
    x2d = self_attn_block(x2d, blk, B=B, L=L, heads=heads)              # norm1(x + attn1)
    x2d = cross_attn_block(x2d, e2d, blk, B=B, L=L, Lk=Lk, heads=heads)  # norm2(x + attn2)
    x2d = ffn_add_ln(x2d, blk["ff_w1"], blk["ff_b1"], blk["ff_w2"], blk["ff_b2"],
                     blk["ln3_g"], blk["ln3_b"])                        # norm3(x + ff)
    return x2d


def decoder_forward(params, trg, e_outputs, d_model, heads):
    # TODO(synk): key_padding_mask / arbitrary tgt_mask not supported (only the
    # built-in causal mask); dropout layers are identity (eval mode).
    B, L = trg.shape
    Lk = e_outputs.shape[1]
    # L and Lk should be multiples of 8 so the (L, D)/(Lk, D) attention blocks tile.

    # embedding + positional encoding (plain-JAX glue; gather has no tiled form here)
    x = jnp.take(params["emb"], trg, axis=0)                            # (B, L, D) f32
    x = x * math.sqrt(d_model) + params["pe"][:L][None, :, :]

    x2d = x.reshape(B * L, d_model).astype(jnp.bfloat16)                # bf16 activations
    e2d = e_outputs.reshape(B * Lk, d_model).astype(jnp.bfloat16)

    for blk in params["blocks"]:
        x2d = decoder_block(x2d, e2d, blk, B=B, L=L, Lk=Lk, heads=heads)

    logits = linear_bias(x2d, params["out_w"], params["out_b"],
                         out_dtype=jnp.float32)                         # (B*L, V) f32
    return logits.reshape(B, L, -1)


# ----------------------------------------------------------------------------- main

if __name__ == "__main__":
    # small but lane-dense demo config (D and V multiples of 128)
    TRG_VOCAB = 128
    TRG_LENGTH = 64        # max_len for positional encoding
    D_MODEL = 128
    N_BLOCKS = 2
    HEADS = 4

    B = 2
    L_TRG = 16
    L_SRC = 16

    root = jax.random.PRNGKey(0)
    k_par, k_trg, k_enc = jax.random.split(root, 3)

    params = init_params(k_par, TRG_VOCAB, TRG_LENGTH, D_MODEL, N_BLOCKS, HEADS)
    trg = jax.random.randint(k_trg, (B, L_TRG), 0, TRG_VOCAB, dtype=jnp.int32)
    e_outputs = jax.random.normal(k_enc, (B, L_SRC, D_MODEL), jnp.float32)

    fwd = jax.jit(functools.partial(decoder_forward, d_model=D_MODEL, heads=HEADS))
    logits = fwd(params, trg, e_outputs)
    logits = jax.block_until_ready(logits)

    assert logits.shape == (B, L_TRG, TRG_VOCAB)
    assert bool(jnp.all(jnp.isfinite(logits)))
    print("KERNEL_OK")
</pallas_src>

<mosaic_0001>
module attributes {stable_mosaic.version = 11 : i64} {
  func.func @_linear_bias_kernel(%arg0: i32, %arg1: i32, %arg2: memref<16x128xbf16, #tpu.memory_space<vmem>>, %arg3: memref<128x128xbf16, #tpu.memory_space<vmem>>, %arg4: memref<1x128xf32, #tpu.memory_space<vmem>>, %arg5: memref<16x128xf32, #tpu.memory_space<vmem>>) attributes {dimension_semantics = [#tpu.dimension_semantics<parallel>, #tpu.dimension_semantics<parallel>], iteration_bounds = array<i64: 2, 1>, scalar_prefetch = 0 : i64, scratch_operands = 0 : i64, tpu.core_type = #tpu.core_type<tc>, window_params = [{transform_indices = @transform_0, window_bounds = array<i64: 16, 128>}, {transform_indices = @transform_1, window_bounds = array<i64: 128, 128>}, {transform_indices = @transform_2, window_bounds = array<i64: 1, 128>}, {transform_indices = @transform_3, window_bounds = array<i64: 16, 128>}]} {
    %c0 = arith.constant 0 : index
    %c0_0 = arith.constant 0 : index
    %0 = vector.load %arg2[%c0, %c0_0] : memref<16x128xbf16, #tpu.memory_space<vmem>>, vector<16x128xbf16>
    %c0_1 = arith.constant 0 : index
    %c0_2 = arith.constant 0 : index
    %1 = vector.load %arg3[%c0_1, %c0_2] : memref<128x128xbf16, #tpu.memory_space<vmem>>, vector<128x128xbf16>
    %cst = arith.constant dense<0.000000e+00> : vector<16x128xf32>
    %2 = tpu.matmul %0, %1, %cst {dimension_numbers = #tpu.dot_dimension_numbers<[1], [0], [0], [1], [0, 0, 1, 1], [], []>} : vector<16x128xbf16>, vector<128x128xbf16>, vector<16x128xf32> -> vector<16x128xf32>
    %c0_3 = arith.constant 0 : index
    %c0_4 = arith.constant 0 : index
    %3 = vector.load %arg4[%c0_3, %c0_4] : memref<1x128xf32, #tpu.memory_space<vmem>>, vector<1x128xf32>
    %4 = vector.broadcast %3 : vector<1x128xf32> to vector<16x128xf32>
    %5 = arith.addf %2, %4 : vector<16x128xf32>
    %c0_5 = arith.constant 0 : index
    %c0_6 = arith.constant 0 : index
    %6 = vector.load %arg5[%c0_5, %c0_6] : memref<16x128xf32, #tpu.memory_space<vmem>>, vector<16x128xf32>
    tpu.vector_store %arg5[%c0_5, %c0_6], %5 {strides = array<i32>} : memref<16x128xf32, #tpu.memory_space<vmem>>, vector<16x128xf32>,
    return
  }
  func.func @transform_0(%arg0: i32, %arg1: i32) -> (i32, i32) {
    %c0_i32 = arith.constant 0 : i32
    %c0_i32_0 = arith.constant 0 : i32
    return %arg0, %c0_i32 : i32, i32
  }
  func.func @transform_1(%arg0: i32, %arg1: i32) -> (i32, i32) {
    %c0_i32 = arith.constant 0 : i32
    %c0_i32_0 = arith.constant 0 : i32
    return %c0_i32, %arg1 : i32, i32
  }
  func.func @transform_2(%arg0: i32, %arg1: i32) -> (i32, i32) {
    %c0_i32 = arith.constant 0 : i32
    %c0_i32_0 = arith.constant 0 : i32
    return %c0_i32, %arg1 : i32, i32
  }
  func.func @transform_3(%arg0: i32, %arg1: i32) -> (i32, i32) {
    %c0_i32 = arith.constant 0 : i32
    return %arg0, %arg1 : i32, i32
  }
}

module attributes {stable_mosaic.version = 11 : i64} {
  func.func @_cross_attn_block_kernel(%arg0: i32, %arg1: memref<16x128xbf16, #tpu.memory_space<vmem>>, %arg2: memref<16x128xbf16, #tpu.memory_space<vmem>>, %arg3: memref<128x128xbf16, #tpu.memory_space<vmem>>, %arg4: memref<1x128xf32, #tpu.memory_space<vmem>>, %arg5: memref<128x256xbf16, #tpu.memory_space<vmem>>, %arg6: memref<1x256xf32, #tpu.memory_space<vmem>>, %arg7: memref<128x128xbf16, #tpu.memory_space<vmem>>, %arg8: memref<1x128xf32, #tpu.memory_space<vmem>>, %arg9: memref<1x128xf32, #tpu.memory_space<vmem>>, %arg10: memref<1x128xf32, #tpu.memory_space<vmem>>, %arg11: memref<16x128xbf16, #tpu.memory_space<vmem>>) attributes {dimension_semantics = [#tpu.dimension_semantics<parallel>], iteration_bounds = array<i64: 2>, scalar_prefetch = 0 : i64, scratch_operands = 0 : i64, tpu.core_type = #tpu.core_type<tc>, window_params = [{transform_indices = @transform_0, window_bounds = array<i64: 16, 128>}, {transform_indices = @transform_1, window_bounds = array<i64: 16, 128>}, {pipeline_mode = #tpu.pipeline_mode<synchronous>, transform_indices = @transform_2, window_bounds = array<i64: 128, 128>}, {pipeline_mode = #tpu.pipeline_mode<synchronous>, transform_indices = @transform_3, window_bounds = array<i64: 1, 128>}, {pipeline_mode = #tpu.pipeline_mode<synchronous>, transform_indices = @transform_4, window_bounds = array<i64: 128, 256>}, {pipeline_mode = #tpu.pipeline_mode<synchronous>, transform_indices = @transform_5, window_bounds = array<i64: 1, 256>}, {pipeline_mode = #tpu.pipeline_mode<synchronous>, transform_indices = @transform_6, window_bounds = array<i64: 128, 128>}, {pipeline_mode = #tpu.pipeline_mode<synchronous>, transform_indices = @transform_7, window_bounds = array<i64: 1, 128>}, {pipeline_mode = #tpu.pipeline_mode<synchronous>, transform_indices = @transform_8, window_bounds = array<i64: 1, 128>}, {pipeline_mode = #tpu.pipeline_mode<synchronous>, transform_indices = @transform_9, window_bounds = array<i64: 1, 128>}, {transform_indices = @transform_10, window_bounds = array<i64: 16, 128>}]} {
    %c0 = arith.constant 0 : index
    %c0_0 = arith.constant 0 : index
    %0 = vector.load %arg1[%c0, %c0_0] : memref<16x128xbf16, #tpu.memory_space<vmem>>, vector<16x128xbf16>
    %c0_1 = arith.constant 0 : index
    %c0_2 = arith.constant 0 : index
    %1 = vector.load %arg2[%c0_1, %c0_2] : memref<16x128xbf16, #tpu.memory_space<vmem>>, vector<16x128xbf16>
    %c0_3 = arith.constant 0 : index
    %c0_4 = arith.constant 0 : index
    %2 = vector.load %arg3[%c0_3, %c0_4] : memref<128x128xbf16, #tpu.memory_space<vmem>>, vector<128x128xbf16>
    %cst = arith.constant dense<0.000000e+00> : vector<16x128xf32>
    %3 = tpu.matmul %0, %2, %cst {dimension_numbers = #tpu.dot_dimension_numbers<[1], [0], [0], [1], [0, 0, 1, 1], [], []>} : vector<16x128xbf16>, vector<128x128xbf16>, vector<16x128xf32> -> vector<16x128xf32>
    %c0_5 = arith.constant 0 : index
    %c0_6 = arith.constant 0 : index
    %4 = vector.load %arg4[%c0_5, %c0_6] : memref<1x128xf32, #tpu.memory_space<vmem>>, vector<1x128xf32>
    %5 = vector.broadcast %4 : vector<1x128xf32> to vector<16x128xf32>
    %6 = arith.addf %3, %5 : vector<16x128xf32>
    %cst_7 = arith.constant 0.176776692 : f32
    %7 = vector.broadcast %cst_7 : f32 to vector<16x128xf32>
    %8 = arith.mulf %6, %7 : vector<16x128xf32>
    %c0_8 = arith.constant 0 : index
    %c0_9 = arith.constant 0 : index
    %9 = vector.load %arg5[%c0_8, %c0_9] : memref<128x256xbf16, #tpu.memory_space<vmem>>, vector<128x256xbf16>
    %cst_10 = arith.constant dense<0.000000e+00> : vector<16x256xf32>
    %10 = tpu.matmul %1, %9, %cst_10 {dimension_numbers = #tpu.dot_dimension_numbers<[1], [0], [0], [1], [0, 0, 1, 1], [], []>} : vector<16x128xbf16>, vector<128x256xbf16>, vector<16x256xf32> -> vector<16x256xf32>
    %c0_11 = arith.constant 0 : index
    %c0_12 = arith.constant 0 : index
    %11 = vector.load %arg6[%c0_11, %c0_12] : memref<1x256xf32, #tpu.memory_space<vmem>>, vector<1x256xf32>
    %12 = vector.broadcast %11 : vector<1x256xf32> to vector<16x256xf32>
    %13 = arith.addf %10, %12 : vector<16x256xf32>
    %14 = vector.extract_strided_slice %13 {offsets = [0, 0], sizes = [16, 128], strides = [1, 1]} : vector<16x256xf32> to vector<16x128xf32>
    %15 = arith.truncf %14 : vector<16x128xf32> to vector<16x128xbf16>
    %16 = vector.extract_strided_slice %13 {offsets = [0, 128], sizes = [16, 128], strides = [1, 1]} : vector<16x256xf32> to vector<16x128xf32>
    %17 = tpu.iota {dimensions = array<i32: 1>} : vector<16x128xi32>
    %18 = tpu.iota {dimensions = array<i32: 1>} : vector<16x128xi32>
    %cst_13 = arith.constant 0.000000e+00 : f32
    %19 = vector.broadcast %cst_13 : f32 to vector<16x128xf32>
    %c0_i32 = arith.constant 0 : i32
    %20 = vector.broadcast %c0_i32 : i32 to vector<16x128xi32>
    %21 = arith.cmpi sge, %17, %20 : vector<16x128xi32>
    %c32_i32 = arith.constant 32 : i32
    %22 = vector.broadcast %c32_i32 : i32 to vector<16x128xi32>
    %23 = arith.cmpi slt, %17, %22 : vector<16x128xi32>
    %24 = arith.andi %21, %23 : vector<16x128xi1>
    %c0_i32_14 = arith.constant 0 : i32
    %25 = vector.broadcast %c0_i32_14 : i32 to vector<16x128xi32>
    %26 = arith.cmpi sge, %18, %25 : vector<16x128xi32>
    %c32_i32_15 = arith.constant 32 : i32
    %27 = vector.broadcast %c32_i32_15 : i32 to vector<16x128xi32>
    %28 = arith.cmpi slt, %18, %27 : vector<16x128xi32>
    %29 = arith.andi %26, %28 : vector<16x128xi1>
    %cst_16 = arith.constant 0.000000e+00 : f32
    %30 = vector.broadcast %cst_16 : f32 to vector<16x128xf32>
    %31 = arith.select %24, %8, %30 : vector<16x128xi1>, vector<16x128xf32>
    %32 = arith.truncf %31 : vector<16x128xf32> to vector<16x128xbf16>
    %cst_17 = arith.constant dense<0.000000e+00> : vector<16x16xf32>
    %33 = tpu.matmul %32, %15, %cst_17 {dimension_numbers = #tpu.dot_dimension_numbers<[1], [1], [0], [0], [0, 0, 1, 0], [], []>} : vector<16x128xbf16>, vector<16x128xbf16>, vector<16x16xf32> -> vector<16x16xf32>
    %cst_18 = arith.constant dense<0xFF800000> : vector<16xf32>
    %34 = vector.multi_reduction <maximumf>, %33, %cst_18 [1] : vector<16x16xf32> to vector<16xf32>
    %35 = vector.shape_cast %34 : vector<16xf32> to vector<16x1xf32>
    %36 = vector.broadcast %35 : vector<16x1xf32> to vector<16x16xf32>
    %37 = arith.subf %33, %36 : vector<16x16xf32>
    %38 = math.exp %37 : vector<16x16xf32>
    %cst_19 = arith.constant dense<0.000000e+00> : vector<16xf32>
    %39 = vector.multi_reduction <add>, %38, %cst_19 [1] : vector<16x16xf32> to vector<16xf32>
    %40 = vector.shape_cast %39 : vector<16xf32> to vector<16x1xf32>
    %41 = tpu.reciprocal %40 {approx = true} : vector<16x1xf32> -> vector<16x1xf32>
    %42 = vector.broadcast %41 : vector<16x1xf32> to vector<16x16xf32>
    %43 = arith.mulf %38, %42 : vector<16x16xf32>
    %cst_20 = arith.constant 0.000000e+00 : f32
    %44 = vector.broadcast %cst_20 : f32 to vector<16x128xf32>
    %45 = arith.select %29, %16, %44 : vector<16x128xi1>, vector<16x128xf32>
    %46 = arith.truncf %45 : vector<16x128xf32> to vector<16x128xbf16>
    %47 = arith.truncf %43 : vector<16x16xf32> to vector<16x16xbf16>
    %cst_21 = arith.constant dense<0.000000e+00> : vector<16x128xf32>
    %48 = tpu.matmul %47, %46, %cst_21 {dimension_numbers = #tpu.dot_dimension_numbers<[1], [0], [0], [1], [0, 0, 1, 1], [], []>} : vector<16x16xbf16>, vector<16x128xbf16>, vector<16x128xf32> -> vector<16x128xf32>
    %49 = arith.addf %19, %48 : vector<16x128xf32>
    %c32_i32_22 = arith.constant 32 : i32
    %50 = vector.broadcast %c32_i32_22 : i32 to vector<16x128xi32>
    %51 = arith.cmpi sge, %17, %50 : vector<16x128xi32>
    %c64_i32 = arith.constant 64 : i32
    %52 = vector.broadcast %c64_i32 : i32 to vector<16x128xi32>
    %53 = arith.cmpi slt, %17, %52 : vector<16x128xi32>
    %54 = arith.andi %51, %53 : vector<16x128xi1>
    %c32_i32_23 = arith.constant 32 : i32
    %55 = vector.broadcast %c32_i32_23 : i32 to vector<16x128xi32>
    %56 = arith.cmpi sge, %18, %55 : vector<16x128xi32>
    %c64_i32_24 = arith.constant 64 : i32
    %57 = vector.broadcast %c64_i32_24 : i32 to vector<16x128xi32>
    %58 = arith.cmpi slt, %18, %57 : vector<16x128xi32>
    %59 = arith.andi %56, %58 : vector<16x128xi1>
    %cst_25 = arith.constant 0.000000e+00 : f32
    %60 = vector.broadcast %cst_25 : f32 to vector<16x128xf32>
    %61 = arith.select %54, %8, %60 : vector<16x128xi1>, vector<16x128xf32>
    %62 = arith.truncf %61 : vector<16x128xf32> to vector<16x128xbf16>
    %cst_26 = arith.constant dense<0.000000e+00> : vector<16x16xf32>
    %63 = tpu.matmul %62, %15, %cst_26 {dimension_numbers = #tpu.dot_dimension_numbers<[1], [1], [0], [0], [0, 0, 1, 0], [], []>} : vector<16x128xbf16>, vector<16x128xbf16>, vector<16x16xf32> -> vector<16x16xf32>
    %cst_27 = arith.constant dense<0xFF800000> : vector<16xf32>
    %64 = vector.multi_reduction <maximumf>, %63, %cst_27 [1] : vector<16x16xf32> to vector<16xf32>
    %65 = vector.shape_cast %64 : vector<16xf32> to vector<16x1xf32>
    %66 = vector.broadcast %65 : vector<16x1xf32> to vector<16x16xf32>
    %67 = arith.subf %63, %66 : vector<16x16xf32>
    %68 = math.exp %67 : vector<16x16xf32>
    %cst_28 = arith.constant dense<0.000000e+00> : vector<16xf32>
    %69 = vector.multi_reduction <add>, %68, %cst_28 [1] : vector<16x16xf32> to vector<16xf32>
    %70 = vector.shape_cast %69 : vector<16xf32> to vector<16x1xf32>
    %71 = tpu.reciprocal %70 {approx = true} : vector<16x1xf32> -> vector<16x1xf32>
    %72 = vector.broadcast %71 : vector<16x1xf32> to vector<16x16xf32>
    %73 = arith.mulf %68, %72 : vector<16x16xf32>
    %cst_29 = arith.constant 0.000000e+00 : f32
    %74 = vector.broadcast %cst_29 : f32 to vector<16x128xf32>
    %75 = arith.select %59, %16, %74 : vector<16x128xi1>, vector<16x128xf32>
    %76 = arith.truncf %75 : vector<16x128xf32> to vector<16x128xbf16>
    %77 = arith.truncf %73 : vector<16x16xf32> to vector<16x16xbf16>
    %cst_30 = arith.constant dense<0.000000e+00> : vector<16x128xf32>
    %78 = tpu.matmul %77, %76, %cst_30 {dimension_numbers = #tpu.dot_dimension_numbers<[1], [0], [0], [1], [0, 0, 1, 1], [], []>} : vector<16x16xbf16>, vector<16x128xbf16>, vector<16x128xf32> -> vector<16x128xf32>
    %79 = arith.addf %49, %78 : vector<16x128xf32>
    %c64_i32_31 = arith.constant 64 : i32
    %80 = vector.broadcast %c64_i32_31 : i32 to vector<16x128xi32>
    %81 = arith.cmpi sge, %17, %80 : vector<16x128xi32>
    %c96_i32 = arith.constant 96 : i32
    %82 = vector.broadcast %c96_i32 : i32 to vector<16x128xi32>
    %83 = arith.cmpi slt, %17, %82 : vector<16x128xi32>
    %84 = arith.andi %81, %83 : vector<16x128xi1>
    %c64_i32_32 = arith.constant 64 : i32
    %85 = vector.broadcast %c64_i32_32 : i32 to vector<16x128xi32>
    %86 = arith.cmpi sge, %18, %85 : vector<16x128xi32>
    %c96_i32_33 = arith.constant 96 : i32
    %87 = vector.broadcast %c96_i32_33 : i32 to vector<16x128xi32>
    %88 = arith.cmpi slt, %18, %87 : vector<16x128xi32>
    %89 = arith.andi %86, %88 : vector<16x128xi1>
    %cst_34 = arith.constant 0.000000e+00 : f32
    %90 = vector.broadcast %cst_34 : f32 to vector<16x128xf32>
    %91 = arith.select %84, %8, %90 : vector<16x128xi1>, vector<16x128xf32>
    %92 = arith.truncf %91 : vector<16x128xf32> to vector<16x128xbf16>
    %cst_35 = arith.constant dense<0.000000e+00> : vector<16x16xf32>
    %93 = tpu.matmul %92, %15, %cst_35 {dimension_numbers = #tpu.dot_dimension_numbers<[1], [1], [0], [0], [0, 0, 1, 0], [], []>} : vector<16x128xbf16>, vector<16x128xbf16>, vector<16x16xf32> -> vector<16x16xf32>
    %cst_36 = arith.constant dense<0xFF800000> : vector<16xf32>
    %94 = vector.multi_reduction <maximumf>, %93, %cst_36 [1] : vector<16x16xf32> to vector<16xf32>
    %95 = vector.shape_cast %94 : vector<16xf32> to vector<16x1xf32>
    %96 = vector.broadcast %95 : vector<16x1xf32> to vector<16x16xf32>
    %97 = arith.subf %93, %96 : vector<16x16xf32>
    %98 = math.exp %97 : vector<16x16xf32>
    %cst_37 = arith.constant dense<0.000000e+00> : vector<16xf32>
    %99 = vector.multi_reduction <add>, %98, %cst_37 [1] : vector<16x16xf32> to vector<16xf32>
    %100 = vector.shape_cast %99 : vector<16xf32> to vector<16x1xf32>
    %101 = tpu.reciprocal %100 {approx = true} : vector<16x1xf32> -> vector<16x1xf32>
    %102 = vector.broadcast %101 : vector<16x1xf32> to vector<16x16xf32>
    %103 = arith.mulf %98, %102 : vector<16x16xf32>
    %cst_38 = arith.constant 0.000000e+00 : f32
    %104 = vector.broadcast %cst_38 : f32 to vector<16x128xf32>
    %105 = arith.select %89, %16, %104 : vector<16x128xi1>, vector<16x128xf32>
    %106 = arith.truncf %105 : vector<16x128xf32> to vector<16x128xbf16>
    %107 = arith.truncf %103 : vector<16x16xf32> to vector<16x16xbf16>
    %cst_39 = arith.constant dense<0.000000e+00> : vector<16x128xf32>
    %108 = tpu.matmul %107, %106, %cst_39 {dimension_numbers = #tpu.dot_dimension_numbers<[1], [0], [0], [1], [0, 0, 1, 1], [], []>} : vector<16x16xbf16>, vector<16x128xbf16>, vector<16x128xf32> -> vector<16x128xf32>
    %109 = arith.addf %79, %108 : vector<16x128xf32>
    %c96_i32_40 = arith.constant 96 : i32
    %110 = vector.broadcast %c96_i32_40 : i32 to vector<16x128xi32>
    %111 = arith.cmpi sge, %17, %110 : vector<16x128xi32>
    %c128_i32 = arith.constant 128 : i32
    %112 = vector.broadcast %c128_i32 : i32 to vector<16x128xi32>
    %113 = arith.cmpi slt, %17, %112 : vector<16x128xi32>
    %114 = arith.andi %111, %113 : vector<16x128xi1>
    %c96_i32_41 = arith.constant 96 : i32
    %115 = vector.broadcast %c96_i32_41 : i32 to vector<16x128xi32>
    %116 = arith.cmpi sge, %18, %115 : vector<16x128xi32>
    %c128_i32_42 = arith.constant 128 : i32
    %117 = vector.broadcast %c128_i32_42 : i32 to vector<16x128xi32>
    %118 = arith.cmpi slt, %18, %117 : vector<16x128xi32>
    %119 = arith.andi %116, %118 : vector<16x128xi1>
    %cst_43 = arith.constant 0.000000e+00 : f32
    %120 = vector.broadcast %cst_43 : f32 to vector<16x128xf32>
    %121 = arith.select %114, %8, %120 : vector<16x128xi1>, vector<16x128xf32>
    %122 = arith.truncf %121 : vector<16x128xf32> to vector<16x128xbf16>
    %cst_44 = arith.constant dense<0.000000e+00> : vector<16x16xf32>
    %123 = tpu.matmul %122, %15, %cst_44 {dimension_numbers = #tpu.dot_dimension_numbers<[1], [1], [0], [0], [0, 0, 1, 0], [], []>} : vector<16x128xbf16>, vector<16x128xbf16>, vector<16x16xf32> -> vector<16x16xf32>
    %cst_45 = arith.constant dense<0xFF800000> : vector<16xf32>
    %124 = vector.multi_reduction <maximumf>, %123, %cst_45 [1] : vector<16x16xf32> to vector<16xf32>
    %125 = vector.shape_cast %124 : vector<16xf32> to vector<16x1xf32>
    %126 = vector.broadcast %125 : vector<16x1xf32> to vector<16x16xf32>
    %127 = arith.subf %123, %126 : vector<16x16xf32>
    %128 = math.exp %127 : vector<16x16xf32>
    %cst_46 = arith.constant dense<0.000000e+00> : vector<16xf32>
    %129 = vector.multi_reduction <add>, %128, %cst_46 [1] : vector<16x16xf32> to vector<16xf32>
    %130 = vector.shape_cast %129 : vector<16xf32> to vector<16x1xf32>
    %131 = tpu.reciprocal %130 {approx = true} : vector<16x1xf32> -> vector<16x1xf32>
    %132 = vector.broadcast %131 : vector<16x1xf32> to vector<16x16xf32>
    %133 = arith.mulf %128, %132 : vector<16x16xf32>
    %cst_47 = arith.constant 0.000000e+00 : f32
    %134 = vector.broadcast %cst_47 : f32 to vector<16x128xf32>
    %135 = arith.select %119, %16, %134 : vector<16x128xi1>, vector<16x128xf32>
    %136 = arith.truncf %135 : vector<16x128xf32> to vector<16x128xbf16>
    %137 = arith.truncf %133 : vector<16x16xf32> to vector<16x16xbf16>
    %cst_48 = arith.constant dense<0.000000e+00> : vector<16x128xf32>
    %138 = tpu.matmul %137, %136, %cst_48 {dimension_numbers = #tpu.dot_dimension_numbers<[1], [0], [0], [1], [0, 0, 1, 1], [], []>} : vector<16x16xbf16>, vector<16x128xbf16>, vector<16x128xf32> -> vector<16x128xf32>
    %139 = arith.addf %109, %138 : vector<16x128xf32>
    %140 = arith.truncf %139 : vector<16x128xf32> to vector<16x128xbf16>
    %c0_49 = arith.constant 0 : index
    %c0_50 = arith.constant 0 : index
    %141 = vector.load %arg7[%c0_49, %c0_50] : memref<128x128xbf16, #tpu.memory_space<vmem>>, vector<128x128xbf16>
    %cst_51 = arith.constant dense<0.000000e+00> : vector<16x128xf32>
    %142 = tpu.matmul %140, %141, %cst_51 {dimension_numbers = #tpu.dot_dimension_numbers<[1], [0], [0], [1], [0, 0, 1, 1], [], []>} : vector<16x128xbf16>, vector<128x128xbf16>, vector<16x128xf32> -> vector<16x128xf32>
    %c0_52 = arith.constant 0 : index
    %c0_53 = arith.constant 0 : index
    %143 = vector.load %arg8[%c0_52, %c0_53] : memref<1x128xf32, #tpu.memory_space<vmem>>, vector<1x128xf32>
    %144 = vector.broadcast %143 : vector<1x128xf32> to vector<16x128xf32>
    %145 = arith.addf %142, %144 : vector<16x128xf32>
    %146 = arith.extf %0 : vector<16x128xbf16> to vector<16x128xf32>
    %147 = arith.addf %145, %146 : vector<16x128xf32>
    %c0_54 = arith.constant 0 : index
    %c0_55 = arith.constant 0 : index
    %148 = vector.load %arg9[%c0_54, %c0_55] : memref<1x128xf32, #tpu.memory_space<vmem>>, vector<1x128xf32>
    %c0_56 = arith.constant 0 : index
    %c0_57 = arith.constant 0 : index
    %149 = vector.load %arg10[%c0_56, %c0_57] : memref<1x128xf32, #tpu.memory_space<vmem>>, vector<1x128xf32>
    %cst_58 = arith.constant dense<0.000000e+00> : vector<16xf32>
    %150 = vector.multi_reduction <add>, %147, %cst_58 [1] : vector<16x128xf32> to vector<16xf32>
    %151 = vector.shape_cast %150 : vector<16xf32> to vector<16x1xf32>
    %cst_59 = arith.constant 1.280000e+02 : f32
    %152 = vector.broadcast %cst_59 : f32 to vector<16x1xf32>
    %153 = arith.divf %151, %152 : vector<16x1xf32>
    %154 = vector.broadcast %153 : vector<16x1xf32> to vector<16x128xf32>
    %155 = arith.subf %147, %154 : vector<16x128xf32>
    %156 = arith.mulf %155, %155 : vector<16x128xf32>
    %cst_60 = arith.constant dense<0.000000e+00> : vector<16xf32>
    %157 = vector.multi_reduction <add>, %156, %cst_60 [1] : vector<16x128xf32> to vector<16xf32>
    %158 = vector.shape_cast %157 : vector<16xf32> to vector<16x1xf32>
    %cst_61 = arith.constant 1.280000e+02 : f32
    %159 = vector.broadcast %cst_61 : f32 to vector<16x1xf32>
    %160 = arith.divf %158, %159 : vector<16x1xf32>
    %161 = vector.broadcast %153 : vector<16x1xf32> to vector<16x128xf32>
    %162 = arith.subf %147, %161 : vector<16x128xf32>
    %cst_62 = arith.constant 9.99999974E-6 : f32
    %163 = vector.broadcast %cst_62 : f32 to vector<16x1xf32>
    %164 = arith.addf %160, %163 : vector<16x1xf32>
    %165 = math.rsqrt %164 : vector<16x1xf32>
    %166 = vector.broadcast %165 : vector<16x1xf32> to vector<16x128xf32>
    %167 = arith.mulf %162, %166 : vector<16x128xf32>
    %168 = vector.broadcast %148 : vector<1x128xf32> to vector<16x128xf32>
    %169 = arith.mulf %167, %168 : vector<16x128xf32>
    %170 = vector.broadcast %149 : vector<1x128xf32> to vector<16x128xf32>
    %171 = arith.addf %169, %170 : vector<16x128xf32>
    %172 = arith.truncf %171 : vector<16x128xf32> to vector<16x128xbf16>
    %c0_63 = arith.constant 0 : index
    %c0_64 = arith.constant 0 : index
    %173 = vector.load %arg11[%c0_63, %c0_64] : memref<16x128xbf16, #tpu.memory_space<vmem>>, vector<16x128xbf16>
    tpu.vector_store %arg11[%c0_63, %c0_64], %172 {strides = array<i32>} : memref<16x128xbf16, #tpu.memory_space<vmem>>, vector<16x128xbf16>,
    return
  }
  func.func @transform_0(%arg0: i32) -> (i32, i32) {
    %c0_i32 = arith.constant 0 : i32
    %c0_i32_0 = arith.constant 0 : i32
    return %arg0, %c0_i32 : i32, i32
  }
  func.func @transform_1(%arg0: i32) -> (i32, i32) {
    %c0_i32 = arith.constant 0 : i32
    %c0_i32_0 = arith.constant 0 : i32
    return %arg0, %c0_i32 : i32, i32
  }
  func.func @transform_2(%arg0: i32) -> (i32, i32) {
    %c0_i32 = arith.constant 0 : i32
    %c0_i32_0 = arith.constant 0 : i32
    %c0_i32_1 = arith.constant 0 : i32
    return %c0_i32, %c0_i32_0 : i32, i32
  }
  func.func @transform_3(%arg0: i32) -> (i32, i32) {
    %c0_i32 = arith.constant 0 : i32
    %c0_i32_0 = arith.constant 0 : i32
    %c0_i32_1 = arith.constant 0 : i32
    return %c0_i32, %c0_i32_0 : i32, i32
  }
  func.func @transform_4(%arg0: i32) -> (i32, i32) {
    %c0_i32 = arith.constant 0 : i32
    %c0_i32_0 = arith.constant 0 : i32
    %c0_i32_1 = arith.constant 0 : i32
    return %c0_i32, %c0_i32_0 : i32, i32
  }
  func.func @transform_5(%arg0: i32) -> (i32, i32) {
    %c0_i32 = arith.constant 0 : i32
    %c0_i32_0 = arith.constant 0 : i32
    %c0_i32_1 = arith.constant 0 : i32
    return %c0_i32, %c0_i32_0 : i32, i32
  }
  func.func @transform_6(%arg0: i32) -> (i32, i32) {
    %c0_i32 = arith.constant 0 : i32
    %c0_i32_0 = arith.constant 0 : i32
    %c0_i32_1 = arith.constant 0 : i32
    return %c0_i32, %c0_i32_0 : i32, i32
  }
  func.func @transform_7(%arg0: i32) -> (i32, i32) {
    %c0_i32 = arith.constant 0 : i32
    %c0_i32_0 = arith.constant 0 : i32
    %c0_i32_1 = arith.constant 0 : i32
    return %c0_i32, %c0_i32_0 : i32, i32
  }
  func.func @transform_8(%arg0: i32) -> (i32, i32) {
    %c0_i32 = arith.constant 0 : i32
    %c0_i32_0 = arith.constant 0 : i32
    %c0_i32_1 = arith.constant 0 : i32
    return %c0_i32, %c0_i32_0 : i32, i32
  }
  func.func @transform_9(%arg0: i32) -> (i32, i32) {
    %c0_i32 = arith.constant 0 : i32
    %c0_i32_0 = arith.constant 0 : i32
    %c0_i32_1 = arith.constant 0 : i32
    return %c0_i32, %c0_i32_0 : i32, i32
  }
  func.func @transform_10(%arg0: i32) -> (i32, i32) {
    %c0_i32 = arith.constant 0 : i32
    %c0_i32_0 = arith.constant 0 : i32
    return %arg0, %c0_i32 : i32, i32
  }
}

module attributes {stable_mosaic.version = 11 : i64} {
  func.func @_ffn_add_ln_kernel(%arg0: i32, %arg1: memref<16x128xbf16, #tpu.memory_space<vmem>>, %arg2: memref<128x512xbf16, #tpu.memory_space<vmem>>, %arg3: memref<1x512xf32, #tpu.memory_space<vmem>>, %arg4: memref<512x128xbf16, #tpu.memory_space<vmem>>, %arg5: memref<1x128xf32, #tpu.memory_space<vmem>>, %arg6: memref<1x128xf32, #tpu.memory_space<vmem>>, %arg7: memref<1x128xf32, #tpu.memory_space<vmem>>, %arg8: memref<16x128xbf16, #tpu.memory_space<vmem>>) attributes {dimension_semantics = [#tpu.dimension_semantics<parallel>], iteration_bounds = array<i64: 2>, scalar_prefetch = 0 : i64, scratch_operands = 0 : i64, tpu.core_type = #tpu.core_type<tc>, window_params = [{transform_indices = @transform_0, window_bounds = array<i64: 16, 128>}, {pipeline_mode = #tpu.pipeline_mode<synchronous>, transform_indices = @transform_1, window_bounds = array<i64: 128, 512>}, {pipeline_mode = #tpu.pipeline_mode<synchronous>, transform_indices = @transform_2, window_bounds = array<i64: 1, 512>}, {pipeline_mode = #tpu.pipeline_mode<synchronous>, transform_indices = @transform_3, window_bounds = array<i64: 512, 128>}, {pipeline_mode = #tpu.pipeline_mode<synchronous>, transform_indices = @transform_4, window_bounds = array<i64: 1, 128>}, {pipeline_mode = #tpu.pipeline_mode<synchronous>, transform_indices = @transform_5, window_bounds = array<i64: 1, 128>}, {pipeline_mode = #tpu.pipeline_mode<synchronous>, transform_indices = @transform_6, window_bounds = array<i64: 1, 128>}, {transform_indices = @transform_7, window_bounds = array<i64: 16, 128>}]} {
    %c0 = arith.constant 0 : index
    %c0_0 = arith.constant 0 : index
    %0 = vector.load %arg1[%c0, %c0_0] : memref<16x128xbf16, #tpu.memory_space<vmem>>, vector<16x128xbf16>
    %c0_1 = arith.constant 0 : index
    %c0_2 = arith.constant 0 : index
    %1 = vector.load %arg2[%c0_1, %c0_2] : memref<128x512xbf16, #tpu.memory_space<vmem>>, vector<128x512xbf16>
    %cst = arith.constant dense<0.000000e+00> : vector<16x512xf32>
    %2 = tpu.matmul %0, %1, %cst {dimension_numbers = #tpu.dot_dimension_numbers<[1], [0], [0], [1], [0, 0, 1, 1], [], []>} : vector<16x128xbf16>, vector<128x512xbf16>, vector<16x512xf32> -> vector<16x512xf32>
    %c0_3 = arith.constant 0 : index
    %c0_4 = arith.constant 0 : index
    %3 = vector.load %arg3[%c0_3, %c0_4] : memref<1x512xf32, #tpu.memory_space<vmem>>, vector<1x512xf32>
    %4 = vector.broadcast %3 : vector<1x512xf32> to vector<16x512xf32>
    %5 = arith.addf %2, %4 : vector<16x512xf32>
    %cst_5 = arith.constant 5.000000e-01 : f32
    %6 = vector.broadcast %cst_5 : f32 to vector<16x512xf32>
    %7 = arith.mulf %6, %5 : vector<16x512xf32>
    %cst_6 = arith.constant 4.471500e-02 : f32
    %8 = vector.broadcast %cst_6 : f32 to vector<16x512xf32>
    %9 = arith.mulf %8, %5 : vector<16x512xf32>
    %10 = arith.mulf %9, %5 : vector<16x512xf32>
    %11 = arith.mulf %10, %5 : vector<16x512xf32>
    %12 = arith.addf %5, %11 : vector<16x512xf32>
    %cst_7 = arith.constant 0.797884583 : f32
    %13 = vector.broadcast %cst_7 : f32 to vector<16x512xf32>
    %14 = arith.mulf %13, %12 : vector<16x512xf32>
    %15 = math.tanh %14 : vector<16x512xf32>
    %cst_8 = arith.constant 1.000000e+00 : f32
    %16 = vector.broadcast %cst_8 : f32 to vector<16x512xf32>
    %17 = arith.addf %16, %15 : vector<16x512xf32>
    %18 = arith.mulf %7, %17 : vector<16x512xf32>
    %19 = arith.truncf %18 : vector<16x512xf32> to vector<16x512xbf16>
    %c0_9 = arith.constant 0 : index
    %c0_10 = arith.constant 0 : index
    %20 = vector.load %arg4[%c0_9, %c0_10] : memref<512x128xbf16, #tpu.memory_space<vmem>>, vector<512x128xbf16>
    %cst_11 = arith.constant dense<0.000000e+00> : vector<16x128xf32>
    %21 = tpu.matmul %19, %20, %cst_11 {dimension_numbers = #tpu.dot_dimension_numbers<[1], [0], [0], [1], [0, 0, 1, 1], [], []>} : vector<16x512xbf16>, vector<512x128xbf16>, vector<16x128xf32> -> vector<16x128xf32>
    %c0_12 = arith.constant 0 : index
    %c0_13 = arith.constant 0 : index
    %22 = vector.load %arg5[%c0_12, %c0_13] : memref<1x128xf32, #tpu.memory_space<vmem>>, vector<1x128xf32>
    %23 = vector.broadcast %22 : vector<1x128xf32> to vector<16x128xf32>
    %24 = arith.addf %21, %23 : vector<16x128xf32>
    %25 = arith.extf %0 : vector<16x128xbf16> to vector<16x128xf32>
    %26 = arith.addf %24, %25 : vector<16x128xf32>
    %c0_14 = arith.constant 0 : index
    %c0_15 = arith.constant 0 : index
    %27 = vector.load %arg6[%c0_14, %c0_15] : memref<1x128xf32, #tpu.memory_space<vmem>>, vector<1x128xf32>
    %c0_16 = arith.constant 0 : index
    %c0_17 = arith.constant 0 : index
    %28 = vector.load %arg7[%c0_16, %c0_17] : memref<1x128xf32, #tpu.memory_space<vmem>>, vector<1x128xf32>
    %cst_18 = arith.constant dense<0.000000e+00> : vector<16xf32>
    %29 = vector.multi_reduction <add>, %26, %cst_18 [1] : vector<16x128xf32> to vector<16xf32>
    %30 = vector.shape_cast %29 : vector<16xf32> to vector<16x1xf32>
    %cst_19 = arith.constant 1.280000e+02 : f32
    %31 = vector.broadcast %cst_19 : f32 to vector<16x1xf32>
    %32 = arith.divf %30, %31 : vector<16x1xf32>
    %33 = vector.broadcast %32 : vector<16x1xf32> to vector<16x128xf32>
    %34 = arith.subf %26, %33 : vector<16x128xf32>
    %35 = arith.mulf %34, %34 : vector<16x128xf32>
    %cst_20 = arith.constant dense<0.000000e+00> : vector<16xf32>
    %36 = vector.multi_reduction <add>, %35, %cst_20 [1] : vector<16x128xf32> to vector<16xf32>
    %37 = vector.shape_cast %36 : vector<16xf32> to vector<16x1xf32>
    %cst_21 = arith.constant 1.280000e+02 : f32
    %38 = vector.broadcast %cst_21 : f32 to vector<16x1xf32>
    %39 = arith.divf %37, %38 : vector<16x1xf32>
    %40 = vector.broadcast %32 : vector<16x1xf32> to vector<16x128xf32>
    %41 = arith.subf %26, %40 : vector<16x128xf32>
    %cst_22 = arith.constant 9.99999974E-6 : f32
    %42 = vector.broadcast %cst_22 : f32 to vector<16x1xf32>
    %43 = arith.addf %39, %42 : vector<16x1xf32>
    %44 = math.rsqrt %43 : vector<16x1xf32>
    %45 = vector.broadcast %44 : vector<16x1xf32> to vector<16x128xf32>
    %46 = arith.mulf %41, %45 : vector<16x128xf32>
    %47 = vector.broadcast %27 : vector<1x128xf32> to vector<16x128xf32>
    %48 = arith.mulf %46, %47 : vector<16x128xf32>
    %49 = vector.broadcast %28 : vector<1x128xf32> to vector<16x128xf32>
    %50 = arith.addf %48, %49 : vector<16x128xf32>
    %51 = arith.truncf %50 : vector<16x128xf32> to vector<16x128xbf16>
    %c0_23 = arith.constant 0 : index
    %c0_24 = arith.constant 0 : index
    %52 = vector.load %arg8[%c0_23, %c0_24] : memref<16x128xbf16, #tpu.memory_space<vmem>>, vector<16x128xbf16>
    tpu.vector_store %arg8[%c0_23, %c0_24], %51 {strides = array<i32>} : memref<16x128xbf16, #tpu.memory_space<vmem>>, vector<16x128xbf16>,
    return
  }
  func.func @transform_0(%arg0: i32) -> (i32, i32) {
    %c0_i32 = arith.constant 0 : i32
    %c0_i32_0 = arith.constant 0 : i32
    return %arg0, %c0_i32 : i32, i32
  }
  func.func @transform_1(%arg0: i32) -> (i32, i32) {
    %c0_i32 = arith.constant 0 : i32
    %c0_i32_0 = arith.constant 0 : i32
    %c0_i32_1 = arith.constant 0 : i32
    return %c0_i32, %c0_i32_0 : i32, i32
  }
  func.func @transform_2(%arg0: i32) -> (i32, i32) {
    %c0_i32 = arith.constant 0 : i32
    %c0_i32_0 = arith.constant 0 : i32
    %c0_i32_1 = arith.constant 0 : i32
    return %c0_i32, %c0_i32_0 : i32, i32
  }
  func.func @transform_3(%arg0: i32) -> (i32, i32) {
    %c0_i32 = arith.constant 0 : i32
    %c0_i32_0 = arith.constant 0 : i32
    %c0_i32_1 = arith.constant 0 : i32
    return %c0_i32, %c0_i32_0 : i32, i32
  }
  func.func @transform_4(%arg0: i32) -> (i32, i32) {
    %c0_i32 = arith.constant 0 : i32
    %c0_i32_0 = arith.constant 0 : i32
    %c0_i32_1 = arith.constant 0 : i32
    return %c0_i32, %c0_i32_0 : i32, i32
  }
  func.func @transform_5(%arg0: i32) -> (i32, i32) {
    %c0_i32 = arith.constant 0 : i32
    %c0_i32_0 = arith.constant 0 : i32
    %c0_i32_1 = arith.constant 0 : i32
    return %c0_i32, %c0_i32_0 : i32, i32
  }
  func.func @transform_6(%arg0: i32) -> (i32, i32) {
    %c0_i32 = arith.constant 0 : i32
    %c0_i32_0 = arith.constant 0 : i32
    %c0_i32_1 = arith.constant 0 : i32
    return %c0_i32, %c0_i32_0 : i32, i32
  }
  func.func @transform_7(%arg0: i32) -> (i32, i32) {
    %c0_i32 = arith.constant 0 : i32
    %c0_i32_0 = arith.constant 0 : i32
    return %arg0, %c0_i32 : i32, i32
  }
}

module attributes {stable_mosaic.version = 11 : i64} {
  func.func @_self_attn_block_kernel(%arg0: i32, %arg1: memref<16x128xbf16, #tpu.memory_space<vmem>>, %arg2: memref<128x384xbf16, #tpu.memory_space<vmem>>, %arg3: memref<1x384xf32, #tpu.memory_space<vmem>>, %arg4: memref<128x128xbf16, #tpu.memory_space<vmem>>, %arg5: memref<1x128xf32, #tpu.memory_space<vmem>>, %arg6: memref<1x128xf32, #tpu.memory_space<vmem>>, %arg7: memref<1x128xf32, #tpu.memory_space<vmem>>, %arg8: memref<16x128xbf16, #tpu.memory_space<vmem>>) attributes {dimension_semantics = [#tpu.dimension_semantics<parallel>], iteration_bounds = array<i64: 2>, scalar_prefetch = 0 : i64, scratch_operands = 0 : i64, tpu.core_type = #tpu.core_type<tc>, window_params = [{transform_indices = @transform_0, window_bounds = array<i64: 16, 128>}, {pipeline_mode = #tpu.pipeline_mode<synchronous>, transform_indices = @transform_1, window_bounds = array<i64: 128, 384>}, {pipeline_mode = #tpu.pipeline_mode<synchronous>, transform_indices = @transform_2, window_bounds = array<i64: 1, 384>}, {pipeline_mode = #tpu.pipeline_mode<synchronous>, transform_indices = @transform_3, window_bounds = array<i64: 128, 128>}, {pipeline_mode = #tpu.pipeline_mode<synchronous>, transform_indices = @transform_4, window_bounds = array<i64: 1, 128>}, {pipeline_mode = #tpu.pipeline_mode<synchronous>, transform_indices = @transform_5, window_bounds = array<i64: 1, 128>}, {pipeline_mode = #tpu.pipeline_mode<synchronous>, transform_indices = @transform_6, window_bounds = array<i64: 1, 128>}, {transform_indices = @transform_7, window_bounds = array<i64: 16, 128>}]} {
    %c0 = arith.constant 0 : index
    %c0_0 = arith.constant 0 : index
    %0 = vector.load %arg1[%c0, %c0_0] : memref<16x128xbf16, #tpu.memory_space<vmem>>, vector<16x128xbf16>
    %c0_1 = arith.constant 0 : index
    %c0_2 = arith.constant 0 : index
    %1 = vector.load %arg2[%c0_1, %c0_2] : memref<128x384xbf16, #tpu.memory_space<vmem>>, vector<128x384xbf16>
    %cst = arith.constant dense<0.000000e+00> : vector<16x384xf32>
    %2 = tpu.matmul %0, %1, %cst {dimension_numbers = #tpu.dot_dimension_numbers<[1], [0], [0], [1], [0, 0, 1, 1], [], []>} : vector<16x128xbf16>, vector<128x384xbf16>, vector<16x384xf32> -> vector<16x384xf32>
    %c0_3 = arith.constant 0 : index
    %c0_4 = arith.constant 0 : index
    %3 = vector.load %arg3[%c0_3, %c0_4] : memref<1x384xf32, #tpu.memory_space<vmem>>, vector<1x384xf32>
    %4 = vector.broadcast %3 : vector<1x384xf32> to vector<16x384xf32>
    %5 = arith.addf %2, %4 : vector<16x384xf32>
    %6 = vector.extract_strided_slice %5 {offsets = [0, 0], sizes = [16, 128], strides = [1, 1]} : vector<16x384xf32> to vector<16x128xf32>
    %cst_5 = arith.constant 0.176776692 : f32
    %7 = vector.broadcast %cst_5 : f32 to vector<16x128xf32>
    %8 = arith.mulf %6, %7 : vector<16x128xf32>
    %9 = vector.extract_strided_slice %5 {offsets = [0, 128], sizes = [16, 128], strides = [1, 1]} : vector<16x384xf32> to vector<16x128xf32>
    %10 = arith.truncf %9 : vector<16x128xf32> to vector<16x128xbf16>
    %11 = vector.extract_strided_slice %5 {offsets = [0, 256], sizes = [16, 128], strides = [1, 1]} : vector<16x384xf32> to vector<16x128xf32>
    %12 = tpu.iota {dimensions = array<i32: 1>} : vector<16x128xi32>
    %13 = tpu.iota {dimensions = array<i32: 0>} : vector<16x16xi32>
    %14 = tpu.iota {dimensions = array<i32: 1>} : vector<16x16xi32>
    %cst_6 = arith.constant 0.000000e+00 : f32
    %15 = vector.broadcast %cst_6 : f32 to vector<16x128xf32>
    %c0_i32 = arith.constant 0 : i32
    %16 = vector.broadcast %c0_i32 : i32 to vector<16x128xi32>
    %17 = arith.cmpi sge, %12, %16 : vector<16x128xi32>
    %c32_i32 = arith.constant 32 : i32
    %18 = vector.broadcast %c32_i32 : i32 to vector<16x128xi32>
    %19 = arith.cmpi slt, %12, %18 : vector<16x128xi32>
    %20 = arith.andi %17, %19 : vector<16x128xi1>
    %cst_7 = arith.constant 0.000000e+00 : f32
    %21 = vector.broadcast %cst_7 : f32 to vector<16x128xf32>
    %22 = arith.select %20, %8, %21 : vector<16x128xi1>, vector<16x128xf32>
    %23 = arith.truncf %22 : vector<16x128xf32> to vector<16x128xbf16>
    %cst_8 = arith.constant dense<0.000000e+00> : vector<16x16xf32>
    %24 = tpu.matmul %23, %10, %cst_8 {dimension_numbers = #tpu.dot_dimension_numbers<[1], [1], [0], [0], [0, 0, 1, 0], [], []>} : vector<16x128xbf16>, vector<16x128xbf16>, vector<16x16xf32> -> vector<16x16xf32>
    %25 = arith.cmpi sgt, %14, %13 : vector<16x16xi32>
    %cst_9 = arith.constant -1.000000e+30 : f32
    %26 = vector.broadcast %cst_9 : f32 to vector<16x16xf32>
    %27 = arith.select %25, %26, %24 : vector<16x16xi1>, vector<16x16xf32>
    %cst_10 = arith.constant dense<0xFF800000> : vector<16xf32>
    %28 = vector.multi_reduction <maximumf>, %27, %cst_10 [1] : vector<16x16xf32> to vector<16xf32>
    %29 = vector.shape_cast %28 : vector<16xf32> to vector<16x1xf32>
    %30 = vector.broadcast %29 : vector<16x1xf32> to vector<16x16xf32>
    %31 = arith.subf %27, %30 : vector<16x16xf32>
    %32 = math.exp %31 : vector<16x16xf32>
    %cst_11 = arith.constant dense<0.000000e+00> : vector<16xf32>
    %33 = vector.multi_reduction <add>, %32, %cst_11 [1] : vector<16x16xf32> to vector<16xf32>
    %34 = vector.shape_cast %33 : vector<16xf32> to vector<16x1xf32>
    %35 = tpu.reciprocal %34 {approx = true} : vector<16x1xf32> -> vector<16x1xf32>
    %36 = vector.broadcast %35 : vector<16x1xf32> to vector<16x16xf32>
    %37 = arith.mulf %32, %36 : vector<16x16xf32>
    %cst_12 = arith.constant 0.000000e+00 : f32
    %38 = vector.broadcast %cst_12 : f32 to vector<16x128xf32>
    %39 = arith.select %20, %11, %38 : vector<16x128xi1>, vector<16x128xf32>
    %40 = arith.truncf %39 : vector<16x128xf32> to vector<16x128xbf16>
    %41 = arith.truncf %37 : vector<16x16xf32> to vector<16x16xbf16>
    %cst_13 = arith.constant dense<0.000000e+00> : vector<16x128xf32>
    %42 = tpu.matmul %41, %40, %cst_13 {dimension_numbers = #tpu.dot_dimension_numbers<[1], [0], [0], [1], [0, 0, 1, 1], [], []>} : vector<16x16xbf16>, vector<16x128xbf16>, vector<16x128xf32> -> vector<16x128xf32>
    %43 = arith.addf %15, %42 : vector<16x128xf32>
    %c32_i32_14 = arith.constant 32 : i32
    %44 = vector.broadcast %c32_i32_14 : i32 to vector<16x128xi32>
    %45 = arith.cmpi sge, %12, %44 : vector<16x128xi32>
    %c64_i32 = arith.constant 64 : i32
    %46 = vector.broadcast %c64_i32 : i32 to vector<16x128xi32>
    %47 = arith.cmpi slt, %12, %46 : vector<16x128xi32>
    %48 = arith.andi %45, %47 : vector<16x128xi1>
    %cst_15 = arith.constant 0.000000e+00 : f32
    %49 = vector.broadcast %cst_15 : f32 to vector<16x128xf32>
    %50 = arith.select %48, %8, %49 : vector<16x128xi1>, vector<16x128xf32>
    %51 = arith.truncf %50 : vector<16x128xf32> to vector<16x128xbf16>
    %cst_16 = arith.constant dense<0.000000e+00> : vector<16x16xf32>
    %52 = tpu.matmul %51, %10, %cst_16 {dimension_numbers = #tpu.dot_dimension_numbers<[1], [1], [0], [0], [0, 0, 1, 0], [], []>} : vector<16x128xbf16>, vector<16x128xbf16>, vector<16x16xf32> -> vector<16x16xf32>
    %53 = arith.cmpi sgt, %14, %13 : vector<16x16xi32>
    %cst_17 = arith.constant -1.000000e+30 : f32
    %54 = vector.broadcast %cst_17 : f32 to vector<16x16xf32>
    %55 = arith.select %53, %54, %52 : vector<16x16xi1>, vector<16x16xf32>
    %cst_18 = arith.constant dense<0xFF800000> : vector<16xf32>
    %56 = vector.multi_reduction <maximumf>, %55, %cst_18 [1] : vector<16x16xf32> to vector<16xf32>
    %57 = vector.shape_cast %56 : vector<16xf32> to vector<16x1xf32>
    %58 = vector.broadcast %57 : vector<16x1xf32> to vector<16x16xf32>
    %59 = arith.subf %55, %58 : vector<16x16xf32>
    %60 = math.exp %59 : vector<16x16xf32>
    %cst_19 = arith.constant dense<0.000000e+00> : vector<16xf32>
    %61 = vector.multi_reduction <add>, %60, %cst_19 [1] : vector<16x16xf32> to vector<16xf32>
    %62 = vector.shape_cast %61 : vector<16xf32> to vector<16x1xf32>
    %63 = tpu.reciprocal %62 {approx = true} : vector<16x1xf32> -> vector<16x1xf32>
    %64 = vector.broadcast %63 : vector<16x1xf32> to vector<16x16xf32>
    %65 = arith.mulf %60, %64 : vector<16x16xf32>
    %cst_20 = arith.constant 0.000000e+00 : f32
    %66 = vector.broadcast %cst_20 : f32 to vector<16x128xf32>
    %67 = arith.select %48, %11, %66 : vector<16x128xi1>, vector<16x128xf32>
    %68 = arith.truncf %67 : vector<16x128xf32> to vector<16x128xbf16>
    %69 = arith.truncf %65 : vector<16x16xf32> to vector<16x16xbf16>
    %cst_21 = arith.constant dense<0.000000e+00> : vector<16x128xf32>
    %70 = tpu.matmul %69, %68, %cst_21 {dimension_numbers = #tpu.dot_dimension_numbers<[1], [0], [0], [1], [0, 0, 1, 1], [], []>} : vector<16x16xbf16>, vector<16x128xbf16>, vector<16x128xf32> -> vector<16x128xf32>
    %71 = arith.addf %43, %70 : vector<16x128xf32>
    %c64_i32_22 = arith.constant 64 : i32
    %72 = vector.broadcast %c64_i32_22 : i32 to vector<16x128xi32>
    %73 = arith.cmpi sge, %12, %72 : vector<16x128xi32>
    %c96_i32 = arith.constant 96 : i32
    %74 = vector.broadcast %c96_i32 : i32 to vector<16x128xi32>
    %75 = arith.cmpi slt, %12, %74 : vector<16x128xi32>
    %76 = arith.andi %73, %75 : vector<16x128xi1>
    %cst_23 = arith.constant 0.000000e+00 : f32
    %77 = vector.broadcast %cst_23 : f32 to vector<16x128xf32>
    %78 = arith.select %76, %8, %77 : vector<16x128xi1>, vector<16x128xf32>
    %79 = arith.truncf %78 : vector<16x128xf32> to vector<16x128xbf16>
    %cst_24 = arith.constant dense<0.000000e+00> : vector<16x16xf32>
    %80 = tpu.matmul %79, %10, %cst_24 {dimension_numbers = #tpu.dot_dimension_numbers<[1], [1], [0], [0], [0, 0, 1, 0], [], []>} : vector<16x128xbf16>, vector<16x128xbf16>, vector<16x16xf32> -> vector<16x16xf32>
    %81 = arith.cmpi sgt, %14, %13 : vector<16x16xi32>
    %cst_25 = arith.constant -1.000000e+30 : f32
    %82 = vector.broadcast %cst_25 : f32 to vector<16x16xf32>
    %83 = arith.select %81, %82, %80 : vector<16x16xi1>, vector<16x16xf32>
    %cst_26 = arith.constant dense<0xFF800000> : vector<16xf32>
    %84 = vector.multi_reduction <maximumf>, %83, %cst_26 [1] : vector<16x16xf32> to vector<16xf32>
    %85 = vector.shape_cast %84 : vector<16xf32> to vector<16x1xf32>
    %86 = vector.broadcast %85 : vector<16x1xf32> to vector<16x16xf32>
    %87 = arith.subf %83, %86 : vector<16x16xf32>
    %88 = math.exp %87 : vector<16x16xf32>
    %cst_27 = arith.constant dense<0.000000e+00> : vector<16xf32>
    %89 = vector.multi_reduction <add>, %88, %cst_27 [1] : vector<16x16xf32> to vector<16xf32>
    %90 = vector.shape_cast %89 : vector<16xf32> to vector<16x1xf32>
    %91 = tpu.reciprocal %90 {approx = true} : vector<16x1xf32> -> vector<16x1xf32>
    %92 = vector.broadcast %91 : vector<16x1xf32> to vector<16x16xf32>
    %93 = arith.mulf %88, %92 : vector<16x16xf32>
    %cst_28 = arith.constant 0.000000e+00 : f32
    %94 = vector.broadcast %cst_28 : f32 to vector<16x128xf32>
    %95 = arith.select %76, %11, %94 : vector<16x128xi1>, vector<16x128xf32>
    %96 = arith.truncf %95 : vector<16x128xf32> to vector<16x128xbf16>
    %97 = arith.truncf %93 : vector<16x16xf32> to vector<16x16xbf16>
    %cst_29 = arith.constant dense<0.000000e+00> : vector<16x128xf32>
    %98 = tpu.matmul %97, %96, %cst_29 {dimension_numbers = #tpu.dot_dimension_numbers<[1], [0], [0], [1], [0, 0, 1, 1], [], []>} : vector<16x16xbf16>, vector<16x128xbf16>, vector<16x128xf32> -> vector<16x128xf32>
    %99 = arith.addf %71, %98 : vector<16x128xf32>
    %c96_i32_30 = arith.constant 96 : i32
    %100 = vector.broadcast %c96_i32_30 : i32 to vector<16x128xi32>
    %101 = arith.cmpi sge, %12, %100 : vector<16x128xi32>
    %c128_i32 = arith.constant 128 : i32
    %102 = vector.broadcast %c128_i32 : i32 to vector<16x128xi32>
    %103 = arith.cmpi slt, %12, %102 : vector<16x128xi32>
    %104 = arith.andi %101, %103 : vector<16x128xi1>
    %cst_31 = arith.constant 0.000000e+00 : f32
    %105 = vector.broadcast %cst_31 : f32 to vector<16x128xf32>
    %106 = arith.select %104, %8, %105 : vector<16x128xi1>, vector<16x128xf32>
    %107 = arith.truncf %106 : vector<16x128xf32> to vector<16x128xbf16>
    %cst_32 = arith.constant dense<0.000000e+00> : vector<16x16xf32>
    %108 = tpu.matmul %107, %10, %cst_32 {dimension_numbers = #tpu.dot_dimension_numbers<[1], [1], [0], [0], [0, 0, 1, 0], [], []>} : vector<16x128xbf16>, vector<16x128xbf16>, vector<16x16xf32> -> vector<16x16xf32>
    %109 = arith.cmpi sgt, %14, %13 : vector<16x16xi32>
    %cst_33 = arith.constant -1.000000e+30 : f32
    %110 = vector.broadcast %cst_33 : f32 to vector<16x16xf32>
    %111 = arith.select %109, %110, %108 : vector<16x16xi1>, vector<16x16xf32>
    %cst_34 = arith.constant dense<0xFF800000> : vector<16xf32>
    %112 = vector.multi_reduction <maximumf>, %111, %cst_34 [1] : vector<16x16xf32> to vector<16xf32>
    %113 = vector.shape_cast %112 : vector<16xf32> to vector<16x1xf32>
    %114 = vector.broadcast %113 : vector<16x1xf32> to vector<16x16xf32>
    %115 = arith.subf %111, %114 : vector<16x16xf32>
    %116 = math.exp %115 : vector<16x16xf32>
    %cst_35 = arith.constant dense<0.000000e+00> : vector<16xf32>
    %117 = vector.multi_reduction <add>, %116, %cst_35 [1] : vector<16x16xf32> to vector<16xf32>
    %118 = vector.shape_cast %117 : vector<16xf32> to vector<16x1xf32>
    %119 = tpu.reciprocal %118 {approx = true} : vector<16x1xf32> -> vector<16x1xf32>
    %120 = vector.broadcast %119 : vector<16x1xf32> to vector<16x16xf32>
    %121 = arith.mulf %116, %120 : vector<16x16xf32>
    %cst_36 = arith.constant 0.000000e+00 : f32
    %122 = vector.broadcast %cst_36 : f32 to vector<16x128xf32>
    %123 = arith.select %104, %11, %122 : vector<16x128xi1>, vector<16x128xf32>
    %124 = arith.truncf %123 : vector<16x128xf32> to vector<16x128xbf16>
    %125 = arith.truncf %121 : vector<16x16xf32> to vector<16x16xbf16>
    %cst_37 = arith.constant dense<0.000000e+00> : vector<16x128xf32>
    %126 = tpu.matmul %125, %124, %cst_37 {dimension_numbers = #tpu.dot_dimension_numbers<[1], [0], [0], [1], [0, 0, 1, 1], [], []>} : vector<16x16xbf16>, vector<16x128xbf16>, vector<16x128xf32> -> vector<16x128xf32>
    %127 = arith.addf %99, %126 : vector<16x128xf32>
    %128 = arith.truncf %127 : vector<16x128xf32> to vector<16x128xbf16>
    %c0_38 = arith.constant 0 : index
    %c0_39 = arith.constant 0 : index
    %129 = vector.load %arg4[%c0_38, %c0_39] : memref<128x128xbf16, #tpu.memory_space<vmem>>, vector<128x128xbf16>
    %cst_40 = arith.constant dense<0.000000e+00> : vector<16x128xf32>
    %130 = tpu.matmul %128, %129, %cst_40 {dimension_numbers = #tpu.dot_dimension_numbers<[1], [0], [0], [1], [0, 0, 1, 1], [], []>} : vector<16x128xbf16>, vector<128x128xbf16>, vector<16x128xf32> -> vector<16x128xf32>
    %c0_41 = arith.constant 0 : index
    %c0_42 = arith.constant 0 : index
    %131 = vector.load %arg5[%c0_41, %c0_42] : memref<1x128xf32, #tpu.memory_space<vmem>>, vector<1x128xf32>
    %132 = vector.broadcast %131 : vector<1x128xf32> to vector<16x128xf32>
    %133 = arith.addf %130, %132 : vector<16x128xf32>
    %134 = arith.extf %0 : vector<16x128xbf16> to vector<16x128xf32>
    %135 = arith.addf %133, %134 : vector<16x128xf32>
    %c0_43 = arith.constant 0 : index
    %c0_44 = arith.constant 0 : index
    %136 = vector.load %arg6[%c0_43, %c0_44] : memref<1x128xf32, #tpu.memory_space<vmem>>, vector<1x128xf32>
    %c0_45 = arith.constant 0 : index
    %c0_46 = arith.constant 0 : index
    %137 = vector.load %arg7[%c0_45, %c0_46] : memref<1x128xf32, #tpu.memory_space<vmem>>, vector<1x128xf32>
    %cst_47 = arith.constant dense<0.000000e+00> : vector<16xf32>
    %138 = vector.multi_reduction <add>, %135, %cst_47 [1] : vector<16x128xf32> to vector<16xf32>
    %139 = vector.shape_cast %138 : vector<16xf32> to vector<16x1xf32>
    %cst_48 = arith.constant 1.280000e+02 : f32
    %140 = vector.broadcast %cst_48 : f32 to vector<16x1xf32>
    %141 = arith.divf %139, %140 : vector<16x1xf32>
    %142 = vector.broadcast %141 : vector<16x1xf32> to vector<16x128xf32>
    %143 = arith.subf %135, %142 : vector<16x128xf32>
    %144 = arith.mulf %143, %143 : vector<16x128xf32>
    %cst_49 = arith.constant dense<0.000000e+00> : vector<16xf32>
    %145 = vector.multi_reduction <add>, %144, %cst_49 [1] : vector<16x128xf32> to vector<16xf32>
    %146 = vector.shape_cast %145 : vector<16xf32> to vector<16x1xf32>
    %cst_50 = arith.constant 1.280000e+02 : f32
    %147 = vector.broadcast %cst_50 : f32 to vector<16x1xf32>
    %148 = arith.divf %146, %147 : vector<16x1xf32>
    %149 = vector.broadcast %141 : vector<16x1xf32> to vector<16x128xf32>
    %150 = arith.subf %135, %149 : vector<16x128xf32>
    %cst_51 = arith.constant 9.99999974E-6 : f32
    %151 = vector.broadcast %cst_51 : f32 to vector<16x1xf32>
    %152 = arith.addf %148, %151 : vector<16x1xf32>
    %153 = math.rsqrt %152 : vector<16x1xf32>
    %154 = vector.broadcast %153 : vector<16x1xf32> to vector<16x128xf32>
    %155 = arith.mulf %150, %154 : vector<16x128xf32>
    %156 = vector.broadcast %136 : vector<1x128xf32> to vector<16x128xf32>
    %157 = arith.mulf %155, %156 : vector<16x128xf32>
    %158 = vector.broadcast %137 : vector<1x128xf32> to vector<16x128xf32>
    %159 = arith.addf %157, %158 : vector<16x128xf32>
    %160 = arith.truncf %159 : vector<16x128xf32> to vector<16x128xbf16>
    %c0_52 = arith.constant 0 : index
    %c0_53 = arith.constant 0 : index
    %161 = vector.load %arg8[%c0_52, %c0_53] : memref<16x128xbf16, #tpu.memory_space<vmem>>, vector<16x128xbf16>
    tpu.vector_store %arg8[%c0_52, %c0_53], %160 {strides = array<i32>} : memref<16x128xbf16, #tpu.memory_space<vmem>>, vector<16x128xbf16>,
    return
  }
  func.func @transform_0(%arg0: i32) -> (i32, i32) {
    %c0_i32 = arith.constant 0 : i32
    %c0_i32_0 = arith.constant 0 : i32
    return %arg0, %c0_i32 : i32, i32
  }
  func.func @transform_1(%arg0: i32) -> (i32, i32) {
    %c0_i32 = arith.constant 0 : i32
    %c0_i32_0 = arith.constant 0 : i32
    %c0_i32_1 = arith.constant 0 : i32
    return %c0_i32, %c0_i32_0 : i32, i32
  }
  func.func @transform_2(%arg0: i32) -> (i32, i32) {
    %c0_i32 = arith.constant 0 : i32
    %c0_i32_0 = arith.constant 0 : i32
    %c0_i32_1 = arith.constant 0 : i32
    return %c0_i32, %c0_i32_0 : i32, i32
  }
  func.func @transform_3(%arg0: i32) -> (i32, i32) {
    %c0_i32 = arith.constant 0 : i32
    %c0_i32_0 = arith.constant 0 : i32
    %c0_i32_1 = arith.constant 0 : i32
    return %c0_i32, %c0_i32_0 : i32, i32
  }
  func.func @transform_4(%arg0: i32) -> (i32, i32) {
    %c0_i32 = arith.constant 0 : i32
    %c0_i32_0 = arith.constant 0 : i32
    %c0_i32_1 = arith.constant 0 : i32
    return %c0_i32, %c0_i32_0 : i32, i32
  }
  func.func @transform_5(%arg0: i32) -> (i32, i32) {
    %c0_i32 = arith.constant 0 : i32
    %c0_i32_0 = arith.constant 0 : i32
    %c0_i32_1 = arith.constant 0 : i32
    return %c0_i32, %c0_i32_0 : i32, i32
  }
  func.func @transform_6(%arg0: i32) -> (i32, i32) {
    %c0_i32 = arith.constant 0 : i32
    %c0_i32_0 = arith.constant 0 : i32
    %c0_i32_1 = arith.constant 0 : i32
    return %c0_i32, %c0_i32_0 : i32, i32
  }
  func.func @transform_7(%arg0: i32) -> (i32, i32) {
    %c0_i32 = arith.constant 0 : i32
    %c0_i32_0 = arith.constant 0 : i32
    return %arg0, %c0_i32 : i32, i32
  }
}

</mosaic_0001>

<llo_original>
// kernel: decoder_forward.13
$region0: #{decoder_forward.13}
  #allocation0 [shape = 'u32[]', space=smem, size = 0x4, offset = 0x4, fixed_abs, tag = 'smem constant byte address 0x4 - core index']
  #allocation1 [shape = 'u32[144,128]{1,0:T(1,128)}', space=vmem, size = 0x12000, scoped, tag = 'internal scratch']
  %s0 = inlined_call_operand.vmem [shape: bf16[32,128], index: 0, kind: input, shape index: {}]
  %s1 = inlined_call_operand.vmem [shape: bf16[128,128], index: 1, kind: input, shape index: {}]
  %s2 = inlined_call_operand.vmem [shape: f32[1,128], index: 2, kind: input, shape index: {}]
  %s3 = inlined_call_operand.hbm [shape: f32[32,128], index: 3, kind: output, shape index: {}]
  %s4 = sld [smem:[#allocation0]]
  $region45: #{decoder_forward.13} parent=0
    _
  %s6 = ssub.s32 1, %s4
  %s7 = scalar_select 0, %s6, %s4
  $region1: #{decoder_forward.13} parent=0
    #allocation2 [shape = 'u8[16384]{0}', space=vmem, size = 0x4000, scoped, tag = 'output window, operand 0']
    #allocation3 [shape = 's32[2]{0}', space=sflag, size = 0x8, scoped, tag = 'scoped memory for decoder_forward.13']
    %8 = vsyncpa [#allocation3], 0
    %s9 = scalar_lea.sflag [#allocation3], 1
    %10 = vsyncpa %s9, 0
    loop: start=0, step=1, limit=4
    $region2: #{decoder_forward.13} parent=1 // loop_pre_header
      _
    $region3: #{decoder_forward.13} parent=1 // loop_header
      %s12 = sphi 0, %s16
      %p13 = scmp.ge.s32.totalorder %s12, 4
      %s19 = sphi 0, %s31
      %s20 = sphi 0, %s27
      %s21 = sphi 0, %s19
      %s22 = sphi 0, %s20
      %s23 = sphi 0, %s21
      %s24 = sphi 0, %s22
      %s34 = sphi 0, %s36
      %s37 = sphi 0, %s34
      %s38 = sphi 0, %s37
      %s54 = sphi 0, %s38
      %s60 = sphi 0, %s62
      %s63 = sphi 0, %s60
      %s64 = sphi 0, %s63
      %s80 = sphi 0, %s64
      %s86 = sphi 0, %s88
      %s89 = sphi 0, %s86
      %s90 = sphi 0, %s89
      %s106 = sphi 0, %s90
      %s114 = sphi 0, %s116
      %s117 = sphi 0, %s114
      %s118 = sphi 0, %s117
      %s134 = sphi 0, %s118
    $region4: #{decoder_forward.13} parent=1 // loop_header_branch
      %15 = sbr.rel (%p13) target = $region8
    $region5: #{decoder_forward.13} parent=1 // loop_body
      %s17 = ssub.s32 %s12, 1
      %s18 = ssub.s32 %s12, 2
      %s25 = sadd.s32 1, %s20
      %p26 = scmp.ge.s32.totalorder %s25, 1
      %s27 = scalar_select %p26, 0, %s25
      %s28 = sadd.s32 1, %s19
      %s29 = scalar_select %p26, %s28, %s19
      %p30 = scmp.ge.s32.totalorder %s29, 2
      %s31 = scalar_select %p30, 0, %s29
      %s32 = ssub.s32 %s19, %s31
      %p33 = scmp.eq.s32.totalorder %s32, 0
      %s35 = sadd.s32 %s34, 1
      %s36 = scalar_select %p33, %s34, %s35
      %p39 = pneg %p33
      %p40 = scmp.eq.s32.totalorder %s12, 1
      %p41 = por %p39, %p40
      %p42 = scmp.ne.s32.totalorder %s34, %s37
      %p43 = scmp.eq.s32.totalorder %s12, 0
      %p44 = por %p42, %p43
      %p45 = scmp.ne.s32.totalorder %s34, %s37
      %p46 = scmp.eq.s32.totalorder %s17, 1
      %p47 = por %p45, %p46
      %p48 = scmp.ne.s32.totalorder %s37, %s38
      %p49 = scmp.eq.s32.totalorder %s17, 0
      %p50 = por %p48, %p49
      %p51 = scmp.ne.s32.totalorder %s37, %s38
      %p52 = scmp.eq.s32.totalorder %s18, 1
      %p53 = por %p51, %p52
      %p55 = scmp.ne.s32.totalorder %s38, %s54
      %p56 = scmp.eq.s32.totalorder %s18, 0
      %p57 = por %p55, %p56
      %s58 = ssub.s32 %s20, %s27
      %p59 = scmp.eq.s32.totalorder %s58, 0
      %s61 = sadd.s32 %s60, 1
      %s62 = scalar_select %p59, %s60, %s61
      %p65 = pneg %p59
      %p66 = scmp.eq.s32.totalorder %s12, 1
      %p67 = por %p65, %p66
      %p68 = scmp.ne.s32.totalorder %s60, %s63
      %p69 = scmp.eq.s32.totalorder %s12, 0
      %p70 = por %p68, %p69
      %p71 = scmp.ne.s32.totalorder %s60, %s63
      %p72 = scmp.eq.s32.totalorder %s17, 1
      %p73 = por %p71, %p72
      %p74 = scmp.ne.s32.totalorder %s63, %s64
      %p75 = scmp.eq.s32.totalorder %s17, 0
      %p76 = por %p74, %p75
      %p77 = scmp.ne.s32.totalorder %s63, %s64
      %p78 = scmp.eq.s32.totalorder %s18, 1
      %p79 = por %p77, %p78
      %p81 = scmp.ne.s32.totalorder %s64, %s80
      %p82 = scmp.eq.s32.totalorder %s18, 0
      %p83 = por %p81, %p82
      %s84 = ssub.s32 %s20, %s27
      %p85 = scmp.eq.s32.totalorder %s84, 0
      %s87 = sadd.s32 %s86, 1
      %s88 = scalar_select %p85, %s86, %s87
      %p91 = pneg %p85
      %p92 = scmp.eq.s32.totalorder %s12, 1
      %p93 = por %p91, %p92
      %p94 = scmp.ne.s32.totalorder %s86, %s89
      %p95 = scmp.eq.s32.totalorder %s12, 0
      %p96 = por %p94, %p95
      %p97 = scmp.ne.s32.totalorder %s86, %s89
      %p98 = scmp.eq.s32.totalorder %s17, 1
      %p99 = por %p97, %p98
      %p100 = scmp.ne.s32.totalorder %s89, %s90
      %p101 = scmp.eq.s32.totalorder %s17, 0
      %p102 = por %p100, %p101
      %p103 = scmp.ne.s32.totalorder %s89, %s90
      %p104 = scmp.eq.s32.totalorder %s18, 1
      %p105 = por %p103, %p104
      %p107 = scmp.ne.s32.totalorder %s90, %s106
      %p108 = scmp.eq.s32.totalorder %s18, 0
      %p109 = por %p107, %p108
      %s110 = ssub.s32 %s19, %s31
      %s111 = ssub.s32 %s20, %s27
      %s112 = sor.u32 %s110, %s111
      %p113 = scmp.eq.s32.totalorder %s112, 0
      %s115 = sadd.s32 %s114, 1
      %s116 = scalar_select %p113, %s114, %s115
      %p119 = pneg %p113
      %p120 = scmp.eq.s32.totalorder %s12, 1
      %p121 = por %p119, %p120
      %p122 = scmp.ne.s32.totalorder %s114, %s117
      %p123 = scmp.eq.s32.totalorder %s12, 0
      %p124 = por %p122, %p123
      %p125 = scmp.ne.s32.totalorder %s114, %s117
      %p126 = scmp.eq.s32.totalorder %s17, 1
      %p127 = por %p125, %p126
      %p128 = scmp.ne.s32.totalorder %s117, %s118
      %p129 = scmp.eq.s32.totalorder %s17, 0
      %p130 = por %p128, %p129
      %p131 = scmp.ne.s32.totalorder %s117, %s118
      %p132 = scmp.eq.s32.totalorder %s18, 1
      %p133 = por %p131, %p132
      %p135 = scmp.ne.s32.totalorder %s118, %s134
      %p136 = scmp.eq.s32.totalorder %s18, 0
      %p137 = por %p135, %p136
      %p138 = scmp.le.s32.totalorder 1, %s12
      %p139 = scmp.lt.s32.totalorder %s12, 3
      %p140 = pnand %p138, %p139
      %p141 = pneg %p140
      // Predicated region
      $region9: #{decoder_forward.13} parent=5 // pred_check
        _
      $region10: #{decoder_forward.13} parent=5 // pred_check_branch
        %143 = sbr.rel (%p140) target = $region12
      $region11: #{decoder_forward.13} parent=5 // pred_region
        %s144 = ssub.s32 %s12, 1
        // Predicated region
        $region13: #{decoder_forward.13} parent=11 // pred_check
          %p145 = pneg %p76
        $region14: #{decoder_forward.13} parent=11 // pred_check_branch
          %147 = sbr.rel (%p145) target = $region16
        $region15: #{decoder_forward.13} parent=11 // pred_region
          %p148 = scmp.lt.s32.totalorder %s22, 0
          %s149 = scalar_select %p148, %s22, 0
          %s150 = smul.addr %s149, 4
          %s151 = scalar_lea.vmem %s1, %s150
        $region16: #{decoder_forward.13} parent=11 // pred_fallthru
          _
        // Predicated region
        $region17: #{decoder_forward.13} parent=11 // pred_check
          %p152 = pneg %p102
        $region18: #{decoder_forward.13} parent=11 // pred_check_branch
          %154 = sbr.rel (%p152) target = $region20
        $region19: #{decoder_forward.13} parent=11 // pred_region
          %p155 = scmp.lt.s32.totalorder %s22, 0
          %s156 = scalar_select %p155, %s22, 0
          %s157 = scalar_lea.vmem %s2, %s156
        $region20: #{decoder_forward.13} parent=11 // pred_fallthru
          _
      $region12: #{decoder_forward.13} parent=5 // pred_fallthru
        _
      %p158 = scmp.lt.s32.totalorder %s12, 2
      // Predicated region
      $region21: #{decoder_forward.13} parent=5 // pred_check
        %p159 = pneg %p158
      $region22: #{decoder_forward.13} parent=5 // pred_check_branch
        %161 = sbr.rel (%p159) target = $region24
      $region23: #{decoder_forward.13} parent=5 // pred_region
        // Predicated region
        $region25: #{decoder_forward.13} parent=23 // pred_check
          %p162 = pneg %p44
        $region26: #{decoder_forward.13} parent=23 // pred_check_branch
          %164 = sbr.rel (%p162) target = $region28
        $region27: #{decoder_forward.13} parent=23 // pred_region
          %s165 = smul.u32 2, %s19
          %p166 = scmp.lt.s32.totalorder %s165, 3
          %s167 = scalar_select %p166, %s165, 3
          %s168 = smul.addr %s167, 4
          %s169 = scalar_lea.vmem %s0, %s168
          %s170 = smul.u32 2, %s19
        $region28: #{decoder_forward.13} parent=23 // pred_fallthru
          _
      $region24: #{decoder_forward.13} parent=5 // pred_fallthru
        _
      %p171 = scmp.le.s32.totalorder 1, %s12
      %p172 = scmp.lt.s32.totalorder %s12, 3
      %p173 = pnand %p171, %p172
      %p174 = pneg %p173
      // Predicated region
      $region29: #{decoder_forward.13} parent=5 // pred_check
        _
      $region30: #{decoder_forward.13} parent=5 // pred_check_branch
        %176 = sbr.rel (%p173) target = $region32
      $region31: #{decoder_forward.13} parent=5 // pred_region
        %s177 = ssub.s32 %s12, 1
        %s178 = smul.u32 2, %s21
        %p179 = scmp.lt.s32.totalorder %s178, 3
        %s180 = scalar_select %p179, %s178, 3
        %s181 = smul.addr %s180, 4
        %s182 = scalar_lea.vmem %s0, %s181
        %p183 = pneg %p50
        %p184 = pneg %p47
        %p185 = scmp.lt.s32.totalorder %s22, 0
        %s186 = scalar_select %p185, %s22, 0
        %s187 = smul.addr %s186, 4
        %s188 = scalar_lea.vmem %s1, %s187
        %p189 = pneg %p76
        %p190 = pneg %p73
        %p191 = scmp.lt.s32.totalorder %s22, 0
        %s192 = scalar_select %p191, %s22, 0
        %s193 = scalar_lea.vmem %s2, %s192
        %p194 = pneg %p102
        %p195 = pneg %p99
        %p196 = pneg %p130
        %p197 = pneg %p127
        %s198 = sand.u32 %s117, 1
        %s199 = scalar_lea.sflag [#allocation3], %s198
        %s200 = sand.u32 %s117, 1
        %s201 = smul.addr %s200, 16
        %s202 = scalar_lea.vmem [#allocation2], %s201
        %s203 = smul.u32 2, %s21
        %p204 = scmp.lt.s32.totalorder %s203, 3
        %s205 = scalar_select %p204, %s203, 3
        %s206 = smul.addr %s205, 4
        %s207 = scalar_lea.vmem %s0, %s206
        %s208 = smul.u32 2, %s21
        %p209 = scmp.lt.s32.totalorder %s22, 0
        %s210 = scalar_select %p209, %s22, 0
        %s211 = smul.addr %s210, 4
        %s212 = scalar_lea.vmem %s1, %s211
        %p213 = scmp.lt.s32.totalorder %s22, 0
        %s214 = scalar_select %p213, %s22, 0
        %s215 = scalar_lea.vmem %s2, %s214
        %s216 = smul.u32 2, %s21
        %v218 = vld [vmem:[%s207] sm:$0xf]
        %v219 = vld [vmem:[%s207 + $0x4] sm:$0xf]
        %v220 = vld [vmem:[%s212] sm:$0xf]
        %v221 = vld [vmem:[%s212 + $0x4] sm:$0xf]
        %v222 = vld [vmem:[%s212 + $0x8] sm:$0xf]
        %v223 = vld [vmem:[%s212 + $0xc] sm:$0xf]
        %v224 = vld [vmem:[%s212 + $0x10] sm:$0xf]
        %v225 = vld [vmem:[%s212 + $0x14] sm:$0xf]
        %v226 = vld [vmem:[%s212 + $0x18] sm:$0xf]
        %v227 = vld [vmem:[%s212 + $0x1c] sm:$0xf]
        %v228 = vld [vmem:[%s212 + $0x20] sm:$0xf]
        %v229 = vld [vmem:[%s212 + $0x24] sm:$0xf]
        %v230 = vld [vmem:[%s212 + $0x28] sm:$0xf]
        %v231 = vld [vmem:[%s212 + $0x2c] sm:$0xf]
        %v232 = vld [vmem:[%s212 + $0x30] sm:$0xf]
        %v233 = vld [vmem:[%s212 + $0x34] sm:$0xf]
        %v234 = vld [vmem:[%s212 + $0x38] sm:$0xf]
        %v235 = vld [vmem:[%s212 + $0x3c] sm:$0xf]
        %v236 = vld [vmem:[%s215] sm:$0x1]
        %v238 = vlaneseq
        %v239 = vshrl.u32 %v238, 7
        %v240 = vsub.s32 0, %v239
        %v241 = vrot.slane %v236, %v240
        %v245 = vunpack.c.l.b16 %v218
        %v246 = vunpack.c.l.b16 %v219
        %v247 = vpack.c.b16 %v246, %v245
        %v265 = vunpack.c.l.b16 %v220
        %v266 = vunpack.c.l.b16 %v221
        %v267 = vunpack.c.l.b16 %v222
        %v268 = vunpack.c.l.b16 %v223
        %v269 = vunpack.c.l.b16 %v224
        %v270 = vunpack.c.l.b16 %v225
        %v271 = vunpack.c.l.b16 %v226
        %v272 = vunpack.c.l.b16 %v227
        %v273 = vunpack.c.l.b16 %v228
        %v274 = vunpack.c.l.b16 %v229
        %v275 = vunpack.c.l.b16 %v230
        %v276 = vunpack.c.l.b16 %v231
        %v277 = vunpack.c.l.b16 %v232
        %v278 = vunpack.c.l.b16 %v233
        %v279 = vunpack.c.l.b16 %v234
        %v280 = vunpack.c.l.b16 %v235
        %v281 = vpack.c.b16 %v266, %v265
        %v282 = vpack.c.b16 %v268, %v267
        %v283 = vpack.c.b16 %v270, %v269
        %v284 = vpack.c.b16 %v272, %v271
        %v285 = vpack.c.b16 %v274, %v273
        %v286 = vpack.c.b16 %v276, %v275
        %v287 = vpack.c.b16 %v278, %v277
        %v288 = vpack.c.b16 %v280, %v279
        %297 = vmatprep.subr.bf16.mxu0 0
        %298 = vmatpush1.bf16.msra.mxu0 %v288
        %299 = vmatprep.subr.bf16.mxu0 0
        %300 = vmatpush1.bf16.msra.mxu0 %v287
        %301 = vmatprep.subr.bf16.mxu0 0
        %302 = vmatpush1.bf16.msra.mxu0 %v286
        %303 = vmatprep.subr.bf16.mxu0 0
        %304 = vmatpush1.bf16.msra.mxu0 %v285
        %305 = vmatprep.subr.bf16.mxu0 0
        %306 = vmatpush1.bf16.msra.mxu0 %v284
        %307 = vmatprep.subr.bf16.mxu0 0
        %308 = vmatpush1.bf16.msra.mxu0 %v283
        %309 = vmatprep.subr.bf16.mxu0 0
        %310 = vmatpush1.bf16.msra.mxu0 %v282
        %311 = vmatprep.subr.bf16.mxu0 0
        %312 = vmatpush1.bf16.msra.mxu0 %v281
        %313 = vmatprep.subr.bf16.mxu0 0
        %314 = vmatpush2.bf16.msra.mxu0 0
        %315 = vmatprep.subr.bf16.mxu0 0
        %316 = vmatpush2.bf16.msra.mxu0 0
        %317 = vmatprep.subr.bf16.mxu0 0
        %318 = vmatpush2.bf16.msra.mxu0 0
        %319 = vmatprep.subr.bf16.mxu0 0
        %320 = vmatpush2.bf16.msra.mxu0 0
        %321 = vmatprep.subr.bf16.mxu0 0
        %322 = vmatpush2.bf16.msra.mxu0 0
        %323 = vmatprep.subr.bf16.mxu0 0
        %324 = vmatpush2.bf16.msra.mxu0 0
        %325 = vmatprep.subr.bf16.mxu0 0
        %326 = vmatpush2.bf16.msra.mxu0 0
        %327 = vmatprep.subr.bf16.mxu0 0
        %328 = vmatpush2.bf16.msra.mxu0 0
        %329 = vmatprep.mubr.bf16.mxu0 0
        %330 = vmatmul.mubr.bf16.gmra.mxu0 %v247
        %v331 = vpop.f32.mrf.mxu0
        %v332 = vadd.f32 %v241, %v331
        %v333 = vpop.f32.mrf.mxu0
        %v334 = vpop.f32.mrf.mxu0
        %v335 = vadd.f32 %v241, %v334
        %v336 = vpop.f32.mrf.mxu0
        %337 = vdwg.mxu0
        %338 = vst [vmem:[%s202] sm:$0xff] %v332
        %339 = vst [vmem:[%s202 + $0x8] sm:$0xff] %v335
        %s340 = sand.u32 %s117, 1
        %s341 = scalar_lea.sflag [#allocation3], %s340
        %s342 = sand.u32 %s117, 1
        %s343 = smul.addr %s342, 16
        %s344 = scalar_lea.vmem [#allocation2], %s343
        // Predicated region
        $region33: #{decoder_forward.13} parent=31 // pred_check
          %p345 = pneg %p127
        $region34: #{decoder_forward.13} parent=31 // pred_check_branch
          %347 = sbr.rel (%p345) target = $region36
        $region35: #{decoder_forward.13} parent=31 // pred_region
          %s348 = smul.u32 2, %s21
          %s350 = ssub.s32 256, 256
          %351 = vsyncadd %s341, %s350
          %s352 = sadd.s32 %s22, %s348
          %s353 = smul.addr %s352, 128
          %s354 = scalar_lea.hbm %s3, %s353
          %s355 = sshll.u32 %s344, 4
          %s356 = int_to_ptr.vmem [resolvable:$true] %s355
          %361 = dma.vmem_to_hbm [thread:$0]  %s356, 256, %s354, %s341, 128, 128, 8
        $region36: #{decoder_forward.13} parent=31 // pred_fallthru
          _
      $region32: #{decoder_forward.13} parent=5 // pred_fallthru
        _
      %p362 = scmp.le.s32.totalorder 2, %s12
      // Predicated region
      $region37: #{decoder_forward.13} parent=5 // pred_check
        %p363 = pneg %p362
      $region38: #{decoder_forward.13} parent=5 // pred_check_branch
        %365 = sbr.rel (%p363) target = $region40
      $region39: #{decoder_forward.13} parent=5 // pred_region
        %s366 = ssub.s32 %s12, 2
        // Predicated region
        $region41: #{decoder_forward.13} parent=39 // pred_check
          %p367 = pneg %p133
        $region42: #{decoder_forward.13} parent=39 // pred_check_branch
          %369 = sbr.rel (%p367) target = $region44
        $region43: #{decoder_forward.13} parent=39 // pred_region
          %s370 = sand.u32 %s118, 1
          %s371 = scalar_lea.sflag [#allocation3], %s370
          %s372 = sand.u32 %s118, 1
          %s373 = smul.addr %s372, 16
          %s374 = scalar_lea.vmem [#allocation2], %s373
          %375 = dma.done %s371, 256
        $region44: #{decoder_forward.13} parent=39 // pred_fallthru
          _
      $region40: #{decoder_forward.13} parent=5 // pred_fallthru
        _
    $region6: #{decoder_forward.13} parent=1 // loop_footer
      %s16 = sadd.s32 1, %s12
    $region7: #{decoder_forward.13} parent=1 // loop_footer_branch
      %11 = sbr.rel target = $region3
    $region8: #{decoder_forward.13} parent=1 // loop_exit
      _
    %376 = vsyncpa [#allocation3], 1
    %s377 = scalar_lea.sflag [#allocation3], 1
    %378 = vsyncpa %s377, 1

// kernel: decoder_forward.9
$region0: #{decoder_forward.9}
  #allocation0 [shape = 'u32[]', space=smem, size = 0x4, offset = 0x4, fixed_abs, tag = 'smem constant byte address 0x4 - core index']
  #allocation1 [shape = 'u32[144,128]{1,0:T(1,128)}', space=vmem, size = 0x12000, scoped, tag = 'internal scratch']
  %s0 = inlined_call_operand.vmem [shape: bf16[32,128], index: 0, kind: input, shape index: {}]
  %s1 = inlined_call_operand.vmem [shape: bf16[128,512], index: 1, kind: input, shape index: {}]
  %s2 = inlined_call_operand.vmem [shape: f32[1,512], index: 2, kind: input, shape index: {}]
  %s3 = inlined_call_operand.vmem [shape: bf16[512,128], index: 3, kind: input, shape index: {}]
  %s4 = inlined_call_operand.vmem [shape: f32[1,128], index: 4, kind: input, shape index: {}]
  %s5 = inlined_call_operand.vmem [shape: f32[1,128], index: 5, kind: input, shape index: {}]
  %s6 = inlined_call_operand.vmem [shape: f32[1,128], index: 6, kind: input, shape index: {}]
  %s7 = inlined_call_operand.vmem [shape: bf16[32,128], index: 7, kind: output, shape index: {}]
  %s8 = sld [smem:[#allocation0]]
  $region61: #{decoder_forward.9} parent=0
    _
  %s10 = ssub.s32 1, %s8
  %s11 = scalar_select 0, %s10, %s8
  loop: start=0, step=1, limit=4
  $region2: #{decoder_forward.9} parent=0 // loop_pre_header
    _
  $region3: #{decoder_forward.9} parent=0 // loop_header
    %s13 = sphi 0, %s17
    %p14 = scmp.ge.s32.totalorder %s13, 4
    %s23 = sphi 0, %s25
    %s26 = sphi 0, %s23
    %s27 = sphi 0, %s26
    %s43 = sphi 0, %s27
    %s47 = sphi 0, %s47
    %s49 = sphi 0, %s47
    %s50 = sphi 0, %s49
    %s64 = sphi 0, %s50
    %s68 = sphi 0, %s68
    %s70 = sphi 0, %s68
    %s71 = sphi 0, %s70
    %s85 = sphi 0, %s71
    %s89 = sphi 0, %s89
    %s91 = sphi 0, %s89
    %s92 = sphi 0, %s91
    %s106 = sphi 0, %s92
    %s110 = sphi 0, %s110
    %s112 = sphi 0, %s110
    %s113 = sphi 0, %s112
    %s127 = sphi 0, %s113
    %s131 = sphi 0, %s131
    %s133 = sphi 0, %s131
    %s134 = sphi 0, %s133
    %s148 = sphi 0, %s134
    %s152 = sphi 0, %s152
    %s154 = sphi 0, %s152
    %s155 = sphi 0, %s154
    %s169 = sphi 0, %s155
    %s175 = sphi 0, %s177
    %s178 = sphi 0, %s175
    %s179 = sphi 0, %s178
    %s195 = sphi 0, %s179
  $region4: #{decoder_forward.9} parent=0 // loop_header_branch
    %16 = sbr.rel (%p14) target = $region8
  $region5: #{decoder_forward.9} parent=0 // loop_body
    %s18 = ssub.s32 %s13, 1
    %s19 = ssub.s32 %s13, 2
    %s20 = sadd.s32 %s13, 1
    %s21 = ssub.s32 %s13, %s20
    %p22 = scmp.eq.s32.totalorder %s21, 0
    %s24 = sadd.s32 %s23, 1
    %s25 = scalar_select %p22, %s23, %s24
    %p28 = pneg %p22
    %p29 = scmp.eq.s32.totalorder %s13, 1
    %p30 = por %p28, %p29
    %p31 = scmp.ne.s32.totalorder %s23, %s26
    %p32 = scmp.eq.s32.totalorder %s13, 0
    %p33 = por %p31, %p32
    %p34 = scmp.ne.s32.totalorder %s23, %s26
    %p35 = scmp.eq.s32.totalorder %s18, 1
    %p36 = por %p34, %p35
    %p37 = scmp.ne.s32.totalorder %s26, %s27
    %p38 = scmp.eq.s32.totalorder %s18, 0
    %p39 = por %p37, %p38
    %p40 = scmp.ne.s32.totalorder %s26, %s27
    %p41 = scmp.eq.s32.totalorder %s19, 1
    %p42 = por %p40, %p41
    %p44 = scmp.ne.s32.totalorder %s27, %s43
    %p45 = scmp.eq.s32.totalorder %s19, 0
    %p46 = por %p44, %p45
    %s48 = sadd.s32 %s47, 1
    %p51 = scmp.eq.s32.totalorder %s13, 1
    %p52 = scmp.ne.s32.totalorder %s47, %s49
    %p53 = scmp.eq.s32.totalorder %s13, 0
    %p54 = por %p52, %p53
    %p55 = scmp.ne.s32.totalorder %s47, %s49
    %p56 = scmp.eq.s32.totalorder %s18, 1
    %p57 = por %p55, %p56
    %p58 = scmp.ne.s32.totalorder %s49, %s50
    %p59 = scmp.eq.s32.totalorder %s18, 0
    %p60 = por %p58, %p59
    %p61 = scmp.ne.s32.totalorder %s49, %s50
    %p62 = scmp.eq.s32.totalorder %s19, 1
    %p63 = por %p61, %p62
    %p65 = scmp.ne.s32.totalorder %s50, %s64
    %p66 = scmp.eq.s32.totalorder %s19, 0
    %p67 = por %p65, %p66
    %s69 = sadd.s32 %s68, 1
    %p72 = scmp.eq.s32.totalorder %s13, 1
    %p73 = scmp.ne.s32.totalorder %s68, %s70
    %p74 = scmp.eq.s32.totalorder %s13, 0
    %p75 = por %p73, %p74
    %p76 = scmp.ne.s32.totalorder %s68, %s70
    %p77 = scmp.eq.s32.totalorder %s18, 1
    %p78 = por %p76, %p77
    %p79 = scmp.ne.s32.totalorder %s70, %s71
    %p80 = scmp.eq.s32.totalorder %s18, 0
    %p81 = por %p79, %p80
    %p82 = scmp.ne.s32.totalorder %s70, %s71
    %p83 = scmp.eq.s32.totalorder %s19, 1
    %p84 = por %p82, %p83
    %p86 = scmp.ne.s32.totalorder %s71, %s85
    %p87 = scmp.eq.s32.totalorder %s19, 0
    %p88 = por %p86, %p87
    %s90 = sadd.s32 %s89, 1
    %p93 = scmp.eq.s32.totalorder %s13, 1
    %p94 = scmp.ne.s32.totalorder %s89, %s91
    %p95 = scmp.eq.s32.totalorder %s13, 0
    %p96 = por %p94, %p95
    %p97 = scmp.ne.s32.totalorder %s89, %s91
    %p98 = scmp.eq.s32.totalorder %s18, 1
    %p99 = por %p97, %p98
    %p100 = scmp.ne.s32.totalorder %s91, %s92
    %p101 = scmp.eq.s32.totalorder %s18, 0
    %p102 = por %p100, %p101
    %p103 = scmp.ne.s32.totalorder %s91, %s92
    %p104 = scmp.eq.s32.totalorder %s19, 1
    %p105 = por %p103, %p104
    %p107 = scmp.ne.s32.totalorder %s92, %s106
    %p108 = scmp.eq.s32.totalorder %s19, 0
    %p109 = por %p107, %p108
    %s111 = sadd.s32 %s110, 1
    %p114 = scmp.eq.s32.totalorder %s13, 1
    %p115 = scmp.ne.s32.totalorder %s110, %s112
    %p116 = scmp.eq.s32.totalorder %s13, 0
    %p117 = por %p115, %p116
    %p118 = scmp.ne.s32.totalorder %s110, %s112
    %p119 = scmp.eq.s32.totalorder %s18, 1
    %p120 = por %p118, %p119
    %p121 = scmp.ne.s32.totalorder %s112, %s113
    %p122 = scmp.eq.s32.totalorder %s18, 0
    %p123 = por %p121, %p122
    %p124 = scmp.ne.s32.totalorder %s112, %s113
    %p125 = scmp.eq.s32.totalorder %s19, 1
    %p126 = por %p124, %p125
    %p128 = scmp.ne.s32.totalorder %s113, %s127
    %p129 = scmp.eq.s32.totalorder %s19, 0
    %p130 = por %p128, %p129
    %s132 = sadd.s32 %s131, 1
    %p135 = scmp.eq.s32.totalorder %s13, 1
    %p136 = scmp.ne.s32.totalorder %s131, %s133
    %p137 = scmp.eq.s32.totalorder %s13, 0
    %p138 = por %p136, %p137
    %p139 = scmp.ne.s32.totalorder %s131, %s133
    %p140 = scmp.eq.s32.totalorder %s18, 1
    %p141 = por %p139, %p140
    %p142 = scmp.ne.s32.totalorder %s133, %s134
    %p143 = scmp.eq.s32.totalorder %s18, 0
    %p144 = por %p142, %p143
    %p145 = scmp.ne.s32.totalorder %s133, %s134
    %p146 = scmp.eq.s32.totalorder %s19, 1
    %p147 = por %p145, %p146
    %p149 = scmp.ne.s32.totalorder %s134, %s148
    %p150 = scmp.eq.s32.totalorder %s19, 0
    %p151 = por %p149, %p150
    %s153 = sadd.s32 %s152, 1
    %p156 = scmp.eq.s32.totalorder %s13, 1
    %p157 = scmp.ne.s32.totalorder %s152, %s154
    %p158 = scmp.eq.s32.totalorder %s13, 0
    %p159 = por %p157, %p158
    %p160 = scmp.ne.s32.totalorder %s152, %s154
    %p161 = scmp.eq.s32.totalorder %s18, 1
    %p162 = por %p160, %p161
    %p163 = scmp.ne.s32.totalorder %s154, %s155
    %p164 = scmp.eq.s32.totalorder %s18, 0
    %p165 = por %p163, %p164
    %p166 = scmp.ne.s32.totalorder %s154, %s155
    %p167 = scmp.eq.s32.totalorder %s19, 1
    %p168 = por %p166, %p167
    %p170 = scmp.ne.s32.totalorder %s155, %s169
    %p171 = scmp.eq.s32.totalorder %s19, 0
    %p172 = por %p170, %p171
    %s173 = ssub.s32 %s13, %s20
    %p174 = scmp.eq.s32.totalorder %s173, 0
    %s176 = sadd.s32 %s175, 1
    %s177 = scalar_select %p174, %s175, %s176
    %p180 = pneg %p174
    %p181 = scmp.eq.s32.totalorder %s13, 1
    %p182 = por %p180, %p181
    %p183 = scmp.ne.s32.totalorder %s175, %s178
    %p184 = scmp.eq.s32.totalorder %s13, 0
    %p185 = por %p183, %p184
    %p186 = scmp.ne.s32.totalorder %s175, %s178
    %p187 = scmp.eq.s32.totalorder %s18, 1
    %p188 = por %p186, %p187
    %p189 = scmp.ne.s32.totalorder %s178, %s179
    %p190 = scmp.eq.s32.totalorder %s18, 0
    %p191 = por %p189, %p190
    %p192 = scmp.ne.s32.totalorder %s178, %s179
    %p193 = scmp.eq.s32.totalorder %s19, 1
    %p194 = por %p192, %p193
    %p196 = scmp.ne.s32.totalorder %s179, %s195
    %p197 = scmp.eq.s32.totalorder %s19, 0
    %p198 = por %p196, %p197
    %p199 = scmp.le.s32.totalorder 1, %s13
    %p200 = scmp.lt.s32.totalorder %s13, 3
    %p201 = pnand %p199, %p200
    %p202 = pneg %p201
    // Predicated region
    $region9: #{decoder_forward.9} parent=5 // pred_check
      _
    $region10: #{decoder_forward.9} parent=5 // pred_check_branch
      %204 = sbr.rel (%p201) target = $region12
    $region11: #{decoder_forward.9} parent=5 // pred_region
      %s205 = ssub.s32 %s13, 1
      // Predicated region
      $region13: #{decoder_forward.9} parent=11 // pred_check
        %p206 = pneg %p60
      $region14: #{decoder_forward.9} parent=11 // pred_check_branch
        %208 = sbr.rel (%p206) target = $region16
      $region15: #{decoder_forward.9} parent=11 // pred_region
        _
      $region16: #{decoder_forward.9} parent=11 // pred_fallthru
        _
      // Predicated region
      $region17: #{decoder_forward.9} parent=11 // pred_check
        %p209 = pneg %p81
      $region18: #{decoder_forward.9} parent=11 // pred_check_branch
        %211 = sbr.rel (%p209) target = $region20
      $region19: #{decoder_forward.9} parent=11 // pred_region
        _
      $region20: #{decoder_forward.9} parent=11 // pred_fallthru
        _
      // Predicated region
      $region21: #{decoder_forward.9} parent=11 // pred_check
        %p212 = pneg %p102
      $region22: #{decoder_forward.9} parent=11 // pred_check_branch
        %214 = sbr.rel (%p212) target = $region24
      $region23: #{decoder_forward.9} parent=11 // pred_region
        _
      $region24: #{decoder_forward.9} parent=11 // pred_fallthru
        _
      // Predicated region
      $region25: #{decoder_forward.9} parent=11 // pred_check
        %p215 = pneg %p123
      $region26: #{decoder_forward.9} parent=11 // pred_check_branch
        %217 = sbr.rel (%p215) target = $region28
      $region27: #{decoder_forward.9} parent=11 // pred_region
        _
      $region28: #{decoder_forward.9} parent=11 // pred_fallthru
        _
      // Predicated region
      $region29: #{decoder_forward.9} parent=11 // pred_check
        %p218 = pneg %p144
      $region30: #{decoder_forward.9} parent=11 // pred_check_branch
        %220 = sbr.rel (%p218) target = $region32
      $region31: #{decoder_forward.9} parent=11 // pred_region
        _
      $region32: #{decoder_forward.9} parent=11 // pred_fallthru
        _
      // Predicated region
      $region33: #{decoder_forward.9} parent=11 // pred_check
        %p221 = pneg %p165
      $region34: #{decoder_forward.9} parent=11 // pred_check_branch
        %223 = sbr.rel (%p221) target = $region36
      $region35: #{decoder_forward.9} parent=11 // pred_region
        _
      $region36: #{decoder_forward.9} parent=11 // pred_fallthru
        _
    $region12: #{decoder_forward.9} parent=5 // pred_fallthru
      _
    %p224 = scmp.lt.s32.totalorder %s13, 2
    // Predicated region
    $region37: #{decoder_forward.9} parent=5 // pred_check
      %p225 = pneg %p224
    $region38: #{decoder_forward.9} parent=5 // pred_check_branch
      %227 = sbr.rel (%p225) target = $region40
    $region39: #{decoder_forward.9} parent=5 // pred_region
      // Predicated region
      $region41: #{decoder_forward.9} parent=39 // pred_check
        %p228 = pneg %p33
      $region42: #{decoder_forward.9} parent=39 // pred_check_branch
        %230 = sbr.rel (%p228) target = $region44
      $region43: #{decoder_forward.9} parent=39 // pred_region
        %s231 = smul.u32 2, %s13
        %p232 = scmp.lt.s32.totalorder %s231, 3
        %s233 = scalar_select %p232, %s231, 3
        %s234 = smul.addr %s233, 4
        %s235 = scalar_lea.vmem %s0, %s234
        %s236 = smul.u32 2, %s13
      $region44: #{decoder_forward.9} parent=39 // pred_fallthru
        _
    $region40: #{decoder_forward.9} parent=5 // pred_fallthru
      _
    %p237 = scmp.le.s32.totalorder 1, %s13
    %p238 = scmp.lt.s32.totalorder %s13, 3
    %p239 = pnand %p237, %p238
    %p240 = pneg %p239
    // Predicated region
    $region45: #{decoder_forward.9} parent=5 // pred_check
      _
    $region46: #{decoder_forward.9} parent=5 // pred_check_branch
      %242 = sbr.rel (%p239) target = $region48
    $region47: #{decoder_forward.9} parent=5 // pred_region
      %s243 = ssub.s32 %s13, 1
      %s244 = smul.u32 2, %s18
      %p245 = scmp.lt.s32.totalorder %s244, 3
      %s246 = scalar_select %p245, %s244, 3
      %s247 = smul.addr %s246, 4
      %s248 = scalar_lea.vmem %s0, %s247
      %p249 = pneg %p39
      %p250 = pneg %p36
      %p251 = pneg %p60
      %p252 = pneg %p57
      %p253 = pneg %p81
      %p254 = pneg %p78
      %p255 = pneg %p102
      %p256 = pneg %p99
      %p257 = pneg %p123
      %p258 = pneg %p120
      %p259 = pneg %p144
      %p260 = pneg %p141
      %p261 = pneg %p165
      %p262 = pneg %p162
      %p263 = pneg %p191
      %p264 = pneg %p188
      %s265 = smul.u32 2, %s18
      %p266 = scmp.lt.s32.totalorder %s265, 3
      %s267 = scalar_select %p266, %s265, 3
      %s268 = smul.addr %s267, 4
      %s269 = scalar_lea.vmem %s7, %s268
      %s270 = smul.u32 2, %s18
      %p271 = scmp.lt.s32.totalorder %s270, 3
      %s272 = scalar_select %p271, %s270, 3
      %s273 = smul.addr %s272, 4
      %s274 = scalar_lea.vmem %s0, %s273
      %s275 = smul.u32 2, %s18
      %s276 = smul.u32 2, %s18
      %p277 = scmp.lt.s32.totalorder %s276, 3
      %s278 = scalar_select %p277, %s276, 3
      %s279 = smul.addr %s278, 4
      %s280 = scalar_lea.vmem %s7, %s279
      %s281 = smul.u32 2, %s18
      %v283 = vld [vmem:[%s274] sm:$0xf]
      %v284 = vld [vmem:[%s274 + $0x4] sm:$0xf]
      %v285 = vld [vmem:[%s1] sm:$0xff]
      %v286 = vld [vmem:[%s1 + $0x8] sm:$0xff]
      %v287 = vld [vmem:[%s1 + $0x10] sm:$0xff]
      %v288 = vld [vmem:[%s1 + $0x18] sm:$0xff]
      %v289 = vld [vmem:[%s1 + $0x20] sm:$0xff]
      %v290 = vld [vmem:[%s1 + $0x28] sm:$0xff]
      %v291 = vld [vmem:[%s1 + $0x30] sm:$0xff]
      %v292 = vld [vmem:[%s1 + $0x38] sm:$0xff]
      %v293 = vld [vmem:[%s1 + $0x40] sm:$0xff]
      %v294 = vld [vmem:[%s1 + $0x48] sm:$0xff]
      %v295 = vld [vmem:[%s1 + $0x50] sm:$0xff]
      %v296 = vld [vmem:[%s1 + $0x58] sm:$0xff]
      %v297 = vld [vmem:[%s1 + $0x60] sm:$0xff]
      %v298 = vld [vmem:[%s1 + $0x68] sm:$0xff]
      %v299 = vld [vmem:[%s1 + $0x70] sm:$0xff]
      %v300 = vld [vmem:[%s1 + $0x78] sm:$0xff]
      %v301 = vld [vmem:[%s1 + $0x80] sm:$0xff]
      %v302 = vld [vmem:[%s1 + $0x88] sm:$0xff]
      %v303 = vld [vmem:[%s1 + $0x90] sm:$0xff]
      %v304 = vld [vmem:[%s1 + $0x98] sm:$0xff]
      %v305 = vld [vmem:[%s1 + $0xa0] sm:$0xff]
      %v306 = vld [vmem:[%s1 + $0xa8] sm:$0xff]
      %v307 = vld [vmem:[%s1 + $0xb0] sm:$0xff]
      %v308 = vld [vmem:[%s1 + $0xb8] sm:$0xff]
      %v309 = vld [vmem:[%s1 + $0xc0] sm:$0xff]
      %v310 = vld [vmem:[%s1 + $0xc8] sm:$0xff]
      %v311 = vld [vmem:[%s1 + $0xd0] sm:$0xff]
      %v312 = vld [vmem:[%s1 + $0xd8] sm:$0xff]
      %v313 = vld [vmem:[%s1 + $0xe0] sm:$0xff]
      %v314 = vld [vmem:[%s1 + $0xe8] sm:$0xff]
      %v315 = vld [vmem:[%s1 + $0xf0] sm:$0xff]
      %v316 = vld [vmem:[%s1 + $0xf8] sm:$0xff]
      %v317 = vld [vmem:[%s2] sm:$0xf]
      %v319 = vlaneseq
      %v320 = vshrl.u32 %v319, 7
      %v321 = vsub.s32 0, %v320
      %v322 = vrot.slane %v317, %v321
      %v323 = vlaneseq
      %v324 = vshrl.u32 %v323, 7
      %v325 = vsub.s32 1, %v324
      %v326 = vrot.slane %v317, %v325
      %v327 = vlaneseq
      %v328 = vshrl.u32 %v327, 7
      %v329 = vsub.s32 2, %v328
      %v330 = vrot.slane %v317, %v329
      %v331 = vlaneseq
      %v332 = vshrl.u32 %v331, 7
      %v333 = vsub.s32 3, %v332
      %v334 = vrot.slane %v317, %v333
      %v341 = vunpack.c.l.b16 %v283
      %v342 = vunpack.c.l.b16 %v284
      %v343 = vpack.c.b16 %v342, %v341
      %v377 = vunpack.c.l.b16 %v285
      %v378 = vunpack.c.h.b16 %v285
      %v379 = vunpack.c.l.b16 %v286
      %v380 = vunpack.c.h.b16 %v286
      %v381 = vunpack.c.l.b16 %v287
      %v382 = vunpack.c.h.b16 %v287
      %v383 = vunpack.c.l.b16 %v288
      %v384 = vunpack.c.h.b16 %v288
      %v385 = vunpack.c.l.b16 %v289
      %v386 = vunpack.c.h.b16 %v289
      %v387 = vunpack.c.l.b16 %v290
      %v388 = vunpack.c.h.b16 %v290
      %v389 = vunpack.c.l.b16 %v291
      %v390 = vunpack.c.h.b16 %v291
      %v391 = vunpack.c.l.b16 %v292
      %v392 = vunpack.c.h.b16 %v292
      %v393 = vunpack.c.l.b16 %v293
      %v394 = vunpack.c.h.b16 %v293
      %v395 = vunpack.c.l.b16 %v294
      %v396 = vunpack.c.h.b16 %v294
      %v397 = vunpack.c.l.b16 %v295
      %v398 = vunpack.c.h.b16 %v295
      %v399 = vunpack.c.l.b16 %v296
      %v400 = vunpack.c.h.b16 %v296
      %v401 = vunpack.c.l.b16 %v297
      %v402 = vunpack.c.h.b16 %v297
      %v403 = vunpack.c.l.b16 %v298
      %v404 = vunpack.c.h.b16 %v298
      %v405 = vunpack.c.l.b16 %v299
      %v406 = vunpack.c.h.b16 %v299
      %v407 = vunpack.c.l.b16 %v300
      %v408 = vunpack.c.h.b16 %v300
      %v409 = vunpack.c.l.b16 %v301
      %v410 = vunpack.c.h.b16 %v301
      %v411 = vunpack.c.l.b16 %v302
      %v412 = vunpack.c.h.b16 %v302
      %v413 = vunpack.c.l.b16 %v303
      %v414 = vunpack.c.h.b16 %v303
      %v415 = vunpack.c.l.b16 %v304
      %v416 = vunpack.c.h.b16 %v304
      %v417 = vunpack.c.l.b16 %v305
      %v418 = vunpack.c.h.b16 %v305
      %v419 = vunpack.c.l.b16 %v306
      %v420 = vunpack.c.h.b16 %v306
      %v421 = vunpack.c.l.b16 %v307
      %v422 = vunpack.c.h.b16 %v307
      %v423 = vunpack.c.l.b16 %v308
      %v424 = vunpack.c.h.b16 %v308
      %v425 = vunpack.c.l.b16 %v309
      %v426 = vunpack.c.h.b16 %v309
      %v427 = vunpack.c.l.b16 %v310
      %v428 = vunpack.c.h.b16 %v310
      %v429 = vunpack.c.l.b16 %v311
      %v430 = vunpack.c.h.b16 %v311
      %v431 = vunpack.c.l.b16 %v312
      %v432 = vunpack.c.h.b16 %v312
      %v433 = vunpack.c.l.b16 %v313
      %v434 = vunpack.c.h.b16 %v313
      %v435 = vunpack.c.l.b16 %v314
      %v436 = vunpack.c.h.b16 %v314
      %v437 = vunpack.c.l.b16 %v315
      %v438 = vunpack.c.h.b16 %v315
      %v439 = vunpack.c.l.b16 %v316
      %v440 = vunpack.c.h.b16 %v316
      %v441 = vpack.c.b16 %v381, %v377
      %v442 = vpack.c.b16 %v382, %v378
      %v443 = vpack.c.b16 %v383, %v379
      %v444 = vpack.c.b16 %v384, %v380
      %v445 = vpack.c.b16 %v389, %v385
      %v446 = vpack.c.b16 %v390, %v386
      %v447 = vpack.c.b16 %v391, %v387
      %v448 = vpack.c.b16 %v392, %v388
      %v449 = vpack.c.b16 %v397, %v393
      %v450 = vpack.c.b16 %v398, %v394
      %v451 = vpack.c.b16 %v399, %v395
      %v452 = vpack.c.b16 %v400, %v396
      %v453 = vpack.c.b16 %v405, %v401
      %v454 = vpack.c.b16 %v406, %v402
      %v455 = vpack.c.b16 %v407, %v403
      %v456 = vpack.c.b16 %v408, %v404
      %v457 = vpack.c.b16 %v413, %v409
      %v458 = vpack.c.b16 %v414, %v410
      %v459 = vpack.c.b16 %v415, %v411
      %v460 = vpack.c.b16 %v416, %v412
      %v461 = vpack.c.b16 %v421, %v417
      %v462 = vpack.c.b16 %v422, %v418
      %v463 = vpack.c.b16 %v423, %v419
      %v464 = vpack.c.b16 %v424, %v420
      %v465 = vpack.c.b16 %v429, %v425
      %v466 = vpack.c.b16 %v430, %v426
      %v467 = vpack.c.b16 %v431, %v427
      %v468 = vpack.c.b16 %v432, %v428
      %v469 = vpack.c.b16 %v437, %v433
      %v470 = vpack.c.b16 %v438, %v434
      %v471 = vpack.c.b16 %v439, %v435
      %v472 = vpack.c.b16 %v440, %v436
      %505 = vmatprep.subr.bf16.mxu0 %v470
      %506 = vmatpush1.bf16.msra.mxu0 %v469
      %507 = vmatprep.subr.bf16.mxu0 %v466
      %508 = vmatpush1.bf16.msra.mxu0 %v465
      %509 = vmatprep.subr.bf16.mxu0 %v462
      %510 = vmatpush1.bf16.msra.mxu0 %v461
      %511 = vmatprep.subr.bf16.mxu0 %v458
      %512 = vmatpush1.bf16.msra.mxu0 %v457
      %513 = vmatprep.subr.bf16.mxu0 %v454
      %514 = vmatpush1.bf16.msra.mxu0 %v453
      %515 = vmatprep.subr.bf16.mxu0 %v450
      %516 = vmatpush1.bf16.msra.mxu0 %v449
      %517 = vmatprep.subr.bf16.mxu0 %v446
      %518 = vmatpush1.bf16.msra.mxu0 %v445
      %519 = vmatprep.subr.bf16.mxu0 %v442
      %520 = vmatpush1.bf16.msra.mxu0 %v441
      %521 = vmatprep.subr.bf16.mxu0 0
      %522 = vmatpush2.bf16.msra.mxu0 0
      %523 = vmatprep.subr.bf16.mxu0 0
      %524 = vmatpush2.bf16.msra.mxu0 0
      %525 = vmatprep.subr.bf16.mxu0 0
      %526 = vmatpush2.bf16.msra.mxu0 0
      %527 = vmatprep.subr.bf16.mxu0 0
      %528 = vmatpush2.bf16.msra.mxu0 0
      %529 = vmatprep.subr.bf16.mxu0 0
      %530 = vmatpush2.bf16.msra.mxu0 0
      %531 = vmatprep.subr.bf16.mxu0 0
      %532 = vmatpush2.bf16.msra.mxu0 0
      %533 = vmatprep.subr.bf16.mxu0 0
      %534 = vmatpush2.bf16.msra.mxu0 0
      %535 = vmatprep.subr.bf16.mxu0 0
      %536 = vmatpush2.bf16.msra.mxu0 0
      %537 = vmatprep.mubr.bf16.mxu0 0
      %538 = vmatmul.mubr.bf16.gmra.mxu0 %v343
      %v539 = vpop.f32.mrf.mxu0
      %v540 = vadd.f32 %v322, %v539
      %v541 = vpop.f32.mrf.mxu0
      %v542 = vadd.f32 %v326, %v541
      %v543 = vpop.f32.mrf.mxu0
      %v544 = vadd.f32 %v322, %v543
      %v545 = vpop.f32.mrf.mxu0
      %v546 = vadd.f32 %v326, %v545
      %547 = vdwg.mxu0
      %548 = vmatprep.subr.bf16.mxu0 %v472
      %549 = vmatpush1.bf16.msra.mxu0 %v471
      %550 = vmatprep.subr.bf16.mxu0 %v468
      %551 = vmatpush1.bf16.msra.mxu0 %v467
      %552 = vmatprep.subr.bf16.mxu0 %v464
      %553 = vmatpush1.bf16.msra.mxu0 %v463
      %554 = vmatprep.subr.bf16.mxu0 %v460
      %555 = vmatpush1.bf16.msra.mxu0 %v459
      %556 = vmatprep.subr.bf16.mxu0 %v456
      %557 = vmatpush1.bf16.msra.mxu0 %v455
      %558 = vmatprep.subr.bf16.mxu0 %v452
      %559 = vmatpush1.bf16.msra.mxu0 %v451
      %560 = vmatprep.subr.bf16.mxu0 %v448
      %561 = vmatpush1.bf16.msra.mxu0 %v447
      %562 = vmatprep.subr.bf16.mxu0 %v444
      %563 = vmatpush1.bf16.msra.mxu0 %v443
      %564 = vmatprep.subr.bf16.mxu0 0
      %565 = vmatpush2.bf16.msra.mxu0 0
      %566 = vmatprep.subr.bf16.mxu0 0
      %567 = vmatpush2.bf16.msra.mxu0 0
      %568 = vmatprep.subr.bf16.mxu0 0
      %569 = vmatpush2.bf16.msra.mxu0 0
      %570 = vmatprep.subr.bf16.mxu0 0
      %571 = vmatpush2.bf16.msra.mxu0 0
      %572 = vmatprep.subr.bf16.mxu0 0
      %573 = vmatpush2.bf16.msra.mxu0 0
      %574 = vmatprep.subr.bf16.mxu0 0
      %575 = vmatpush2.bf16.msra.mxu0 0
      %576 = vmatprep.subr.bf16.mxu0 0
      %577 = vmatpush2.bf16.msra.mxu0 0
      %578 = vmatprep.subr.bf16.mxu0 0
      %579 = vmatpush2.bf16.msra.mxu0 0
      %580 = vmatprep.mubr.bf16.mxu0 0
      %581 = vmatmul.mubr.bf16.gmra.mxu0 %v343
      %v582 = vpop.f32.mrf.mxu0
      %v583 = vadd.f32 %v330, %v582
      %v584 = vpop.f32.mrf.mxu0
      %v585 = vadd.f32 %v334, %v584
      %v586 = vpop.f32.mrf.mxu0
      %v587 = vadd.f32 %v330, %v586
      %v588 = vpop.f32.mrf.mxu0
      %v589 = vadd.f32 %v334, %v588
      %590 = vdwg.mxu0
      %v591 = vmul.f32 %v540, 0.5
      %v592 = vmul.f32 %v542, 0.5
      %v593 = vmul.f32 %v583, 0.5
      %v594 = vmul.f32 %v585, 0.5
      %v595 = vmul.f32 %v544, 0.5
      %v596 = vmul.f32 %v546, 0.5
      %v597 = vmul.f32 %v587, 0.5
      %v598 = vmul.f32 %v589, 0.5
      %v599 = vmul.f32 %v540, 0.044715
      %v600 = vmul.f32 %v542, 0.044715
      %v601 = vmul.f32 %v583, 0.044715
      %v602 = vmul.f32 %v585, 0.044715
      %v603 = vmul.f32 %v544, 0.044715
      %v604 = vmul.f32 %v546, 0.044715
      %v605 = vmul.f32 %v587, 0.044715
      %v606 = vmul.f32 %v589, 0.044715
      %v607 = vmul.f32 %v599, %v540
      %v608 = vmul.f32 %v600, %v542
      %v609 = vmul.f32 %v601, %v583
      %v610 = vmul.f32 %v602, %v585
      %v611 = vmul.f32 %v603, %v544
      %v612 = vmul.f32 %v604, %v546
      %v613 = vmul.f32 %v605, %v587
      %v614 = vmul.f32 %v606, %v589
      %v615 = vmul.f32 %v607, %v540
      %v616 = vmul.f32 %v608, %v542
      %v617 = vmul.f32 %v609, %v583
      %v618 = vmul.f32 %v610, %v585
      %v619 = vmul.f32 %v611, %v544
      %v620 = vmul.f32 %v612, %v546
      %v621 = vmul.f32 %v613, %v587
      %v622 = vmul.f32 %v614, %v589
      %v623 = vadd.f32 %v540, %v615
      %v624 = vadd.f32 %v542, %v616
      %v625 = vadd.f32 %v583, %v617
      %v626 = vadd.f32 %v585, %v618
      %v627 = vadd.f32 %v544, %v619
      %v628 = vadd.f32 %v546, %v620
      %v629 = vadd.f32 %v587, %v621
      %v630 = vadd.f32 %v589, %v622
      %v631 = vmul.f32 %v623, 0.7978846
      %v632 = vmul.f32 %v624, 0.7978846
      %v633 = vmul.f32 %v625, 0.7978846
      %v634 = vmul.f32 %v626, 0.7978846
      %v635 = vmul.f32 %v627, 0.7978846
      %v636 = vmul.f32 %v628, 0.7978846
      %v637 = vmul.f32 %v629, 0.7978846
      %v638 = vmul.f32 %v630, 0.7978846
      %v639 = vtanh.pop %v631
      %v640 = vtanh.pop %v632
      %v641 = vtanh.pop %v633
      %v642 = vtanh.pop %v634
      %v643 = vtanh.pop %v635
      %v644 = vtanh.pop %v636
      %v645 = vtanh.pop %v637
      %v646 = vtanh.pop %v638
      %v647 = vadd.f32 %v639, 1.0
      %v648 = vadd.f32 %v640, 1.0
      %v649 = vadd.f32 %v641, 1.0
      %v650 = vadd.f32 %v642, 1.0
      %v651 = vadd.f32 %v643, 1.0
      %v652 = vadd.f32 %v644, 1.0
      %v653 = vadd.f32 %v645, 1.0
      %v654 = vadd.f32 %v646, 1.0
      %v655 = vmul.f32 %v591, %v647
      %v656 = vmul.f32 %v592, %v648
      %v657 = vmul.f32 %v593, %v649
      %v658 = vmul.f32 %v594, %v650
      %v659 = vmul.f32 %v595, %v651
      %v660 = vmul.f32 %v596, %v652
      %v661 = vmul.f32 %v597, %v653
      %v662 = vmul.f32 %v598, %v654
      %v663 = vpack.c.bf16 %v659, %v655
      %v664 = vpack.c.bf16 %v660, %v656
      %v665 = vpack.c.bf16 %v661, %v657
      %v666 = vpack.c.bf16 %v662, %v658
      %v667 = vld [vmem:[%s3] sm:$0xf]
      %v668 = vld [vmem:[%s3 + $0x4] sm:$0xf]
      %v669 = vld [vmem:[%s3 + $0x8] sm:$0xf]
      %v670 = vld [vmem:[%s3 + $0xc] sm:$0xf]
      %v671 = vld [vmem:[%s3 + $0x10] sm:$0xf]
      %v672 = vld [vmem:[%s3 + $0x14] sm:$0xf]
      %v673 = vld [vmem:[%s3 + $0x18] sm:$0xf]
      %v674 = vld [vmem:[%s3 + $0x1c] sm:$0xf]
      %v675 = vld [vmem:[%s3 + $0x20] sm:$0xf]
      %v676 = vld [vmem:[%s3 + $0x24] sm:$0xf]
      %v677 = vld [vmem:[%s3 + $0x28] sm:$0xf]
      %v678 = vld [vmem:[%s3 + $0x2c] sm:$0xf]
      %v679 = vld [vmem:[%s3 + $0x30] sm:$0xf]
      %v680 = vld [vmem:[%s3 + $0x34] sm:$0xf]
      %v681 = vld [vmem:[%s3 + $0x38] sm:$0xf]
      %v682 = vld [vmem:[%s3 + $0x3c] sm:$0xf]
      %v683 = vld [vmem:[%s3 + $0x40] sm:$0xf]
      %v684 = vld [vmem:[%s3 + $0x44] sm:$0xf]
      %v685 = vld [vmem:[%s3 + $0x48] sm:$0xf]
      %v686 = vld [vmem:[%s3 + $0x4c] sm:$0xf]
      %v687 = vld [vmem:[%s3 + $0x50] sm:$0xf]
      %v688 = vld [vmem:[%s3 + $0x54] sm:$0xf]
      %v689 = vld [vmem:[%s3 + $0x58] sm:$0xf]
      %v690 = vld [vmem:[%s3 + $0x5c] sm:$0xf]
      %v691 = vld [vmem:[%s3 + $0x60] sm:$0xf]
      %v692 = vld [vmem:[%s3 + $0x64] sm:$0xf]
      %v693 = vld [vmem:[%s3 + $0x68] sm:$0xf]
      %v694 = vld [vmem:[%s3 + $0x6c] sm:$0xf]
      %v695 = vld [vmem:[%s3 + $0x70] sm:$0xf]
      %v696 = vld [vmem:[%s3 + $0x74] sm:$0xf]
      %v697 = vld [vmem:[%s3 + $0x78] sm:$0xf]
      %v698 = vld [vmem:[%s3 + $0x7c] sm:$0xf]
      %v699 = vld [vmem:[%s3 + $0x80] sm:$0xf]
      %v700 = vld [vmem:[%s3 + $0x84] sm:$0xf]
      %v701 = vld [vmem:[%s3 + $0x88] sm:$0xf]
      %v702 = vld [vmem:[%s3 + $0x8c] sm:$0xf]
      %v703 = vld [vmem:[%s3 + $0x90] sm:$0xf]
      %v704 = vld [vmem:[%s3 + $0x94] sm:$0xf]
      %v705 = vld [vmem:[%s3 + $0x98] sm:$0xf]
      %v706 = vld [vmem:[%s3 + $0x9c] sm:$0xf]
      %v707 = vld [vmem:[%s3 + $0xa0] sm:$0xf]
      %v708 = vld [vmem:[%s3 + $0xa4] sm:$0xf]
      %v709 = vld [vmem:[%s3 + $0xa8] sm:$0xf]
      %v710 = vld [vmem:[%s3 + $0xac] sm:$0xf]
      %v711 = vld [vmem:[%s3 + $0xb0] sm:$0xf]
      %v712 = vld [vmem:[%s3 + $0xb4] sm:$0xf]
      %v713 = vld [vmem:[%s3 + $0xb8] sm:$0xf]
      %v714 = vld [vmem:[%s3 + $0xbc] sm:$0xf]
      %v715 = vld [vmem:[%s3 + $0xc0] sm:$0xf]
      %v716 = vld [vmem:[%s3 + $0xc4] sm:$0xf]
      %v717 = vld [vmem:[%s3 + $0xc8] sm:$0xf]
      %v718 = vld [vmem:[%s3 + $0xcc] sm:$0xf]
      %v719 = vld [vmem:[%s3 + $0xd0] sm:$0xf]
      %v720 = vld [vmem:[%s3 + $0xd4] sm:$0xf]
      %v721 = vld [vmem:[%s3 + $0xd8] sm:$0xf]
      %v722 = vld [vmem:[%s3 + $0xdc] sm:$0xf]
      %v723 = vld [vmem:[%s3 + $0xe0] sm:$0xf]
      %v724 = vld [vmem:[%s3 + $0xe4] sm:$0xf]
      %v725 = vld [vmem:[%s3 + $0xe8] sm:$0xf]
      %v726 = vld [vmem:[%s3 + $0xec] sm:$0xf]
      %v727 = vld [vmem:[%s3 + $0xf0] sm:$0xf]
      %v728 = vld [vmem:[%s3 + $0xf4] sm:$0xf]
      %v729 = vld [vmem:[%s3 + $0xf8] sm:$0xf]
      %v730 = vld [vmem:[%s3 + $0xfc] sm:$0xf]
      %v731 = vld [vmem:[%s4] sm:$0x1]
      %v733 = vlaneseq
      %v734 = vshrl.u32 %v733, 7
      %v735 = vsub.s32 0, %v734
      %v736 = vrot.slane %v731, %v735
      %v802 = vunpack.c.l.b16 %v667
      %v803 = vunpack.c.l.b16 %v668
      %v804 = vunpack.c.l.b16 %v669
      %v805 = vunpack.c.l.b16 %v670
      %v806 = vunpack.c.l.b16 %v671
      %v807 = vunpack.c.l.b16 %v672
      %v808 = vunpack.c.l.b16 %v673
      %v809 = vunpack.c.l.b16 %v674
      %v810 = vunpack.c.l.b16 %v675
      %v811 = vunpack.c.l.b16 %v676
      %v812 = vunpack.c.l.b16 %v677
      %v813 = vunpack.c.l.b16 %v678
      %v814 = vunpack.c.l.b16 %v679
      %v815 = vunpack.c.l.b16 %v680
      %v816 = vunpack.c.l.b16 %v681
      %v817 = vunpack.c.l.b16 %v682
      %v818 = vunpack.c.l.b16 %v683
      %v819 = vunpack.c.l.b16 %v684
      %v820 = vunpack.c.l.b16 %v685
      %v821 = vunpack.c.l.b16 %v686
      %v822 = vunpack.c.l.b16 %v687
      %v823 = vunpack.c.l.b16 %v688
      %v824 = vunpack.c.l.b16 %v689
      %v825 = vunpack.c.l.b16 %v690
      %v826 = vunpack.c.l.b16 %v691
      %v827 = vunpack.c.l.b16 %v692
      %v828 = vunpack.c.l.b16 %v693
      %v829 = vunpack.c.l.b16 %v694
      %v830 = vunpack.c.l.b16 %v695
      %v831 = vunpack.c.l.b16 %v696
      %v832 = vunpack.c.l.b16 %v697
      %v833 = vunpack.c.l.b16 %v698
      %v834 = vunpack.c.l.b16 %v699
      %v835 = vunpack.c.l.b16 %v700
      %v836 = vunpack.c.l.b16 %v701
      %v837 = vunpack.c.l.b16 %v702
      %v838 = vunpack.c.l.b16 %v703
      %v839 = vunpack.c.l.b16 %v704
      %v840 = vunpack.c.l.b16 %v705
      %v841 = vunpack.c.l.b16 %v706
      %v842 = vunpack.c.l.b16 %v707
      %v843 = vunpack.c.l.b16 %v708
      %v844 = vunpack.c.l.b16 %v709
      %v845 = vunpack.c.l.b16 %v710
      %v846 = vunpack.c.l.b16 %v711
      %v847 = vunpack.c.l.b16 %v712
      %v848 = vunpack.c.l.b16 %v713
      %v849 = vunpack.c.l.b16 %v714
      %v850 = vunpack.c.l.b16 %v715
      %v851 = vunpack.c.l.b16 %v716
      %v852 = vunpack.c.l.b16 %v717
      %v853 = vunpack.c.l.b16 %v718
      %v854 = vunpack.c.l.b16 %v719
      %v855 = vunpack.c.l.b16 %v720
      %v856 = vunpack.c.l.b16 %v721
      %v857 = vunpack.c.l.b16 %v722
      %v858 = vunpack.c.l.b16 %v723
      %v859 = vunpack.c.l.b16 %v724
      %v860 = vunpack.c.l.b16 %v725
      %v861 = vunpack.c.l.b16 %v726
      %v862 = vunpack.c.l.b16 %v727
      %v863 = vunpack.c.l.b16 %v728
      %v864 = vunpack.c.l.b16 %v729
      %v865 = vunpack.c.l.b16 %v730
      %v866 = vpack.c.b16 %v803, %v802
      %v867 = vpack.c.b16 %v805, %v804
      %v868 = vpack.c.b16 %v807, %v806
      %v869 = vpack.c.b16 %v809, %v808
      %v870 = vpack.c.b16 %v811, %v810
      %v871 = vpack.c.b16 %v813, %v812
      %v872 = vpack.c.b16 %v815, %v814
      %v873 = vpack.c.b16 %v817, %v816
      %v874 = vpack.c.b16 %v819, %v818
      %v875 = vpack.c.b16 %v821, %v820
      %v876 = vpack.c.b16 %v823, %v822
      %v877 = vpack.c.b16 %v825, %v824
      %v878 = vpack.c.b16 %v827, %v826
      %v879 = vpack.c.b16 %v829, %v828
      %v880 = vpack.c.b16 %v831, %v830
      %v881 = vpack.c.b16 %v833, %v832
      %v882 = vpack.c.b16 %v835, %v834
      %v883 = vpack.c.b16 %v837, %v836
      %v884 = vpack.c.b16 %v839, %v838
      %v885 = vpack.c.b16 %v841, %v840
      %v886 = vpack.c.b16 %v843, %v842
      %v887 = vpack.c.b16 %v845, %v844
      %v888 = vpack.c.b16 %v847, %v846
      %v889 = vpack.c.b16 %v849, %v848
      %v890 = vpack.c.b16 %v851, %v850
      %v891 = vpack.c.b16 %v853, %v852
      %v892 = vpack.c.b16 %v855, %v854
      %v893 = vpack.c.b16 %v857, %v856
      %v894 = vpack.c.b16 %v859, %v858
      %v895 = vpack.c.b16 %v861, %v860
      %v896 = vpack.c.b16 %v863, %v862
      %v897 = vpack.c.b16 %v865, %v864
      %930 = vmatprep.subr.bf16.mxu0 0
      %931 = vmatpush1.bf16.msra.mxu0 %v873
      %932 = vmatprep.subr.bf16.mxu0 0
      %933 = vmatpush1.bf16.msra.mxu0 %v872
      %934 = vmatprep.subr.bf16.mxu0 0
      %935 = vmatpush1.bf16.msra.mxu0 %v871
      %936 = vmatprep.subr.bf16.mxu0 0
      %937 = vmatpush1.bf16.msra.mxu0 %v870
      %938 = vmatprep.subr.bf16.mxu0 0
      %939 = vmatpush1.bf16.msra.mxu0 %v869
      %940 = vmatprep.subr.bf16.mxu0 0
      %941 = vmatpush1.bf16.msra.mxu0 %v868
      %942 = vmatprep.subr.bf16.mxu0 0
      %943 = vmatpush1.bf16.msra.mxu0 %v867
      %944 = vmatprep.subr.bf16.mxu0 0
      %945 = vmatpush1.bf16.msra.mxu0 %v866
      %946 = vmatprep.subr.bf16.mxu0 0
      %947 = vmatpush2.bf16.msra.mxu0 %v881
      %948 = vmatprep.subr.bf16.mxu0 0
      %949 = vmatpush2.bf16.msra.mxu0 %v880
      %950 = vmatprep.subr.bf16.mxu0 0
      %951 = vmatpush2.bf16.msra.mxu0 %v879
      %952 = vmatprep.subr.bf16.mxu0 0
      %953 = vmatpush2.bf16.msra.mxu0 %v878
      %954 = vmatprep.subr.bf16.mxu0 0
      %955 = vmatpush2.bf16.msra.mxu0 %v877
      %956 = vmatprep.subr.bf16.mxu0 0
      %957 = vmatpush2.bf16.msra.mxu0 %v876
      %958 = vmatprep.subr.bf16.mxu0 0
      %959 = vmatpush2.bf16.msra.mxu0 %v875
      %960 = vmatprep.subr.bf16.mxu0 0
      %961 = vmatpush2.bf16.msra.mxu0 %v874
      %962 = vmatprep.mubr.bf16.mxu0 %v664
      %963 = vmatmul.mubr.bf16.gmra.mxu0 %v663
      %v964 = vpop.f32.mrf.mxu0
      %v965 = vadd.f32 %v736, %v964
      %v966 = vpop.f32.mrf.mxu0
      %v967 = vpop.f32.mrf.mxu0
      %v968 = vadd.f32 %v736, %v967
      %v969 = vpop.f32.mrf.mxu0
      %970 = vdwg.mxu0
      %971 = vmatprep.subr.bf16.mxu0 0
      %972 = vmatpush1.bf16.msra.mxu0 %v889
      %973 = vmatprep.subr.bf16.mxu0 0
      %974 = vmatpush1.bf16.msra.mxu0 %v888
      %975 = vmatprep.subr.bf16.mxu0 0
      %976 = vmatpush1.bf16.msra.mxu0 %v887
      %977 = vmatprep.subr.bf16.mxu0 0
      %978 = vmatpush1.bf16.msra.mxu0 %v886
      %979 = vmatprep.subr.bf16.mxu0 0
      %980 = vmatpush1.bf16.msra.mxu0 %v885
      %981 = vmatprep.subr.bf16.mxu0 0
      %982 = vmatpush1.bf16.msra.mxu0 %v884
      %983 = vmatprep.subr.bf16.mxu0 0
      %984 = vmatpush1.bf16.msra.mxu0 %v883
      %985 = vmatprep.subr.bf16.mxu0 0
      %986 = vmatpush1.bf16.msra.mxu0 %v882
      %987 = vmatprep.subr.bf16.mxu0 0
      %988 = vmatpush2.bf16.msra.mxu0 %v897
      %989 = vmatprep.subr.bf16.mxu0 0
      %990 = vmatpush2.bf16.msra.mxu0 %v896
      %991 = vmatprep.subr.bf16.mxu0 0
      %992 = vmatpush2.bf16.msra.mxu0 %v895
      %993 = vmatprep.subr.bf16.mxu0 0
      %994 = vmatpush2.bf16.msra.mxu0 %v894
      %995 = vmatprep.subr.bf16.mxu0 0
      %996 = vmatpush2.bf16.msra.mxu0 %v893
      %997 = vmatprep.subr.bf16.mxu0 0
      %998 = vmatpush2.bf16.msra.mxu0 %v892
      %999 = vmatprep.subr.bf16.mxu0 0
      %1000 = vmatpush2.bf16.msra.mxu0 %v891
      %1001 = vmatprep.subr.bf16.mxu0 0
      %1002 = vmatpush2.bf16.msra.mxu0 %v890
      %1003 = vmatprep.mubr.bf16.mxu0 %v666
      %1004 = vmatmul.mubr.bf16.gmra.mxu0 %v665
      %v1005 = vpop.f32.mrf.mxu0
      %v1006 = vadd.f32 %v965, %v1005
      %v1007 = vpop.f32.mrf.mxu0
      %v1008 = vpop.f32.mrf.mxu0
      %v1009 = vadd.f32 %v968, %v1008
      %v1010 = vpop.f32.mrf.mxu0
      %1011 = vdwg.mxu0
      %v1012 = vunpack.c.l.bf16 %v283
      %v1013 = vunpack.c.l.bf16 %v284
      %v1014 = vadd.f32 %v1006, %v1012
      %v1015 = vadd.f32 %v1009, %v1013
      %v1016 = vld [vmem:[%s5] sm:$0x1]
      %v1017 = vld [vmem:[%s6] sm:$0x1]
      %1018 = vadd.xlane.f32.xlu0 %v1014
      %v1019 = vpop.xlane.xlu0 %1018
      %1020 = vadd.xlane.f32.xlu0 %v1015
      %v1021 = vpop.xlane.xlu0 %1020
      %v1022 = vrcp.pop 128.0
      %v1023 = vmul.f32 %v1019, %v1022
      %v1024 = vmul.f32 %v1021, %v1022
      %v1025 = vsub.f32 %v1014, %v1023
      %v1026 = vsub.f32 %v1015, %v1024
      %v1027 = vmul.f32 %v1025, %v1025
      %v1028 = vmul.f32 %v1026, %v1026
      %1029 = vadd.xlane.f32.xlu0 %v1027
      %v1030 = vpop.xlane.xlu0 %1029
      %1031 = vadd.xlane.f32.xlu0 %v1028
      %v1032 = vpop.xlane.xlu0 %1031
      %v1033 = vmul.f32 %v1030, %v1022
      %v1034 = vmul.f32 %v1032, %v1022
      %v1035 = vadd.f32 %v1033, 1e-05
      %v1036 = vadd.f32 %v1034, 1e-05
      %v1037 = vrsqrt.pop %v1035
      %v1038 = vrsqrt.pop %v1036
      %v1039 = vmul.f32 %v1025, %v1037
      %v1040 = vmul.f32 %v1026, %v1038
      %v1042 = vlaneseq
      %v1043 = vshrl.u32 %v1042, 7
      %v1044 = vsub.s32 0, %v1043
      %v1045 = vrot.slane %v1016, %v1044
      %v1047 = vmul.f32 %v1039, %v1045
      %v1048 = vmul.f32 %v1040, %v1045
      %v1050 = vlaneseq
      %v1051 = vshrl.u32 %v1050, 7
      %v1052 = vsub.s32 0, %v1051
      %v1053 = vrot.slane %v1017, %v1052
      %v1055 = vadd.f32 %v1047, %v1053
      %v1056 = vadd.f32 %v1048, %v1053
      %v1057 = vpack.c.bf16 %v1056, %v1055
      %v1059 = vunpack.c.l.b16 %v1057
      %v1060 = vunpack.c.h.b16 %v1057
      %v1061 = vpack.c.b16 %v1059, %v1059
      %v1062 = vpack.c.b16 %v1060, %v1060
      %1065 = vst [vmem:[%s280] sm:$0xf] %v1061
      %1066 = vst [vmem:[%s280 + $0x4] sm:$0xf] %v1062
      %s1067 = smul.u32 2, %s18
      %p1068 = scmp.lt.s32.totalorder %s1067, 3
      %s1069 = scalar_select %p1068, %s1067, 3
      %s1070 = smul.addr %s1069, 4
      %s1071 = scalar_lea.vmem %s7, %s1070
      // Predicated region
      $region49: #{decoder_forward.9} parent=47 // pred_check
        %p1072 = pneg %p188
      $region50: #{decoder_forward.9} parent=47 // pred_check_branch
        %1074 = sbr.rel (%p1072) target = $region52
      $region51: #{decoder_forward.9} parent=47 // pred_region
        %s1075 = smul.u32 2, %s18
      $region52: #{decoder_forward.9} parent=47 // pred_fallthru
        _
    $region48: #{decoder_forward.9} parent=5 // pred_fallthru
      _
    %p1076 = scmp.le.s32.totalorder 2, %s13
    // Predicated region
    $region53: #{decoder_forward.9} parent=5 // pred_check
      %p1077 = pneg %p1076
    $region54: #{decoder_forward.9} parent=5 // pred_check_branch
      %1079 = sbr.rel (%p1077) target = $region56
    $region55: #{decoder_forward.9} parent=5 // pred_region
      %s1080 = ssub.s32 %s13, 2
      // Predicated region
      $region57: #{decoder_forward.9} parent=55 // pred_check
        %p1081 = pneg %p194
      $region58: #{decoder_forward.9} parent=55 // pred_check_branch
        %1083 = sbr.rel (%p1081) target = $region60
      $region59: #{decoder_forward.9} parent=55 // pred_region
        %s1084 = smul.u32 2, %s19
        %p1085 = scmp.lt.s32.totalorder %s1084, 3
        %s1086 = scalar_select %p1085, %s1084, 3
        %s1087 = smul.addr %s1086, 4
        %s1088 = scalar_lea.vmem %s7, %s1087
      $region60: #{decoder_forward.9} parent=55 // pred_fallthru
        _
    $region56: #{decoder_forward.9} parent=5 // pred_fallthru
      _
  $region6: #{decoder_forward.9} parent=0 // loop_footer
    %s17 = sadd.s32 1, %s13
  $region7: #{decoder_forward.9} parent=0 // loop_footer_branch
    %12 = sbr.rel target = $region3
  $region8: #{decoder_forward.9} parent=0 // loop_exit
    _

// kernel: decoder_forward.8
$region0: #{decoder_forward.8}
  #allocation0 [shape = 'u32[]', space=smem, size = 0x4, offset = 0x4, fixed_abs, tag = 'smem constant byte address 0x4 - core index']
  #allocation1 [shape = 'u32[144,128]{1,0:T(1,128)}', space=vmem, size = 0x12000, scoped, tag = 'internal scratch']
  %s0 = inlined_call_operand.vmem [shape: bf16[32,128], index: 0, kind: input, shape index: {}]
  %s1 = inlined_call_operand.vmem [shape: bf16[32,128], index: 1, kind: input, shape index: {}]
  %s2 = inlined_call_operand.vmem [shape: bf16[128,128], index: 2, kind: input, shape index: {}]
  %s3 = inlined_call_operand.vmem [shape: f32[1,128], index: 3, kind: input, shape index: {}]
  %s4 = inlined_call_operand.vmem [shape: bf16[128,256], index: 4, kind: input, shape index: {}]
  %s5 = inlined_call_operand.vmem [shape: f32[1,256], index: 5, kind: input, shape index: {}]
  %s6 = inlined_call_operand.vmem [shape: bf16[128,128], index: 6, kind: input, shape index: {}]
  %s7 = inlined_call_operand.vmem [shape: f32[1,128], index: 7, kind: input, shape index: {}]
  %s8 = inlined_call_operand.vmem [shape: f32[1,128], index: 8, kind: input, shape index: {}]
  %s9 = inlined_call_operand.vmem [shape: f32[1,128], index: 9, kind: input, shape index: {}]
  %s10 = inlined_call_operand.vmem [shape: bf16[32,128], index: 10, kind: output, shape index: {}]
  %s11 = sld [smem:[#allocation0]]
  $region73: #{decoder_forward.8} parent=0
    _
  %s13 = ssub.s32 1, %s11
  %s14 = scalar_select 0, %s13, %s11
  loop: start=0, step=1, limit=4
  $region2: #{decoder_forward.8} parent=0 // loop_pre_header
    _
  $region3: #{decoder_forward.8} parent=0 // loop_header
    %s16 = sphi 0, %s20
    %p17 = scmp.ge.s32.totalorder %s16, 4
    %s26 = sphi 0, %s28
    %s29 = sphi 0, %s26
    %s30 = sphi 0, %s29
    %s46 = sphi 0, %s30
    %s52 = sphi 0, %s54
    %s55 = sphi 0, %s52
    %s56 = sphi 0, %s55
    %s72 = sphi 0, %s56
    %s76 = sphi 0, %s76
    %s78 = sphi 0, %s76
    %s79 = sphi 0, %s78
    %s93 = sphi 0, %s79
    %s97 = sphi 0, %s97
    %s99 = sphi 0, %s97
    %s100 = sphi 0, %s99
    %s114 = sphi 0, %s100
    %s118 = sphi 0, %s118
    %s120 = sphi 0, %s118
    %s121 = sphi 0, %s120
    %s135 = sphi 0, %s121
    %s139 = sphi 0, %s139
    %s141 = sphi 0, %s139
    %s142 = sphi 0, %s141
    %s156 = sphi 0, %s142
    %s160 = sphi 0, %s160
    %s162 = sphi 0, %s160
    %s163 = sphi 0, %s162
    %s177 = sphi 0, %s163
    %s181 = sphi 0, %s181
    %s183 = sphi 0, %s181
    %s184 = sphi 0, %s183
    %s198 = sphi 0, %s184
    %s202 = sphi 0, %s202
    %s204 = sphi 0, %s202
    %s205 = sphi 0, %s204
    %s219 = sphi 0, %s205
    %s223 = sphi 0, %s223
    %s225 = sphi 0, %s223
    %s226 = sphi 0, %s225
    %s240 = sphi 0, %s226
    %s246 = sphi 0, %s248
    %s249 = sphi 0, %s246
    %s250 = sphi 0, %s249
    %s266 = sphi 0, %s250
  $region4: #{decoder_forward.8} parent=0 // loop_header_branch
    %19 = sbr.rel (%p17) target = $region8
  $region5: #{decoder_forward.8} parent=0 // loop_body
    %s21 = ssub.s32 %s16, 1
    %s22 = ssub.s32 %s16, 2
    %s23 = sadd.s32 %s16, 1
    %s24 = ssub.s32 %s16, %s23
    %p25 = scmp.eq.s32.totalorder %s24, 0
    %s27 = sadd.s32 %s26, 1
    %s28 = scalar_select %p25, %s26, %s27
    %p31 = pneg %p25
    %p32 = scmp.eq.s32.totalorder %s16, 1
    %p33 = por %p31, %p32
    %p34 = scmp.ne.s32.totalorder %s26, %s29
    %p35 = scmp.eq.s32.totalorder %s16, 0
    %p36 = por %p34, %p35
    %p37 = scmp.ne.s32.totalorder %s26, %s29
    %p38 = scmp.eq.s32.totalorder %s21, 1
    %p39 = por %p37, %p38
    %p40 = scmp.ne.s32.totalorder %s29, %s30
    %p41 = scmp.eq.s32.totalorder %s21, 0
    %p42 = por %p40, %p41
    %p43 = scmp.ne.s32.totalorder %s29, %s30
    %p44 = scmp.eq.s32.totalorder %s22, 1
    %p45 = por %p43, %p44
    %p47 = scmp.ne.s32.totalorder %s30, %s46
    %p48 = scmp.eq.s32.totalorder %s22, 0
    %p49 = por %p47, %p48
    %s50 = ssub.s32 %s16, %s23
    %p51 = scmp.eq.s32.totalorder %s50, 0
    %s53 = sadd.s32 %s52, 1
    %s54 = scalar_select %p51, %s52, %s53
    %p57 = pneg %p51
    %p58 = scmp.eq.s32.totalorder %s16, 1
    %p59 = por %p57, %p58
    %p60 = scmp.ne.s32.totalorder %s52, %s55
    %p61 = scmp.eq.s32.totalorder %s16, 0
    %p62 = por %p60, %p61
    %p63 = scmp.ne.s32.totalorder %s52, %s55
    %p64 = scmp.eq.s32.totalorder %s21, 1
    %p65 = por %p63, %p64
    %p66 = scmp.ne.s32.totalorder %s55, %s56
    %p67 = scmp.eq.s32.totalorder %s21, 0
    %p68 = por %p66, %p67
    %p69 = scmp.ne.s32.totalorder %s55, %s56
    %p70 = scmp.eq.s32.totalorder %s22, 1
    %p71 = por %p69, %p70
    %p73 = scmp.ne.s32.totalorder %s56, %s72
    %p74 = scmp.eq.s32.totalorder %s22, 0
    %p75 = por %p73, %p74
    %s77 = sadd.s32 %s76, 1
    %p80 = scmp.eq.s32.totalorder %s16, 1
    %p81 = scmp.ne.s32.totalorder %s76, %s78
    %p82 = scmp.eq.s32.totalorder %s16, 0
    %p83 = por %p81, %p82
    %p84 = scmp.ne.s32.totalorder %s76, %s78
    %p85 = scmp.eq.s32.totalorder %s21, 1
    %p86 = por %p84, %p85
    %p87 = scmp.ne.s32.totalorder %s78, %s79
    %p88 = scmp.eq.s32.totalorder %s21, 0
    %p89 = por %p87, %p88
    %p90 = scmp.ne.s32.totalorder %s78, %s79
    %p91 = scmp.eq.s32.totalorder %s22, 1
    %p92 = por %p90, %p91
    %p94 = scmp.ne.s32.totalorder %s79, %s93
    %p95 = scmp.eq.s32.totalorder %s22, 0
    %p96 = por %p94, %p95
    %s98 = sadd.s32 %s97, 1
    %p101 = scmp.eq.s32.totalorder %s16, 1
    %p102 = scmp.ne.s32.totalorder %s97, %s99
    %p103 = scmp.eq.s32.totalorder %s16, 0
    %p104 = por %p102, %p103
    %p105 = scmp.ne.s32.totalorder %s97, %s99
    %p106 = scmp.eq.s32.totalorder %s21, 1
    %p107 = por %p105, %p106
    %p108 = scmp.ne.s32.totalorder %s99, %s100
    %p109 = scmp.eq.s32.totalorder %s21, 0
    %p110 = por %p108, %p109
    %p111 = scmp.ne.s32.totalorder %s99, %s100
    %p112 = scmp.eq.s32.totalorder %s22, 1
    %p113 = por %p111, %p112
    %p115 = scmp.ne.s32.totalorder %s100, %s114
    %p116 = scmp.eq.s32.totalorder %s22, 0
    %p117 = por %p115, %p116
    %s119 = sadd.s32 %s118, 1
    %p122 = scmp.eq.s32.totalorder %s16, 1
    %p123 = scmp.ne.s32.totalorder %s118, %s120
    %p124 = scmp.eq.s32.totalorder %s16, 0
    %p125 = por %p123, %p124
    %p126 = scmp.ne.s32.totalorder %s118, %s120
    %p127 = scmp.eq.s32.totalorder %s21, 1
    %p128 = por %p126, %p127
    %p129 = scmp.ne.s32.totalorder %s120, %s121
    %p130 = scmp.eq.s32.totalorder %s21, 0
    %p131 = por %p129, %p130
    %p132 = scmp.ne.s32.totalorder %s120, %s121
    %p133 = scmp.eq.s32.totalorder %s22, 1
    %p134 = por %p132, %p133
    %p136 = scmp.ne.s32.totalorder %s121, %s135
    %p137 = scmp.eq.s32.totalorder %s22, 0
    %p138 = por %p136, %p137
    %s140 = sadd.s32 %s139, 1
    %p143 = scmp.eq.s32.totalorder %s16, 1
    %p144 = scmp.ne.s32.totalorder %s139, %s141
    %p145 = scmp.eq.s32.totalorder %s16, 0
    %p146 = por %p144, %p145
    %p147 = scmp.ne.s32.totalorder %s139, %s141
    %p148 = scmp.eq.s32.totalorder %s21, 1
    %p149 = por %p147, %p148
    %p150 = scmp.ne.s32.totalorder %s141, %s142
    %p151 = scmp.eq.s32.totalorder %s21, 0
    %p152 = por %p150, %p151
    %p153 = scmp.ne.s32.totalorder %s141, %s142
    %p154 = scmp.eq.s32.totalorder %s22, 1
    %p155 = por %p153, %p154
    %p157 = scmp.ne.s32.totalorder %s142, %s156
    %p158 = scmp.eq.s32.totalorder %s22, 0
    %p159 = por %p157, %p158
    %s161 = sadd.s32 %s160, 1
    %p164 = scmp.eq.s32.totalorder %s16, 1
    %p165 = scmp.ne.s32.totalorder %s160, %s162
    %p166 = scmp.eq.s32.totalorder %s16, 0
    %p167 = por %p165, %p166
    %p168 = scmp.ne.s32.totalorder %s160, %s162
    %p169 = scmp.eq.s32.totalorder %s21, 1
    %p170 = por %p168, %p169
    %p171 = scmp.ne.s32.totalorder %s162, %s163
    %p172 = scmp.eq.s32.totalorder %s21, 0
    %p173 = por %p171, %p172
    %p174 = scmp.ne.s32.totalorder %s162, %s163
    %p175 = scmp.eq.s32.totalorder %s22, 1
    %p176 = por %p174, %p175
    %p178 = scmp.ne.s32.totalorder %s163, %s177
    %p179 = scmp.eq.s32.totalorder %s22, 0
    %p180 = por %p178, %p179
    %s182 = sadd.s32 %s181, 1
    %p185 = scmp.eq.s32.totalorder %s16, 1
    %p186 = scmp.ne.s32.totalorder %s181, %s183
    %p187 = scmp.eq.s32.totalorder %s16, 0
    %p188 = por %p186, %p187
    %p189 = scmp.ne.s32.totalorder %s181, %s183
    %p190 = scmp.eq.s32.totalorder %s21, 1
    %p191 = por %p189, %p190
    %p192 = scmp.ne.s32.totalorder %s183, %s184
    %p193 = scmp.eq.s32.totalorder %s21, 0
    %p194 = por %p192, %p193
    %p195 = scmp.ne.s32.totalorder %s183, %s184
    %p196 = scmp.eq.s32.totalorder %s22, 1
    %p197 = por %p195, %p196
    %p199 = scmp.ne.s32.totalorder %s184, %s198
    %p200 = scmp.eq.s32.totalorder %s22, 0
    %p201 = por %p199, %p200
    %s203 = sadd.s32 %s202, 1
    %p206 = scmp.eq.s32.totalorder %s16, 1
    %p207 = scmp.ne.s32.totalorder %s202, %s204
    %p208 = scmp.eq.s32.totalorder %s16, 0
    %p209 = por %p207, %p208
    %p210 = scmp.ne.s32.totalorder %s202, %s204
    %p211 = scmp.eq.s32.totalorder %s21, 1
    %p212 = por %p210, %p211
    %p213 = scmp.ne.s32.totalorder %s204, %s205
    %p214 = scmp.eq.s32.totalorder %s21, 0
    %p215 = por %p213, %p214
    %p216 = scmp.ne.s32.totalorder %s204, %s205
    %p217 = scmp.eq.s32.totalorder %s22, 1
    %p218 = por %p216, %p217
    %p220 = scmp.ne.s32.totalorder %s205, %s219
    %p221 = scmp.eq.s32.totalorder %s22, 0
    %p222 = por %p220, %p221
    %s224 = sadd.s32 %s223, 1
    %p227 = scmp.eq.s32.totalorder %s16, 1
    %p228 = scmp.ne.s32.totalorder %s223, %s225
    %p229 = scmp.eq.s32.totalorder %s16, 0
    %p230 = por %p228, %p229
    %p231 = scmp.ne.s32.totalorder %s223, %s225
    %p232 = scmp.eq.s32.totalorder %s21, 1
    %p233 = por %p231, %p232
    %p234 = scmp.ne.s32.totalorder %s225, %s226
    %p235 = scmp.eq.s32.totalorder %s21, 0
    %p236 = por %p234, %p235
    %p237 = scmp.ne.s32.totalorder %s225, %s226
    %p238 = scmp.eq.s32.totalorder %s22, 1
    %p239 = por %p237, %p238
    %p241 = scmp.ne.s32.totalorder %s226, %s240
    %p242 = scmp.eq.s32.totalorder %s22, 0
    %p243 = por %p241, %p242
    %s244 = ssub.s32 %s16, %s23
    %p245 = scmp.eq.s32.totalorder %s244, 0
    %s247 = sadd.s32 %s246, 1
    %s248 = scalar_select %p245, %s246, %s247
    %p251 = pneg %p245
    %p252 = scmp.eq.s32.totalorder %s16, 1
    %p253 = por %p251, %p252
    %p254 = scmp.ne.s32.totalorder %s246, %s249
    %p255 = scmp.eq.s32.totalorder %s16, 0
    %p256 = por %p254, %p255
    %p257 = scmp.ne.s32.totalorder %s246, %s249
    %p258 = scmp.eq.s32.totalorder %s21, 1
    %p259 = por %p257, %p258
    %p260 = scmp.ne.s32.totalorder %s249, %s250
    %p261 = scmp.eq.s32.totalorder %s21, 0
    %p262 = por %p260, %p261
    %p263 = scmp.ne.s32.totalorder %s249, %s250
    %p264 = scmp.eq.s32.totalorder %s22, 1
    %p265 = por %p263, %p264
    %p267 = scmp.ne.s32.totalorder %s250, %s266
    %p268 = scmp.eq.s32.totalorder %s22, 0
    %p269 = por %p267, %p268
    %p270 = scmp.le.s32.totalorder 1, %s16
    %p271 = scmp.lt.s32.totalorder %s16, 3
    %p272 = pnand %p270, %p271
    %p273 = pneg %p272
    // Predicated region
    $region9: #{decoder_forward.8} parent=5 // pred_check
      _
    $region10: #{decoder_forward.8} parent=5 // pred_check_branch
      %275 = sbr.rel (%p272) target = $region12
    $region11: #{decoder_forward.8} parent=5 // pred_region
      %s276 = ssub.s32 %s16, 1
      // Predicated region
      $region13: #{decoder_forward.8} parent=11 // pred_check
        %p277 = pneg %p89
      $region14: #{decoder_forward.8} parent=11 // pred_check_branch
        %279 = sbr.rel (%p277) target = $region16
      $region15: #{decoder_forward.8} parent=11 // pred_region
        _
      $region16: #{decoder_forward.8} parent=11 // pred_fallthru
        _
      // Predicated region
      $region17: #{decoder_forward.8} parent=11 // pred_check
        %p280 = pneg %p110
      $region18: #{decoder_forward.8} parent=11 // pred_check_branch
        %282 = sbr.rel (%p280) target = $region20
      $region19: #{decoder_forward.8} parent=11 // pred_region
        _
      $region20: #{decoder_forward.8} parent=11 // pred_fallthru
        _
      // Predicated region
      $region21: #{decoder_forward.8} parent=11 // pred_check
        %p283 = pneg %p131
      $region22: #{decoder_forward.8} parent=11 // pred_check_branch
        %285 = sbr.rel (%p283) target = $region24
      $region23: #{decoder_forward.8} parent=11 // pred_region
        _
      $region24: #{decoder_forward.8} parent=11 // pred_fallthru
        _
      // Predicated region
      $region25: #{decoder_forward.8} parent=11 // pred_check
        %p286 = pneg %p152
      $region26: #{decoder_forward.8} parent=11 // pred_check_branch
        %288 = sbr.rel (%p286) target = $region28
      $region27: #{decoder_forward.8} parent=11 // pred_region
        _
      $region28: #{decoder_forward.8} parent=11 // pred_fallthru
        _
      // Predicated region
      $region29: #{decoder_forward.8} parent=11 // pred_check
        %p289 = pneg %p173
      $region30: #{decoder_forward.8} parent=11 // pred_check_branch
        %291 = sbr.rel (%p289) target = $region32
      $region31: #{decoder_forward.8} parent=11 // pred_region
        _
      $region32: #{decoder_forward.8} parent=11 // pred_fallthru
        _
      // Predicated region
      $region33: #{decoder_forward.8} parent=11 // pred_check
        %p292 = pneg %p194
      $region34: #{decoder_forward.8} parent=11 // pred_check_branch
        %294 = sbr.rel (%p292) target = $region36
      $region35: #{decoder_forward.8} parent=11 // pred_region
        _
      $region36: #{decoder_forward.8} parent=11 // pred_fallthru
        _
      // Predicated region
      $region37: #{decoder_forward.8} parent=11 // pred_check
        %p295 = pneg %p215
      $region38: #{decoder_forward.8} parent=11 // pred_check_branch
        %297 = sbr.rel (%p295) target = $region40
      $region39: #{decoder_forward.8} parent=11 // pred_region
        _
      $region40: #{decoder_forward.8} parent=11 // pred_fallthru
        _
      // Predicated region
      $region41: #{decoder_forward.8} parent=11 // pred_check
        %p298 = pneg %p236
      $region42: #{decoder_forward.8} parent=11 // pred_check_branch
        %300 = sbr.rel (%p298) target = $region44
      $region43: #{decoder_forward.8} parent=11 // pred_region
        _
      $region44: #{decoder_forward.8} parent=11 // pred_fallthru
        _
    $region12: #{decoder_forward.8} parent=5 // pred_fallthru
      _
    %p301 = scmp.lt.s32.totalorder %s16, 2
    // Predicated region
    $region45: #{decoder_forward.8} parent=5 // pred_check
      %p302 = pneg %p301
    $region46: #{decoder_forward.8} parent=5 // pred_check_branch
      %304 = sbr.rel (%p302) target = $region48
    $region47: #{decoder_forward.8} parent=5 // pred_region
      // Predicated region
      $region49: #{decoder_forward.8} parent=47 // pred_check
        %p305 = pneg %p36
      $region50: #{decoder_forward.8} parent=47 // pred_check_branch
        %307 = sbr.rel (%p305) target = $region52
      $region51: #{decoder_forward.8} parent=47 // pred_region
        %s308 = smul.u32 2, %s16
        %p309 = scmp.lt.s32.totalorder %s308, 3
        %s310 = scalar_select %p309, %s308, 3
        %s311 = smul.addr %s310, 4
        %s312 = scalar_lea.vmem %s0, %s311
        %s313 = smul.u32 2, %s16
      $region52: #{decoder_forward.8} parent=47 // pred_fallthru
        _
      // Predicated region
      $region53: #{decoder_forward.8} parent=47 // pred_check
        %p314 = pneg %p62
      $region54: #{decoder_forward.8} parent=47 // pred_check_branch
        %316 = sbr.rel (%p314) target = $region56
      $region55: #{decoder_forward.8} parent=47 // pred_region
        %s317 = smul.u32 2, %s16
        %p318 = scmp.lt.s32.totalorder %s317, 3
        %s319 = scalar_select %p318, %s317, 3
        %s320 = smul.addr %s319, 4
        %s321 = scalar_lea.vmem %s1, %s320
        %s322 = smul.u32 2, %s16
      $region56: #{decoder_forward.8} parent=47 // pred_fallthru
        _
    $region48: #{decoder_forward.8} parent=5 // pred_fallthru
      _
    %p323 = scmp.le.s32.totalorder 1, %s16
    %p324 = scmp.lt.s32.totalorder %s16, 3
    %p325 = pnand %p323, %p324
    %p326 = pneg %p325
    // Predicated region
    $region57: #{decoder_forward.8} parent=5 // pred_check
      _
    $region58: #{decoder_forward.8} parent=5 // pred_check_branch
      %328 = sbr.rel (%p325) target = $region60
    $region59: #{decoder_forward.8} parent=5 // pred_region
      %s329 = ssub.s32 %s16, 1
      %s330 = smul.u32 2, %s21
      %p331 = scmp.lt.s32.totalorder %s330, 3
      %s332 = scalar_select %p331, %s330, 3
      %s333 = smul.addr %s332, 4
      %s334 = scalar_lea.vmem %s0, %s333
      %p335 = pneg %p42
      %p336 = pneg %p39
      %s337 = smul.u32 2, %s21
      %p338 = scmp.lt.s32.totalorder %s337, 3
      %s339 = scalar_select %p338, %s337, 3
      %s340 = smul.addr %s339, 4
      %s341 = scalar_lea.vmem %s1, %s340
      %p342 = pneg %p68
      %p343 = pneg %p65
      %p344 = pneg %p89
      %p345 = pneg %p86
      %p346 = pneg %p110
      %p347 = pneg %p107
      %p348 = pneg %p131
      %p349 = pneg %p128
      %p350 = pneg %p152
      %p351 = pneg %p149
      %p352 = pneg %p173
      %p353 = pneg %p170
      %p354 = pneg %p194
      %p355 = pneg %p191
      %p356 = pneg %p215
      %p357 = pneg %p212
      %p358 = pneg %p236
      %p359 = pneg %p233
      %p360 = pneg %p262
      %p361 = pneg %p259
      %s362 = smul.u32 2, %s21
      %p363 = scmp.lt.s32.totalorder %s362, 3
      %s364 = scalar_select %p363, %s362, 3
      %s365 = smul.addr %s364, 4
      %s366 = scalar_lea.vmem %s10, %s365
      %s367 = smul.u32 2, %s21
      %p368 = scmp.lt.s32.totalorder %s367, 3
      %s369 = scalar_select %p368, %s367, 3
      %s370 = smul.addr %s369, 4
      %s371 = scalar_lea.vmem %s0, %s370
      %s372 = smul.u32 2, %s21
      %s373 = smul.u32 2, %s21
      %p374 = scmp.lt.s32.totalorder %s373, 3
      %s375 = scalar_select %p374, %s373, 3
      %s376 = smul.addr %s375, 4
      %s377 = scalar_lea.vmem %s1, %s376
      %s378 = smul.u32 2, %s21
      %s379 = smul.u32 2, %s21
      %p380 = scmp.lt.s32.totalorder %s379, 3
      %s381 = scalar_select %p380, %s379, 3
      %s382 = smul.addr %s381, 4
      %s383 = scalar_lea.vmem %s10, %s382
      %s384 = smul.u32 2, %s21
      %v386 = vld [vmem:[%s371] sm:$0xf]
      %v387 = vld [vmem:[%s371 + $0x4] sm:$0xf]
      %v388 = vld [vmem:[%s377] sm:$0xf]
      %v389 = vld [vmem:[%s377 + $0x4] sm:$0xf]
      %v390 = vld [vmem:[%s2] sm:$0xf]
      %v391 = vld [vmem:[%s2 + $0x4] sm:$0xf]
      %v392 = vld [vmem:[%s2 + $0x8] sm:$0xf]
      %v393 = vld [vmem:[%s2 + $0xc] sm:$0xf]
      %v394 = vld [vmem:[%s2 + $0x10] sm:$0xf]
      %v395 = vld [vmem:[%s2 + $0x14] sm:$0xf]
      %v396 = vld [vmem:[%s2 + $0x18] sm:$0xf]
      %v397 = vld [vmem:[%s2 + $0x1c] sm:$0xf]
      %v398 = vld [vmem:[%s2 + $0x20] sm:$0xf]
      %v399 = vld [vmem:[%s2 + $0x24] sm:$0xf]
      %v400 = vld [vmem:[%s2 + $0x28] sm:$0xf]
      %v401 = vld [vmem:[%s2 + $0x2c] sm:$0xf]
      %v402 = vld [vmem:[%s2 + $0x30] sm:$0xf]
      %v403 = vld [vmem:[%s2 + $0x34] sm:$0xf]
      %v404 = vld [vmem:[%s2 + $0x38] sm:$0xf]
      %v405 = vld [vmem:[%s2 + $0x3c] sm:$0xf]
      %v406 = vld [vmem:[%s3] sm:$0x1]
      %v408 = vlaneseq
      %v409 = vshrl.u32 %v408, 7
      %v410 = vsub.s32 0, %v409
      %v411 = vrot.slane %v406, %v410
      %v415 = vunpack.c.l.b16 %v386
      %v416 = vunpack.c.l.b16 %v387
      %v417 = vpack.c.b16 %v416, %v415
      %v435 = vunpack.c.l.b16 %v390
      %v436 = vunpack.c.l.b16 %v391
      %v437 = vunpack.c.l.b16 %v392
      %v438 = vunpack.c.l.b16 %v393
      %v439 = vunpack.c.l.b16 %v394
      %v440 = vunpack.c.l.b16 %v395
      %v441 = vunpack.c.l.b16 %v396
      %v442 = vunpack.c.l.b16 %v397
      %v443 = vunpack.c.l.b16 %v398
      %v444 = vunpack.c.l.b16 %v399
      %v445 = vunpack.c.l.b16 %v400
      %v446 = vunpack.c.l.b16 %v401
      %v447 = vunpack.c.l.b16 %v402
      %v448 = vunpack.c.l.b16 %v403
      %v449 = vunpack.c.l.b16 %v404
      %v450 = vunpack.c.l.b16 %v405
      %v451 = vpack.c.b16 %v436, %v435
      %v452 = vpack.c.b16 %v438, %v437
      %v453 = vpack.c.b16 %v440, %v439
      %v454 = vpack.c.b16 %v442, %v441
      %v455 = vpack.c.b16 %v444, %v443
      %v456 = vpack.c.b16 %v446, %v445
      %v457 = vpack.c.b16 %v448, %v447
      %v458 = vpack.c.b16 %v450, %v449
      %467 = vmatprep.subr.bf16.mxu0 0
      %468 = vmatpush1.bf16.msra.mxu0 %v458
      %469 = vmatprep.subr.bf16.mxu0 0
      %470 = vmatpush1.bf16.msra.mxu0 %v457
      %471 = vmatprep.subr.bf16.mxu0 0
      %472 = vmatpush1.bf16.msra.mxu0 %v456
      %473 = vmatprep.subr.bf16.mxu0 0
      %474 = vmatpush1.bf16.msra.mxu0 %v455
      %475 = vmatprep.subr.bf16.mxu0 0
      %476 = vmatpush1.bf16.msra.mxu0 %v454
      %477 = vmatprep.subr.bf16.mxu0 0
      %478 = vmatpush1.bf16.msra.mxu0 %v453
      %479 = vmatprep.subr.bf16.mxu0 0
      %480 = vmatpush1.bf16.msra.mxu0 %v452
      %481 = vmatprep.subr.bf16.mxu0 0
      %482 = vmatpush1.bf16.msra.mxu0 %v451
      %483 = vmatprep.subr.bf16.mxu0 0
      %484 = vmatpush2.bf16.msra.mxu0 0
      %485 = vmatprep.subr.bf16.mxu0 0
      %486 = vmatpush2.bf16.msra.mxu0 0
      %487 = vmatprep.subr.bf16.mxu0 0
      %488 = vmatpush2.bf16.msra.mxu0 0
      %489 = vmatprep.subr.bf16.mxu0 0
      %490 = vmatpush2.bf16.msra.mxu0 0
      %491 = vmatprep.subr.bf16.mxu0 0
      %492 = vmatpush2.bf16.msra.mxu0 0
      %493 = vmatprep.subr.bf16.mxu0 0
      %494 = vmatpush2.bf16.msra.mxu0 0
      %495 = vmatprep.subr.bf16.mxu0 0
      %496 = vmatpush2.bf16.msra.mxu0 0
      %497 = vmatprep.subr.bf16.mxu0 0
      %498 = vmatpush2.bf16.msra.mxu0 0
      %499 = vmatprep.mubr.bf16.mxu0 0
      %500 = vmatmul.mubr.bf16.gmra.mxu0 %v417
      %v501 = vpop.f32.mrf.mxu0
      %v502 = vadd.f32 %v411, %v501
      %v503 = vpop.f32.mrf.mxu0
      %v504 = vpop.f32.mrf.mxu0
      %v505 = vadd.f32 %v411, %v504
      %v506 = vpop.f32.mrf.mxu0
      %507 = vdwg.mxu0
      %v508 = vmul.f32 %v502, 0.17677669
      %v509 = vmul.f32 %v505, 0.17677669
      %v510 = vld [vmem:[%s4] sm:$0xff]
      %v511 = vld [vmem:[%s4 + $0x8] sm:$0xff]
      %v512 = vld [vmem:[%s4 + $0x10] sm:$0xff]
      %v513 = vld [vmem:[%s4 + $0x18] sm:$0xff]
      %v514 = vld [vmem:[%s4 + $0x20] sm:$0xff]
      %v515 = vld [vmem:[%s4 + $0x28] sm:$0xff]
      %v516 = vld [vmem:[%s4 + $0x30] sm:$0xff]
      %v517 = vld [vmem:[%s4 + $0x38] sm:$0xff]
      %v518 = vld [vmem:[%s4 + $0x40] sm:$0xff]
      %v519 = vld [vmem:[%s4 + $0x48] sm:$0xff]
      %v520 = vld [vmem:[%s4 + $0x50] sm:$0xff]
      %v521 = vld [vmem:[%s4 + $0x58] sm:$0xff]
      %v522 = vld [vmem:[%s4 + $0x60] sm:$0xff]
      %v523 = vld [vmem:[%s4 + $0x68] sm:$0xff]
      %v524 = vld [vmem:[%s4 + $0x70] sm:$0xff]
      %v525 = vld [vmem:[%s4 + $0x78] sm:$0xff]
      %v526 = vld [vmem:[%s5] sm:$0x3]
      %v528 = vlaneseq
      %v529 = vshrl.u32 %v528, 7
      %v530 = vsub.s32 0, %v529
      %v531 = vrot.slane %v526, %v530
      %v532 = vlaneseq
      %v533 = vshrl.u32 %v532, 7
      %v534 = vsub.s32 1, %v533
      %v535 = vrot.slane %v526, %v534
      %v540 = vunpack.c.l.b16 %v388
      %v541 = vunpack.c.l.b16 %v389
      %v542 = vpack.c.b16 %v541, %v540
      %v560 = vunpack.c.l.b16 %v510
      %v561 = vunpack.c.h.b16 %v510
      %v562 = vunpack.c.l.b16 %v511
      %v563 = vunpack.c.h.b16 %v511
      %v564 = vunpack.c.l.b16 %v512
      %v565 = vunpack.c.h.b16 %v512
      %v566 = vunpack.c.l.b16 %v513
      %v567 = vunpack.c.h.b16 %v513
      %v568 = vunpack.c.l.b16 %v514
      %v569 = vunpack.c.h.b16 %v514
      %v570 = vunpack.c.l.b16 %v515
      %v571 = vunpack.c.h.b16 %v515
      %v572 = vunpack.c.l.b16 %v516
      %v573 = vunpack.c.h.b16 %v516
      %v574 = vunpack.c.l.b16 %v517
      %v575 = vunpack.c.h.b16 %v517
      %v576 = vunpack.c.l.b16 %v518
      %v577 = vunpack.c.h.b16 %v518
      %v578 = vunpack.c.l.b16 %v519
      %v579 = vunpack.c.h.b16 %v519
      %v580 = vunpack.c.l.b16 %v520
      %v581 = vunpack.c.h.b16 %v520
      %v582 = vunpack.c.l.b16 %v521
      %v583 = vunpack.c.h.b16 %v521
      %v584 = vunpack.c.l.b16 %v522
      %v585 = vunpack.c.h.b16 %v522
      %v586 = vunpack.c.l.b16 %v523
      %v587 = vunpack.c.h.b16 %v523
      %v588 = vunpack.c.l.b16 %v524
      %v589 = vunpack.c.h.b16 %v524
      %v590 = vunpack.c.l.b16 %v525
      %v591 = vunpack.c.h.b16 %v525
      %v592 = vpack.c.b16 %v562, %v560
      %v593 = vpack.c.b16 %v563, %v561
      %v594 = vpack.c.b16 %v566, %v564
      %v595 = vpack.c.b16 %v567, %v565
      %v596 = vpack.c.b16 %v570, %v568
      %v597 = vpack.c.b16 %v571, %v569
      %v598 = vpack.c.b16 %v574, %v572
      %v599 = vpack.c.b16 %v575, %v573
      %v600 = vpack.c.b16 %v578, %v576
      %v601 = vpack.c.b16 %v579, %v577
      %v602 = vpack.c.b16 %v582, %v580
      %v603 = vpack.c.b16 %v583, %v581
      %v604 = vpack.c.b16 %v586, %v584
      %v605 = vpack.c.b16 %v587, %v585
      %v606 = vpack.c.b16 %v590, %v588
      %v607 = vpack.c.b16 %v591, %v589
      %624 = vmatprep.subr.bf16.mxu0 %v607
      %625 = vmatpush1.bf16.msra.mxu0 %v606
      %626 = vmatprep.subr.bf16.mxu0 %v605
      %627 = vmatpush1.bf16.msra.mxu0 %v604
      %628 = vmatprep.subr.bf16.mxu0 %v603
      %629 = vmatpush1.bf16.msra.mxu0 %v602
      %630 = vmatprep.subr.bf16.mxu0 %v601
      %631 = vmatpush1.bf16.msra.mxu0 %v600
      %632 = vmatprep.subr.bf16.mxu0 %v599
      %633 = vmatpush1.bf16.msra.mxu0 %v598
      %634 = vmatprep.subr.bf16.mxu0 %v597
      %635 = vmatpush1.bf16.msra.mxu0 %v596
      %636 = vmatprep.subr.bf16.mxu0 %v595
      %637 = vmatpush1.bf16.msra.mxu0 %v594
      %638 = vmatprep.subr.bf16.mxu0 %v593
      %639 = vmatpush1.bf16.msra.mxu0 %v592
      %640 = vmatprep.subr.bf16.mxu0 0
      %641 = vmatpush2.bf16.msra.mxu0 0
      %642 = vmatprep.subr.bf16.mxu0 0
      %643 = vmatpush2.bf16.msra.mxu0 0
      %644 = vmatprep.subr.bf16.mxu0 0
      %645 = vmatpush2.bf16.msra.mxu0 0
      %646 = vmatprep.subr.bf16.mxu0 0
      %647 = vmatpush2.bf16.msra.mxu0 0
      %648 = vmatprep.subr.bf16.mxu0 0
      %649 = vmatpush2.bf16.msra.mxu0 0
      %650 = vmatprep.subr.bf16.mxu0 0
      %651 = vmatpush2.bf16.msra.mxu0 0
      %652 = vmatprep.subr.bf16.mxu0 0
      %653 = vmatpush2.bf16.msra.mxu0 0
      %654 = vmatprep.subr.bf16.mxu0 0
      %655 = vmatpush2.bf16.msra.mxu0 0
      %656 = vmatprep.mubr.bf16.mxu0 0
      %657 = vmatmul.mubr.bf16.gmra.mxu0 %v542
      %v658 = vpop.f32.mrf.mxu0
      %v659 = vadd.f32 %v531, %v658
      %v660 = vpop.f32.mrf.mxu0
      %v661 = vadd.f32 %v535, %v660
      %v662 = vpop.f32.mrf.mxu0
      %v663 = vadd.f32 %v531, %v662
      %v664 = vpop.f32.mrf.mxu0
      %v665 = vadd.f32 %v535, %v664
      %666 = vdwg.mxu0
      %v667 = vpack.c.bf16 %v663, %v659
      %v668 = vlaneseq
      %v669 = vand.u32 %v668, 127
      %vm670 = vcmp.ge.s32.totalorder %v669, 0
      %vm671 = vcmp.lt.s32.totalorder %v669, 32
      %vm672 = vmand %vm670, %vm671
      %v673 = vsel %vm672, %v508, 0.0
      %v674 = vsel %vm672, %v509, 0.0
      %v675 = vpack.c.bf16 %v674, %v673
      %676 = vmatprep.subr.bf16.mxu0 0
      %677 = vmatpush1.bf16.xpose.msra.mxu0 0
      %678 = vmatprep.subr.bf16.mxu0 0
      %679 = vmatpush1.bf16.xpose.msra.mxu0 0
      %680 = vmatprep.subr.bf16.mxu0 0
      %681 = vmatpush1.bf16.xpose.msra.mxu0 0
      %682 = vmatprep.subr.bf16.mxu0 0
      %683 = vmatpush1.bf16.xpose.msra.mxu0 0
      %684 = vmatprep.subr.bf16.mxu0 0
      %685 = vmatpush1.bf16.xpose.msra.mxu0 0
      %686 = vmatprep.subr.bf16.mxu0 0
      %687 = vmatpush1.bf16.xpose.msra.mxu0 0
      %688 = vmatprep.subr.bf16.mxu0 0
      %689 = vmatpush1.bf16.xpose.msra.mxu0 0
      %690 = vmatprep.subr.bf16.mxu0 0
      %691 = vmatpush1.bf16.xpose.msra.mxu0 %v667
      %692 = vmatprep.subr.bf16.mxu0 0
      %693 = vmatpush2.bf16.xpose.msra.mxu0 0
      %694 = vmatprep.subr.bf16.mxu0 0
      %695 = vmatpush2.bf16.xpose.msra.mxu0 0
      %696 = vmatprep.subr.bf16.mxu0 0
      %697 = vmatpush2.bf16.xpose.msra.mxu0 0
      %698 = vmatprep.subr.bf16.mxu0 0
      %699 = vmatpush2.bf16.xpose.msra.mxu0 0
      %700 = vmatprep.subr.bf16.mxu0 0
      %701 = vmatpush2.bf16.xpose.msra.mxu0 0
      %702 = vmatprep.subr.bf16.mxu0 0
      %703 = vmatpush2.bf16.xpose.msra.mxu0 0
      %704 = vmatprep.subr.bf16.mxu0 0
      %705 = vmatpush2.bf16.xpose.msra.mxu0 0
      %706 = vmatprep.subr.bf16.mxu0 0
      %707 = vmatpush2.bf16.xpose.msra.mxu0 0
      %708 = vmatprep.mubr.bf16.mxu0 0
      %709 = vmatmul.mubr.bf16.gmra.mxu0 %v675
      %v710 = vpop.f32.mrf.mxu0
      %v711 = vadd.f32 0.0, %v710
      %v712 = vpop.f32.mrf.mxu0
      %v713 = vpop.f32.mrf.mxu0
      %v714 = vadd.f32 0.0, %v713
      %v715 = vpop.f32.mrf.mxu0
      %716 = vdwg.mxu0
      %vm717 = vcmask 130048
      %v718 = vsel %vm717, %v711, -inf
      %719 = vmax.xlane.f32.xlu0 %v718
      %v720 = vpop.xlane.xlu0 %719
      %v721 = vsel %vm717, %v714, -inf
      %722 = vmax.xlane.f32.xlu0 %v721
      %v723 = vpop.xlane.xlu0 %722
      %v724 = vsub.f32 %v711, %v720
      %v725 = vsub.f32 %v714, %v723
      %v726 = vmul.f32 %v724, 1.442695
      %v727 = vpow.pop %v726
      %v728 = vmul.f32 %v725, 1.442695
      %v729 = vpow.pop %v728
      %v730 = vsel %vm717, %v727, 0.0
      %731 = vadd.xlane.f32.xlu0 %v730
      %v732 = vpop.xlane.xlu0 %731
      %v733 = vsel %vm717, %v729, 0.0
      %734 = vadd.xlane.f32.xlu0 %v733
      %v735 = vpop.xlane.xlu0 %734
      %v736 = vrcp.pop %v732
      %v737 = vrcp.pop %v735
      %v738 = vmul.f32 %v727, %v736
      %v739 = vmul.f32 %v729, %v737
      %v740 = vsel %vm672, %v661, 0.0
      %v741 = vsel %vm672, %v665, 0.0
      %v742 = vpack.c.bf16 %v741, %v740
      %v743 = vpack.c.bf16 %v739, %v738
      %vm744 = vcmp.ge.s32.totalorder %v669, 32
      %vm745 = vcmp.lt.s32.totalorder %v669, 64
      %vm746 = vmand %vm744, %vm745
      %v747 = vsel %vm746, %v508, 0.0
      %v748 = vsel %vm746, %v509, 0.0
      %v749 = vpack.c.bf16 %v748, %v747
      %750 = vmatprep.subr.bf16.mxu0 0
      %751 = vmatpush1.bf16.xpose.msra.mxu0 0
      %752 = vmatprep.subr.bf16.mxu0 0
      %753 = vmatpush1.bf16.xpose.msra.mxu0 0
      %754 = vmatprep.subr.bf16.mxu0 0
      %755 = vmatpush1.bf16.xpose.msra.mxu0 0
      %756 = vmatprep.subr.bf16.mxu0 0
      %757 = vmatpush1.bf16.xpose.msra.mxu0 0
      %758 = vmatprep.subr.bf16.mxu0 0
      %759 = vmatpush1.bf16.xpose.msra.mxu0 0
      %760 = vmatprep.subr.bf16.mxu0 0
      %761 = vmatpush1.bf16.xpose.msra.mxu0 0
      %762 = vmatprep.subr.bf16.mxu0 0
      %763 = vmatpush1.bf16.xpose.msra.mxu0 0
      %764 = vmatprep.subr.bf16.mxu0 0
      %765 = vmatpush1.bf16.xpose.msra.mxu0 %v667
      %766 = vmatprep.subr.bf16.mxu0 0
      %767 = vmatpush2.bf16.xpose.msra.mxu0 0
      %768 = vmatprep.subr.bf16.mxu0 0
      %769 = vmatpush2.bf16.xpose.msra.mxu0 0
      %770 = vmatprep.subr.bf16.mxu0 0
      %771 = vmatpush2.bf16.xpose.msra.mxu0 0
      %772 = vmatprep.subr.bf16.mxu0 0
      %773 = vmatpush2.bf16.xpose.msra.mxu0 0
      %774 = vmatprep.subr.bf16.mxu0 0
      %775 = vmatpush2.bf16.xpose.msra.mxu0 0
      %776 = vmatprep.subr.bf16.mxu0 0
      %777 = vmatpush2.bf16.xpose.msra.mxu0 0
      %778 = vmatprep.subr.bf16.mxu0 0
      %779 = vmatpush2.bf16.xpose.msra.mxu0 0
      %780 = vmatprep.subr.bf16.mxu0 0
      %781 = vmatpush2.bf16.xpose.msra.mxu0 0
      %782 = vmatprep.mubr.bf16.mxu0 0
      %783 = vmatmul.mubr.bf16.gmra.mxu0 %v749
      %v784 = vpop.f32.mrf.mxu0
      %v785 = vadd.f32 0.0, %v784
      %v786 = vpop.f32.mrf.mxu0
      %v787 = vpop.f32.mrf.mxu0
      %v788 = vadd.f32 0.0, %v787
      %v789 = vpop.f32.mrf.mxu0
      %790 = vdwg.mxu0
      %v791 = vsel %vm717, %v785, -inf
      %792 = vmax.xlane.f32.xlu0 %v791
      %v793 = vpop.xlane.xlu0 %792
      %v794 = vsel %vm717, %v788, -inf
      %795 = vmax.xlane.f32.xlu0 %v794
      %v796 = vpop.xlane.xlu0 %795
      %v797 = vsub.f32 %v785, %v793
      %v798 = vsub.f32 %v788, %v796
      %v799 = vmul.f32 %v797, 1.442695
      %v800 = vpow.pop %v799
      %v801 = vmul.f32 %v798, 1.442695
      %v802 = vpow.pop %v801
      %v803 = vsel %vm717, %v800, 0.0
      %804 = vadd.xlane.f32.xlu0 %v803
      %v805 = vpop.xlane.xlu0 %804
      %v806 = vsel %vm717, %v802, 0.0
      %807 = vadd.xlane.f32.xlu0 %v806
      %v808 = vpop.xlane.xlu0 %807
      %v809 = vrcp.pop %v805
      %v810 = vrcp.pop %v808
      %v811 = vmul.f32 %v800, %v809
      %v812 = vmul.f32 %v802, %v810
      %v813 = vsel %vm746, %v661, 0.0
      %v814 = vsel %vm746, %v665, 0.0
      %v815 = vpack.c.bf16 %v814, %v813
      %v816 = vpack.c.bf16 %v812, %v811
      %v818 = vsel %vm717, %v816, 0
      %820 = vmatprep.subr.bf16.mxu0 0
      %821 = vmatpush1.bf16.msra.mxu0 0
      %822 = vmatprep.subr.bf16.mxu0 0
      %823 = vmatpush1.bf16.msra.mxu0 0
      %824 = vmatprep.subr.bf16.mxu0 0
      %825 = vmatpush1.bf16.msra.mxu0 0
      %826 = vmatprep.subr.bf16.mxu0 0
      %827 = vmatpush1.bf16.msra.mxu0 0
      %828 = vmatprep.subr.bf16.mxu0 0
      %829 = vmatpush1.bf16.msra.mxu0 0
      %830 = vmatprep.subr.bf16.mxu0 0
      %831 = vmatpush1.bf16.msra.mxu0 0
      %832 = vmatprep.subr.bf16.mxu0 0
      %833 = vmatpush1.bf16.msra.mxu0 0
      %834 = vmatprep.subr.bf16.mxu0 0
      %835 = vmatpush1.bf16.msra.mxu0 %v815
      %836 = vmatprep.subr.bf16.mxu0 0
      %837 = vmatpush2.bf16.msra.mxu0 0
      %838 = vmatprep.subr.bf16.mxu0 0
      %839 = vmatpush2.bf16.msra.mxu0 0
      %840 = vmatprep.subr.bf16.mxu0 0
      %841 = vmatpush2.bf16.msra.mxu0 0
      %842 = vmatprep.subr.bf16.mxu0 0
      %843 = vmatpush2.bf16.msra.mxu0 0
      %844 = vmatprep.subr.bf16.mxu0 0
      %845 = vmatpush2.bf16.msra.mxu0 0
      %846 = vmatprep.subr.bf16.mxu0 0
      %847 = vmatpush2.bf16.msra.mxu0 0
      %848 = vmatprep.subr.bf16.mxu0 0
      %849 = vmatpush2.bf16.msra.mxu0 0
      %850 = vmatprep.subr.bf16.mxu0 0
      %851 = vmatpush2.bf16.msra.mxu0 0
      %852 = vmatprep.mubr.bf16.mxu0 0
      %853 = vmatmul.mubr.bf16.gmra.mxu0 %v818
      %v854 = vpop.f32.mrf.mxu0
      %v855 = vadd.f32 0.0, %v854
      %v856 = vpop.f32.mrf.mxu0
      %v857 = vpop.f32.mrf.mxu0
      %v858 = vadd.f32 0.0, %v857
      %v859 = vpop.f32.mrf.mxu0
      %860 = vdwg.mxu0
      %v862 = vsel %vm717, %v743, 0
      %864 = vmatprep.subr.bf16.mxu0 0
      %865 = vmatpush1.bf16.msra.mxu0 0
      %866 = vmatprep.subr.bf16.mxu0 0
      %867 = vmatpush1.bf16.msra.mxu0 0
      %868 = vmatprep.subr.bf16.mxu0 0
      %869 = vmatpush1.bf16.msra.mxu0 0
      %870 = vmatprep.subr.bf16.mxu0 0
      %871 = vmatpush1.bf16.msra.mxu0 0
      %872 = vmatprep.subr.bf16.mxu0 0
      %873 = vmatpush1.bf16.msra.mxu0 0
      %874 = vmatprep.subr.bf16.mxu0 0
      %875 = vmatpush1.bf16.msra.mxu0 0
      %876 = vmatprep.subr.bf16.mxu0 0
      %877 = vmatpush1.bf16.msra.mxu0 0
      %878 = vmatprep.subr.bf16.mxu0 0
      %879 = vmatpush1.bf16.msra.mxu0 %v742
      %880 = vmatprep.subr.bf16.mxu0 0
      %881 = vmatpush2.bf16.msra.mxu0 0
      %882 = vmatprep.subr.bf16.mxu0 0
      %883 = vmatpush2.bf16.msra.mxu0 0
      %884 = vmatprep.subr.bf16.mxu0 0
      %885 = vmatpush2.bf16.msra.mxu0 0
      %886 = vmatprep.subr.bf16.mxu0 0
      %887 = vmatpush2.bf16.msra.mxu0 0
      %888 = vmatprep.subr.bf16.mxu0 0
      %889 = vmatpush2.bf16.msra.mxu0 0
      %890 = vmatprep.subr.bf16.mxu0 0
      %891 = vmatpush2.bf16.msra.mxu0 0
      %892 = vmatprep.subr.bf16.mxu0 0
      %893 = vmatpush2.bf16.msra.mxu0 0
      %894 = vmatprep.subr.bf16.mxu0 0
      %895 = vmatpush2.bf16.msra.mxu0 0
      %896 = vmatprep.mubr.bf16.mxu0 0
      %897 = vmatmul.mubr.bf16.gmra.mxu0 %v862
      %v898 = vpop.f32.mrf.mxu0
      %v899 = vadd.f32 %v855, %v898
      %v900 = vpop.f32.mrf.mxu0
      %v901 = vpop.f32.mrf.mxu0
      %v902 = vadd.f32 %v858, %v901
      %v903 = vpop.f32.mrf.mxu0
      %904 = vdwg.mxu0
      %vm905 = vcmp.ge.s32.totalorder %v669, 64
      %vm906 = vcmp.lt.s32.totalorder %v669, 96
      %vm907 = vmand %vm905, %vm906
      %v908 = vsel %vm907, %v508, 0.0
      %v909 = vsel %vm907, %v509, 0.0
      %v910 = vpack.c.bf16 %v909, %v908
      %911 = vmatprep.subr.bf16.mxu0 0
      %912 = vmatpush1.bf16.xpose.msra.mxu0 0
      %913 = vmatprep.subr.bf16.mxu0 0
      %914 = vmatpush1.bf16.xpose.msra.mxu0 0
      %915 = vmatprep.subr.bf16.mxu0 0
      %916 = vmatpush1.bf16.xpose.msra.mxu0 0
      %917 = vmatprep.subr.bf16.mxu0 0
      %918 = vmatpush1.bf16.xpose.msra.mxu0 0
      %919 = vmatprep.subr.bf16.mxu0 0
      %920 = vmatpush1.bf16.xpose.msra.mxu0 0
      %921 = vmatprep.subr.bf16.mxu0 0
      %922 = vmatpush1.bf16.xpose.msra.mxu0 0
      %923 = vmatprep.subr.bf16.mxu0 0
      %924 = vmatpush1.bf16.xpose.msra.mxu0 0
      %925 = vmatprep.subr.bf16.mxu0 0
      %926 = vmatpush1.bf16.xpose.msra.mxu0 %v667
      %927 = vmatprep.subr.bf16.mxu0 0
      %928 = vmatpush2.bf16.xpose.msra.mxu0 0
      %929 = vmatprep.subr.bf16.mxu0 0
      %930 = vmatpush2.bf16.xpose.msra.mxu0 0
      %931 = vmatprep.subr.bf16.mxu0 0
      %932 = vmatpush2.bf16.xpose.msra.mxu0 0
      %933 = vmatprep.subr.bf16.mxu0 0
      %934 = vmatpush2.bf16.xpose.msra.mxu0 0
      %935 = vmatprep.subr.bf16.mxu0 0
      %936 = vmatpush2.bf16.xpose.msra.mxu0 0
      %937 = vmatprep.subr.bf16.mxu0 0
      %938 = vmatpush2.bf16.xpose.msra.mxu0 0
      %939 = vmatprep.subr.bf16.mxu0 0
      %940 = vmatpush2.bf16.xpose.msra.mxu0 0
      %941 = vmatprep.subr.bf16.mxu0 0
      %942 = vmatpush2.bf16.xpose.msra.mxu0 0
      %943 = vmatprep.mubr.bf16.mxu0 0
      %944 = vmatmul.mubr.bf16.gmra.mxu0 %v910
      %v945 = vpop.f32.mrf.mxu0
      %v946 = vadd.f32 0.0, %v945
      %v947 = vpop.f32.mrf.mxu0
      %v948 = vpop.f32.mrf.mxu0
      %v949 = vadd.f32 0.0, %v948
      %v950 = vpop.f32.mrf.mxu0
      %951 = vdwg.mxu0
      %v952 = vsel %vm717, %v946, -inf
      %953 = vmax.xlane.f32.xlu0 %v952
      %v954 = vpop.xlane.xlu0 %953
      %v955 = vsel %vm717, %v949, -inf
      %956 = vmax.xlane.f32.xlu0 %v955
      %v957 = vpop.xlane.xlu0 %956
      %v958 = vsub.f32 %v946, %v954
      %v959 = vsub.f32 %v949, %v957
      %v960 = vmul.f32 %v958, 1.442695
      %v961 = vpow.pop %v960
      %v962 = vmul.f32 %v959, 1.442695
      %v963 = vpow.pop %v962
      %v964 = vsel %vm717, %v961, 0.0
      %965 = vadd.xlane.f32.xlu0 %v964
      %v966 = vpop.xlane.xlu0 %965
      %v967 = vsel %vm717, %v963, 0.0
      %968 = vadd.xlane.f32.xlu0 %v967
      %v969 = vpop.xlane.xlu0 %968
      %v970 = vrcp.pop %v966
      %v971 = vrcp.pop %v969
      %v972 = vmul.f32 %v961, %v970
      %v973 = vmul.f32 %v963, %v971
      %v974 = vsel %vm907, %v661, 0.0
      %v975 = vsel %vm907, %v665, 0.0
      %v976 = vpack.c.bf16 %v975, %v974
      %v977 = vpack.c.bf16 %v973, %v972
      %v979 = vsel %vm717, %v977, 0
      %981 = vmatprep.subr.bf16.mxu0 0
      %982 = vmatpush1.bf16.msra.mxu0 0
      %983 = vmatprep.subr.bf16.mxu0 0
      %984 = vmatpush1.bf16.msra.mxu0 0
      %985 = vmatprep.subr.bf16.mxu0 0
      %986 = vmatpush1.bf16.msra.mxu0 0
      %987 = vmatprep.subr.bf16.mxu0 0
      %988 = vmatpush1.bf16.msra.mxu0 0
      %989 = vmatprep.subr.bf16.mxu0 0
      %990 = vmatpush1.bf16.msra.mxu0 0
      %991 = vmatprep.subr.bf16.mxu0 0
      %992 = vmatpush1.bf16.msra.mxu0 0
      %993 = vmatprep.subr.bf16.mxu0 0
      %994 = vmatpush1.bf16.msra.mxu0 0
      %995 = vmatprep.subr.bf16.mxu0 0
      %996 = vmatpush1.bf16.msra.mxu0 %v976
      %997 = vmatprep.subr.bf16.mxu0 0
      %998 = vmatpush2.bf16.msra.mxu0 0
      %999 = vmatprep.subr.bf16.mxu0 0
      %1000 = vmatpush2.bf16.msra.mxu0 0
      %1001 = vmatprep.subr.bf16.mxu0 0
      %1002 = vmatpush2.bf16.msra.mxu0 0
      %1003 = vmatprep.subr.bf16.mxu0 0
      %1004 = vmatpush2.bf16.msra.mxu0 0
      %1005 = vmatprep.subr.bf16.mxu0 0
      %1006 = vmatpush2.bf16.msra.mxu0 0
      %1007 = vmatprep.subr.bf16.mxu0 0
      %1008 = vmatpush2.bf16.msra.mxu0 0
      %1009 = vmatprep.subr.bf16.mxu0 0
      %1010 = vmatpush2.bf16.msra.mxu0 0
      %1011 = vmatprep.subr.bf16.mxu0 0
      %1012 = vmatpush2.bf16.msra.mxu0 0
      %1013 = vmatprep.mubr.bf16.mxu0 0
      %1014 = vmatmul.mubr.bf16.gmra.mxu0 %v979
      %v1015 = vpop.f32.mrf.mxu0
      %v1016 = vadd.f32 0.0, %v1015
      %v1017 = vpop.f32.mrf.mxu0
      %v1018 = vpop.f32.mrf.mxu0
      %v1019 = vadd.f32 0.0, %v1018
      %v1020 = vpop.f32.mrf.mxu0
      %1021 = vdwg.mxu0
      %v1022 = vadd.f32 %v899, %v1016
      %v1023 = vadd.f32 %v902, %v1019
      %vm1024 = vcmp.ge.s32.totalorder %v669, 96
      %vm1025 = vcmp.lt.s32.totalorder %v669, 128
      %vm1026 = vmand %vm1024, %vm1025
      %v1027 = vsel %vm1026, %v508, 0.0
      %v1028 = vsel %vm1026, %v509, 0.0
      %v1029 = vpack.c.bf16 %v1028, %v1027
      %1030 = vmatprep.subr.bf16.mxu0 0
      %1031 = vmatpush1.bf16.xpose.msra.mxu0 0
      %1032 = vmatprep.subr.bf16.mxu0 0
      %1033 = vmatpush1.bf16.xpose.msra.mxu0 0
      %1034 = vmatprep.subr.bf16.mxu0 0
      %1035 = vmatpush1.bf16.xpose.msra.mxu0 0
      %1036 = vmatprep.subr.bf16.mxu0 0
      %1037 = vmatpush1.bf16.xpose.msra.mxu0 0
      %1038 = vmatprep.subr.bf16.mxu0 0
      %1039 = vmatpush1.bf16.xpose.msra.mxu0 0
      %1040 = vmatprep.subr.bf16.mxu0 0
      %1041 = vmatpush1.bf16.xpose.msra.mxu0 0
      %1042 = vmatprep.subr.bf16.mxu0 0
      %1043 = vmatpush1.bf16.xpose.msra.mxu0 0
      %1044 = vmatprep.subr.bf16.mxu0 0
      %1045 = vmatpush1.bf16.xpose.msra.mxu0 %v667
      %1046 = vmatprep.subr.bf16.mxu0 0
      %1047 = vmatpush2.bf16.xpose.msra.mxu0 0
      %1048 = vmatprep.subr.bf16.mxu0 0
      %1049 = vmatpush2.bf16.xpose.msra.mxu0 0
      %1050 = vmatprep.subr.bf16.mxu0 0
      %1051 = vmatpush2.bf16.xpose.msra.mxu0 0
      %1052 = vmatprep.subr.bf16.mxu0 0
      %1053 = vmatpush2.bf16.xpose.msra.mxu0 0
      %1054 = vmatprep.subr.bf16.mxu0 0
      %1055 = vmatpush2.bf16.xpose.msra.mxu0 0
      %1056 = vmatprep.subr.bf16.mxu0 0
      %1057 = vmatpush2.bf16.xpose.msra.mxu0 0
      %1058 = vmatprep.subr.bf16.mxu0 0
      %1059 = vmatpush2.bf16.xpose.msra.mxu0 0
      %1060 = vmatprep.subr.bf16.mxu0 0
      %1061 = vmatpush2.bf16.xpose.msra.mxu0 0
      %1062 = vmatprep.mubr.bf16.mxu0 0
      %1063 = vmatmul.mubr.bf16.gmra.mxu0 %v1029
      %v1064 = vpop.f32.mrf.mxu0
      %v1065 = vadd.f32 0.0, %v1064
      %v1066 = vpop.f32.mrf.mxu0
      %v1067 = vpop.f32.mrf.mxu0
      %v1068 = vadd.f32 0.0, %v1067
      %v1069 = vpop.f32.mrf.mxu0
      %1070 = vdwg.mxu0
      %v1071 = vsel %vm717, %v1065, -inf
      %1072 = vmax.xlane.f32.xlu0 %v1071
      %v1073 = vpop.xlane.xlu0 %1072
      %v1074 = vsel %vm717, %v1068, -inf
      %1075 = vmax.xlane.f32.xlu0 %v1074
      %v1076 = vpop.xlane.xlu0 %1075
      %v1077 = vsub.f32 %v1065, %v1073
      %v1078 = vsub.f32 %v1068, %v1076
      %v1079 = vmul.f32 %v1077, 1.442695
      %v1080 = vpow.pop %v1079
      %v1081 = vmul.f32 %v1078, 1.442695
      %v1082 = vpow.pop %v1081
      %v1083 = vsel %vm717, %v1080, 0.0
      %1084 = vadd.xlane.f32.xlu0 %v1083
      %v1085 = vpop.xlane.xlu0 %1084
      %v1086 = vsel %vm717, %v1082, 0.0
      %1087 = vadd.xlane.f32.xlu0 %v1086
      %v1088 = vpop.xlane.xlu0 %1087
      %v1089 = vrcp.pop %v1085
      %v1090 = vrcp.pop %v1088
      %v1091 = vmul.f32 %v1080, %v1089
      %v1092 = vmul.f32 %v1082, %v1090
      %v1093 = vsel %vm1026, %v661, 0.0
      %v1094 = vsel %vm1026, %v665, 0.0
      %v1095 = vpack.c.bf16 %v1094, %v1093
      %v1096 = vpack.c.bf16 %v1092, %v1091
      %v1098 = vsel %vm717, %v1096, 0
      %1100 = vmatprep.subr.bf16.mxu0 0
      %1101 = vmatpush1.bf16.msra.mxu0 0
      %1102 = vmatprep.subr.bf16.mxu0 0
      %1103 = vmatpush1.bf16.msra.mxu0 0
      %1104 = vmatprep.subr.bf16.mxu0 0
      %1105 = vmatpush1.bf16.msra.mxu0 0
      %1106 = vmatprep.subr.bf16.mxu0 0
      %1107 = vmatpush1.bf16.msra.mxu0 0
      %1108 = vmatprep.subr.bf16.mxu0 0
      %1109 = vmatpush1.bf16.msra.mxu0 0
      %1110 = vmatprep.subr.bf16.mxu0 0
      %1111 = vmatpush1.bf16.msra.mxu0 0
      %1112 = vmatprep.subr.bf16.mxu0 0
      %1113 = vmatpush1.bf16.msra.mxu0 0
      %1114 = vmatprep.subr.bf16.mxu0 0
      %1115 = vmatpush1.bf16.msra.mxu0 %v1095
      %1116 = vmatprep.subr.bf16.mxu0 0
      %1117 = vmatpush2.bf16.msra.mxu0 0
      %1118 = vmatprep.subr.bf16.mxu0 0
      %1119 = vmatpush2.bf16.msra.mxu0 0
      %1120 = vmatprep.subr.bf16.mxu0 0
      %1121 = vmatpush2.bf16.msra.mxu0 0
      %1122 = vmatprep.subr.bf16.mxu0 0
      %1123 = vmatpush2.bf16.msra.mxu0 0
      %1124 = vmatprep.subr.bf16.mxu0 0
      %1125 = vmatpush2.bf16.msra.mxu0 0
      %1126 = vmatprep.subr.bf16.mxu0 0
      %1127 = vmatpush2.bf16.msra.mxu0 0
      %1128 = vmatprep.subr.bf16.mxu0 0
      %1129 = vmatpush2.bf16.msra.mxu0 0
      %1130 = vmatprep.subr.bf16.mxu0 0
      %1131 = vmatpush2.bf16.msra.mxu0 0
      %1132 = vmatprep.mubr.bf16.mxu0 0
      %1133 = vmatmul.mubr.bf16.gmra.mxu0 %v1098
      %v1134 = vpop.f32.mrf.mxu0
      %v1135 = vadd.f32 0.0, %v1134
      %v1136 = vpop.f32.mrf.mxu0
      %v1137 = vpop.f32.mrf.mxu0
      %v1138 = vadd.f32 0.0, %v1137
      %v1139 = vpop.f32.mrf.mxu0
      %1140 = vdwg.mxu0
      %v1141 = vadd.f32 %v1022, %v1135
      %v1142 = vadd.f32 %v1023, %v1138
      %v1143 = vpack.c.bf16 %v1142, %v1141
      %v1144 = vld [vmem:[%s6] sm:$0xf]
      %v1145 = vld [vmem:[%s6 + $0x4] sm:$0xf]
      %v1146 = vld [vmem:[%s6 + $0x8] sm:$0xf]
      %v1147 = vld [vmem:[%s6 + $0xc] sm:$0xf]
      %v1148 = vld [vmem:[%s6 + $0x10] sm:$0xf]
      %v1149 = vld [vmem:[%s6 + $0x14] sm:$0xf]
      %v1150 = vld [vmem:[%s6 + $0x18] sm:$0xf]
      %v1151 = vld [vmem:[%s6 + $0x1c] sm:$0xf]
      %v1152 = vld [vmem:[%s6 + $0x20] sm:$0xf]
      %v1153 = vld [vmem:[%s6 + $0x24] sm:$0xf]
      %v1154 = vld [vmem:[%s6 + $0x28] sm:$0xf]
      %v1155 = vld [vmem:[%s6 + $0x2c] sm:$0xf]
      %v1156 = vld [vmem:[%s6 + $0x30] sm:$0xf]
      %v1157 = vld [vmem:[%s6 + $0x34] sm:$0xf]
      %v1158 = vld [vmem:[%s6 + $0x38] sm:$0xf]
      %v1159 = vld [vmem:[%s6 + $0x3c] sm:$0xf]
      %v1160 = vld [vmem:[%s7] sm:$0x1]
      %v1162 = vlaneseq
      %v1163 = vshrl.u32 %v1162, 7
      %v1164 = vsub.s32 0, %v1163
      %v1165 = vrot.slane %v1160, %v1164
      %v1183 = vunpack.c.l.b16 %v1144
      %v1184 = vunpack.c.l.b16 %v1145
      %v1185 = vunpack.c.l.b16 %v1146
      %v1186 = vunpack.c.l.b16 %v1147
      %v1187 = vunpack.c.l.b16 %v1148
      %v1188 = vunpack.c.l.b16 %v1149
      %v1189 = vunpack.c.l.b16 %v1150
      %v1190 = vunpack.c.l.b16 %v1151
      %v1191 = vunpack.c.l.b16 %v1152
      %v1192 = vunpack.c.l.b16 %v1153
      %v1193 = vunpack.c.l.b16 %v1154
      %v1194 = vunpack.c.l.b16 %v1155
      %v1195 = vunpack.c.l.b16 %v1156
      %v1196 = vunpack.c.l.b16 %v1157
      %v1197 = vunpack.c.l.b16 %v1158
      %v1198 = vunpack.c.l.b16 %v1159
      %v1199 = vpack.c.b16 %v1184, %v1183
      %v1200 = vpack.c.b16 %v1186, %v1185
      %v1201 = vpack.c.b16 %v1188, %v1187
      %v1202 = vpack.c.b16 %v1190, %v1189
      %v1203 = vpack.c.b16 %v1192, %v1191
      %v1204 = vpack.c.b16 %v1194, %v1193
      %v1205 = vpack.c.b16 %v1196, %v1195
      %v1206 = vpack.c.b16 %v1198, %v1197
      %1215 = vmatprep.subr.bf16.mxu0 0
      %1216 = vmatpush1.bf16.msra.mxu0 %v1206
      %1217 = vmatprep.subr.bf16.mxu0 0
      %1218 = vmatpush1.bf16.msra.mxu0 %v1205
      %1219 = vmatprep.subr.bf16.mxu0 0
      %1220 = vmatpush1.bf16.msra.mxu0 %v1204
      %1221 = vmatprep.subr.bf16.mxu0 0
      %1222 = vmatpush1.bf16.msra.mxu0 %v1203
      %1223 = vmatprep.subr.bf16.mxu0 0
      %1224 = vmatpush1.bf16.msra.mxu0 %v1202
      %1225 = vmatprep.subr.bf16.mxu0 0
      %1226 = vmatpush1.bf16.msra.mxu0 %v1201
      %1227 = vmatprep.subr.bf16.mxu0 0
      %1228 = vmatpush1.bf16.msra.mxu0 %v1200
      %1229 = vmatprep.subr.bf16.mxu0 0
      %1230 = vmatpush1.bf16.msra.mxu0 %v1199
      %1231 = vmatprep.subr.bf16.mxu0 0
      %1232 = vmatpush2.bf16.msra.mxu0 0
      %1233 = vmatprep.subr.bf16.mxu0 0
      %1234 = vmatpush2.bf16.msra.mxu0 0
      %1235 = vmatprep.subr.bf16.mxu0 0
      %1236 = vmatpush2.bf16.msra.mxu0 0
      %1237 = vmatprep.subr.bf16.mxu0 0
      %1238 = vmatpush2.bf16.msra.mxu0 0
      %1239 = vmatprep.subr.bf16.mxu0 0
      %1240 = vmatpush2.bf16.msra.mxu0 0
      %1241 = vmatprep.subr.bf16.mxu0 0
      %1242 = vmatpush2.bf16.msra.mxu0 0
      %1243 = vmatprep.subr.bf16.mxu0 0
      %1244 = vmatpush2.bf16.msra.mxu0 0
      %1245 = vmatprep.subr.bf16.mxu0 0
      %1246 = vmatpush2.bf16.msra.mxu0 0
      %1247 = vmatprep.mubr.bf16.mxu0 0
      %1248 = vmatmul.mubr.bf16.gmra.mxu0 %v1143
      %v1249 = vpop.f32.mrf.mxu0
      %v1250 = vadd.f32 %v1165, %v1249
      %v1251 = vpop.f32.mrf.mxu0
      %v1252 = vpop.f32.mrf.mxu0
      %v1253 = vadd.f32 %v1165, %v1252
      %v1254 = vpop.f32.mrf.mxu0
      %1255 = vdwg.mxu0
      %v1256 = vunpack.c.l.bf16 %v386
      %v1257 = vunpack.c.l.bf16 %v387
      %v1258 = vadd.f32 %v1250, %v1256
      %v1259 = vadd.f32 %v1253, %v1257
      %v1260 = vld [vmem:[%s8] sm:$0x1]
      %v1261 = vld [vmem:[%s9] sm:$0x1]
      %1262 = vadd.xlane.f32.xlu0 %v1258
      %v1263 = vpop.xlane.xlu0 %1262
      %1264 = vadd.xlane.f32.xlu0 %v1259
      %v1265 = vpop.xlane.xlu0 %1264
      %v1266 = vrcp.pop 128.0
      %v1267 = vmul.f32 %v1263, %v1266
      %v1268 = vmul.f32 %v1265, %v1266
      %v1269 = vsub.f32 %v1258, %v1267
      %v1270 = vsub.f32 %v1259, %v1268
      %v1271 = vmul.f32 %v1269, %v1269
      %v1272 = vmul.f32 %v1270, %v1270
      %1273 = vadd.xlane.f32.xlu0 %v1271
      %v1274 = vpop.xlane.xlu0 %1273
      %1275 = vadd.xlane.f32.xlu0 %v1272
      %v1276 = vpop.xlane.xlu0 %1275
      %v1277 = vmul.f32 %v1274, %v1266
      %v1278 = vmul.f32 %v1276, %v1266
      %v1279 = vadd.f32 %v1277, 1e-05
      %v1280 = vadd.f32 %v1278, 1e-05
      %v1281 = vrsqrt.pop %v1279
      %v1282 = vrsqrt.pop %v1280
      %v1283 = vmul.f32 %v1269, %v1281
      %v1284 = vmul.f32 %v1270, %v1282
      %v1286 = vlaneseq
      %v1287 = vshrl.u32 %v1286, 7
      %v1288 = vsub.s32 0, %v1287
      %v1289 = vrot.slane %v1260, %v1288
      %v1291 = vmul.f32 %v1283, %v1289
      %v1292 = vmul.f32 %v1284, %v1289
      %v1294 = vlaneseq
      %v1295 = vshrl.u32 %v1294, 7
      %v1296 = vsub.s32 0, %v1295
      %v1297 = vrot.slane %v1261, %v1296
      %v1299 = vadd.f32 %v1291, %v1297
      %v1300 = vadd.f32 %v1292, %v1297
      %v1301 = vpack.c.bf16 %v1300, %v1299
      %v1303 = vunpack.c.l.b16 %v1301
      %v1304 = vunpack.c.h.b16 %v1301
      %v1305 = vpack.c.b16 %v1303, %v1303
      %v1306 = vpack.c.b16 %v1304, %v1304
      %1309 = vst [vmem:[%s383] sm:$0xf] %v1305
      %1310 = vst [vmem:[%s383 + $0x4] sm:$0xf] %v1306
      %s1311 = smul.u32 2, %s21
      %p1312 = scmp.lt.s32.totalorder %s1311, 3
      %s1313 = scalar_select %p1312, %s1311, 3
      %s1314 = smul.addr %s1313, 4
      %s1315 = scalar_lea.vmem %s10, %s1314
      // Predicated region
      $region61: #{decoder_forward.8} parent=59 // pred_check
        %p1316 = pneg %p259
      $region62: #{decoder_forward.8} parent=59 // pred_check_branch
        %1318 = sbr.rel (%p1316) target = $region64
      $region63: #{decoder_forward.8} parent=59 // pred_region
        %s1319 = smul.u32 2, %s21
      $region64: #{decoder_forward.8} parent=59 // pred_fallthru
        _
    $region60: #{decoder_forward.8} parent=5 // pred_fallthru
      _
    %p1320 = scmp.le.s32.totalorder 2, %s16
    // Predicated region
    $region65: #{decoder_forward.8} parent=5 // pred_check
      %p1321 = pneg %p1320
    $region66: #{decoder_forward.8} parent=5 // pred_check_branch
      %1323 = sbr.rel (%p1321) target = $region68
    $region67: #{decoder_forward.8} parent=5 // pred_region
      %s1324 = ssub.s32 %s16, 2
      // Predicated region
      $region69: #{decoder_forward.8} parent=67 // pred_check
        %p1325 = pneg %p265
      $region70: #{decoder_forward.8} parent=67 // pred_check_branch
        %1327 = sbr.rel (%p1325) target = $region72
      $region71: #{decoder_forward.8} parent=67 // pred_region
        %s1328 = smul.u32 2, %s22
        %p1329 = scmp.lt.s32.totalorder %s1328, 3
        %s1330 = scalar_select %p1329, %s1328, 3
        %s1331 = smul.addr %s1330, 4
        %s1332 = scalar_lea.vmem %s10, %s1331
      $region72: #{decoder_forward.8} parent=67 // pred_fallthru
        _
    $region68: #{decoder_forward.8} parent=5 // pred_fallthru
      _
  $region6: #{decoder_forward.8} parent=0 // loop_footer
    %s20 = sadd.s32 1, %s16
  $region7: #{decoder_forward.8} parent=0 // loop_footer_branch
    %15 = sbr.rel target = $region3
  $region8: #{decoder_forward.8} parent=0 // loop_exit
    _

// kernel: decoder_forward.7
$region0: #{decoder_forward.7}
  #allocation0 [shape = 'u32[]', space=smem, size = 0x4, offset = 0x4, fixed_abs, tag = 'smem constant byte address 0x4 - core index']
  #allocation1 [shape = 'u32[144,128]{1,0:T(1,128)}', space=vmem, size = 0x12000, scoped, tag = 'internal scratch']
  %s0 = inlined_call_operand.vmem [shape: bf16[32,128], index: 0, kind: input, shape index: {}]
  %s1 = inlined_call_operand.vmem [shape: bf16[128,384], index: 1, kind: input, shape index: {}]
  %s2 = inlined_call_operand.vmem [shape: f32[1,384], index: 2, kind: input, shape index: {}]
  %s3 = inlined_call_operand.vmem [shape: bf16[128,128], index: 3, kind: input, shape index: {}]
  %s4 = inlined_call_operand.vmem [shape: f32[1,128], index: 4, kind: input, shape index: {}]
  %s5 = inlined_call_operand.vmem [shape: f32[1,128], index: 5, kind: input, shape index: {}]
  %s6 = inlined_call_operand.vmem [shape: f32[1,128], index: 6, kind: input, shape index: {}]
  %s7 = inlined_call_operand.vmem [shape: bf16[32,128], index: 7, kind: output, shape index: {}]
  %s8 = sld [smem:[#allocation0]]
  $region61: #{decoder_forward.7} parent=0
    _
  %s10 = ssub.s32 1, %s8
  %s11 = scalar_select 0, %s10, %s8
  loop: start=0, step=1, limit=4
  $region2: #{decoder_forward.7} parent=0 // loop_pre_header
    _
  $region3: #{decoder_forward.7} parent=0 // loop_header
    %s13 = sphi 0, %s17
    %p14 = scmp.ge.s32.totalorder %s13, 4
    %s23 = sphi 0, %s25
    %s26 = sphi 0, %s23
    %s27 = sphi 0, %s26
    %s43 = sphi 0, %s27
    %s47 = sphi 0, %s47
    %s49 = sphi 0, %s47
    %s50 = sphi 0, %s49
    %s64 = sphi 0, %s50
    %s68 = sphi 0, %s68
    %s70 = sphi 0, %s68
    %s71 = sphi 0, %s70
    %s85 = sphi 0, %s71
    %s89 = sphi 0, %s89
    %s91 = sphi 0, %s89
    %s92 = sphi 0, %s91
    %s106 = sphi 0, %s92
    %s110 = sphi 0, %s110
    %s112 = sphi 0, %s110
    %s113 = sphi 0, %s112
    %s127 = sphi 0, %s113
    %s131 = sphi 0, %s131
    %s133 = sphi 0, %s131
    %s134 = sphi 0, %s133
    %s148 = sphi 0, %s134
    %s152 = sphi 0, %s152
    %s154 = sphi 0, %s152
    %s155 = sphi 0, %s154
    %s169 = sphi 0, %s155
    %s175 = sphi 0, %s177
    %s178 = sphi 0, %s175
    %s179 = sphi 0, %s178
    %s195 = sphi 0, %s179
  $region4: #{decoder_forward.7} parent=0 // loop_header_branch
    %16 = sbr.rel (%p14) target = $region8
  $region5: #{decoder_forward.7} parent=0 // loop_body
    %s18 = ssub.s32 %s13, 1
    %s19 = ssub.s32 %s13, 2
    %s20 = sadd.s32 %s13, 1
    %s21 = ssub.s32 %s13, %s20
    %p22 = scmp.eq.s32.totalorder %s21, 0
    %s24 = sadd.s32 %s23, 1
    %s25 = scalar_select %p22, %s23, %s24
    %p28 = pneg %p22
    %p29 = scmp.eq.s32.totalorder %s13, 1
    %p30 = por %p28, %p29
    %p31 = scmp.ne.s32.totalorder %s23, %s26
    %p32 = scmp.eq.s32.totalorder %s13, 0
    %p33 = por %p31, %p32
    %p34 = scmp.ne.s32.totalorder %s23, %s26
    %p35 = scmp.eq.s32.totalorder %s18, 1
    %p36 = por %p34, %p35
    %p37 = scmp.ne.s32.totalorder %s26, %s27
    %p38 = scmp.eq.s32.totalorder %s18, 0
    %p39 = por %p37, %p38
    %p40 = scmp.ne.s32.totalorder %s26, %s27
    %p41 = scmp.eq.s32.totalorder %s19, 1
    %p42 = por %p40, %p41
    %p44 = scmp.ne.s32.totalorder %s27, %s43
    %p45 = scmp.eq.s32.totalorder %s19, 0
    %p46 = por %p44, %p45
    %s48 = sadd.s32 %s47, 1
    %p51 = scmp.eq.s32.totalorder %s13, 1
    %p52 = scmp.ne.s32.totalorder %s47, %s49
    %p53 = scmp.eq.s32.totalorder %s13, 0
    %p54 = por %p52, %p53
    %p55 = scmp.ne.s32.totalorder %s47, %s49
    %p56 = scmp.eq.s32.totalorder %s18, 1
    %p57 = por %p55, %p56
    %p58 = scmp.ne.s32.totalorder %s49, %s50
    %p59 = scmp.eq.s32.totalorder %s18, 0
    %p60 = por %p58, %p59
    %p61 = scmp.ne.s32.totalorder %s49, %s50
    %p62 = scmp.eq.s32.totalorder %s19, 1
    %p63 = por %p61, %p62
    %p65 = scmp.ne.s32.totalorder %s50, %s64
    %p66 = scmp.eq.s32.totalorder %s19, 0
    %p67 = por %p65, %p66
    %s69 = sadd.s32 %s68, 1
    %p72 = scmp.eq.s32.totalorder %s13, 1
    %p73 = scmp.ne.s32.totalorder %s68, %s70
    %p74 = scmp.eq.s32.totalorder %s13, 0
    %p75 = por %p73, %p74
    %p76 = scmp.ne.s32.totalorder %s68, %s70
    %p77 = scmp.eq.s32.totalorder %s18, 1
    %p78 = por %p76, %p77
    %p79 = scmp.ne.s32.totalorder %s70, %s71
    %p80 = scmp.eq.s32.totalorder %s18, 0
    %p81 = por %p79, %p80
    %p82 = scmp.ne.s32.totalorder %s70, %s71
    %p83 = scmp.eq.s32.totalorder %s19, 1
    %p84 = por %p82, %p83
    %p86 = scmp.ne.s32.totalorder %s71, %s85
    %p87 = scmp.eq.s32.totalorder %s19, 0
    %p88 = por %p86, %p87
    %s90 = sadd.s32 %s89, 1
    %p93 = scmp.eq.s32.totalorder %s13, 1
    %p94 = scmp.ne.s32.totalorder %s89, %s91
    %p95 = scmp.eq.s32.totalorder %s13, 0
    %p96 = por %p94, %p95
    %p97 = scmp.ne.s32.totalorder %s89, %s91
    %p98 = scmp.eq.s32.totalorder %s18, 1
    %p99 = por %p97, %p98
    %p100 = scmp.ne.s32.totalorder %s91, %s92
    %p101 = scmp.eq.s32.totalorder %s18, 0
    %p102 = por %p100, %p101
    %p103 = scmp.ne.s32.totalorder %s91, %s92
    %p104 = scmp.eq.s32.totalorder %s19, 1
    %p105 = por %p103, %p104
    %p107 = scmp.ne.s32.totalorder %s92, %s106
    %p108 = scmp.eq.s32.totalorder %s19, 0
    %p109 = por %p107, %p108
    %s111 = sadd.s32 %s110, 1
    %p114 = scmp.eq.s32.totalorder %s13, 1
    %p115 = scmp.ne.s32.totalorder %s110, %s112
    %p116 = scmp.eq.s32.totalorder %s13, 0
    %p117 = por %p115, %p116
    %p118 = scmp.ne.s32.totalorder %s110, %s112
    %p119 = scmp.eq.s32.totalorder %s18, 1
    %p120 = por %p118, %p119
    %p121 = scmp.ne.s32.totalorder %s112, %s113
    %p122 = scmp.eq.s32.totalorder %s18, 0
    %p123 = por %p121, %p122
    %p124 = scmp.ne.s32.totalorder %s112, %s113
    %p125 = scmp.eq.s32.totalorder %s19, 1
    %p126 = por %p124, %p125
    %p128 = scmp.ne.s32.totalorder %s113, %s127
    %p129 = scmp.eq.s32.totalorder %s19, 0
    %p130 = por %p128, %p129
    %s132 = sadd.s32 %s131, 1
    %p135 = scmp.eq.s32.totalorder %s13, 1
    %p136 = scmp.ne.s32.totalorder %s131, %s133
    %p137 = scmp.eq.s32.totalorder %s13, 0
    %p138 = por %p136, %p137
    %p139 = scmp.ne.s32.totalorder %s131, %s133
    %p140 = scmp.eq.s32.totalorder %s18, 1
    %p141 = por %p139, %p140
    %p142 = scmp.ne.s32.totalorder %s133, %s134
    %p143 = scmp.eq.s32.totalorder %s18, 0
    %p144 = por %p142, %p143
    %p145 = scmp.ne.s32.totalorder %s133, %s134
    %p146 = scmp.eq.s32.totalorder %s19, 1
    %p147 = por %p145, %p146
    %p149 = scmp.ne.s32.totalorder %s134, %s148
    %p150 = scmp.eq.s32.totalorder %s19, 0
    %p151 = por %p149, %p150
    %s153 = sadd.s32 %s152, 1
    %p156 = scmp.eq.s32.totalorder %s13, 1
    %p157 = scmp.ne.s32.totalorder %s152, %s154
    %p158 = scmp.eq.s32.totalorder %s13, 0
    %p159 = por %p157, %p158
    %p160 = scmp.ne.s32.totalorder %s152, %s154
    %p161 = scmp.eq.s32.totalorder %s18, 1
    %p162 = por %p160, %p161
    %p163 = scmp.ne.s32.totalorder %s154, %s155
    %p164 = scmp.eq.s32.totalorder %s18, 0
    %p165 = por %p163, %p164
    %p166 = scmp.ne.s32.totalorder %s154, %s155
    %p167 = scmp.eq.s32.totalorder %s19, 1
    %p168 = por %p166, %p167
    %p170 = scmp.ne.s32.totalorder %s155, %s169
    %p171 = scmp.eq.s32.totalorder %s19, 0
    %p172 = por %p170, %p171
    %s173 = ssub.s32 %s13, %s20
    %p174 = scmp.eq.s32.totalorder %s173, 0
    %s176 = sadd.s32 %s175, 1
    %s177 = scalar_select %p174, %s175, %s176
    %p180 = pneg %p174
    %p181 = scmp.eq.s32.totalorder %s13, 1
    %p182 = por %p180, %p181
    %p183 = scmp.ne.s32.totalorder %s175, %s178
    %p184 = scmp.eq.s32.totalorder %s13, 0
    %p185 = por %p183, %p184
    %p186 = scmp.ne.s32.totalorder %s175, %s178
    %p187 = scmp.eq.s32.totalorder %s18, 1
    %p188 = por %p186, %p187
    %p189 = scmp.ne.s32.totalorder %s178, %s179
    %p190 = scmp.eq.s32.totalorder %s18, 0
    %p191 = por %p189, %p190
    %p192 = scmp.ne.s32.totalorder %s178, %s179
    %p193 = scmp.eq.s32.totalorder %s19, 1
    %p194 = por %p192, %p193
    %p196 = scmp.ne.s32.totalorder %s179, %s195
    %p197 = scmp.eq.s32.totalorder %s19, 0
    %p198 = por %p196, %p197
    %p199 = scmp.le.s32.totalorder 1, %s13
    %p200 = scmp.lt.s32.totalorder %s13, 3
    %p201 = pnand %p199, %p200
    %p202 = pneg %p201
    // Predicated region
    $region9: #{decoder_forward.7} parent=5 // pred_check
      _
    $region10: #{decoder_forward.7} parent=5 // pred_check_branch
      %204 = sbr.rel (%p201) target = $region12
    $region11: #{decoder_forward.7} parent=5 // pred_region
      %s205 = ssub.s32 %s13, 1
      // Predicated region
      $region13: #{decoder_forward.7} parent=11 // pred_check
        %p206 = pneg %p60
      $region14: #{decoder_forward.7} parent=11 // pred_check_branch
        %208 = sbr.rel (%p206) target = $region16
      $region15: #{decoder_forward.7} parent=11 // pred_region
        _
      $region16: #{decoder_forward.7} parent=11 // pred_fallthru
        _
      // Predicated region
      $region17: #{decoder_forward.7} parent=11 // pred_check
        %p209 = pneg %p81
      $region18: #{decoder_forward.7} parent=11 // pred_check_branch
        %211 = sbr.rel (%p209) target = $region20
      $region19: #{decoder_forward.7} parent=11 // pred_region
        _
      $region20: #{decoder_forward.7} parent=11 // pred_fallthru
        _
      // Predicated region
      $region21: #{decoder_forward.7} parent=11 // pred_check
        %p212 = pneg %p102
      $region22: #{decoder_forward.7} parent=11 // pred_check_branch
        %214 = sbr.rel (%p212) target = $region24
      $region23: #{decoder_forward.7} parent=11 // pred_region
        _
      $region24: #{decoder_forward.7} parent=11 // pred_fallthru
        _
      // Predicated region
      $region25: #{decoder_forward.7} parent=11 // pred_check
        %p215 = pneg %p123
      $region26: #{decoder_forward.7} parent=11 // pred_check_branch
        %217 = sbr.rel (%p215) target = $region28
      $region27: #{decoder_forward.7} parent=11 // pred_region
        _
      $region28: #{decoder_forward.7} parent=11 // pred_fallthru
        _
      // Predicated region
      $region29: #{decoder_forward.7} parent=11 // pred_check
        %p218 = pneg %p144
      $region30: #{decoder_forward.7} parent=11 // pred_check_branch
        %220 = sbr.rel (%p218) target = $region32
      $region31: #{decoder_forward.7} parent=11 // pred_region
        _
      $region32: #{decoder_forward.7} parent=11 // pred_fallthru
        _
      // Predicated region
      $region33: #{decoder_forward.7} parent=11 // pred_check
        %p221 = pneg %p165
      $region34: #{decoder_forward.7} parent=11 // pred_check_branch
        %223 = sbr.rel (%p221) target = $region36
      $region35: #{decoder_forward.7} parent=11 // pred_region
        _
      $region36: #{decoder_forward.7} parent=11 // pred_fallthru
        _
    $region12: #{decoder_forward.7} parent=5 // pred_fallthru
      _
    %p224 = scmp.lt.s32.totalorder %s13, 2
    // Predicated region
    $region37: #{decoder_forward.7} parent=5 // pred_check
      %p225 = pneg %p224
    $region38: #{decoder_forward.7} parent=5 // pred_check_branch
      %227 = sbr.rel (%p225) target = $region40
    $region39: #{decoder_forward.7} parent=5 // pred_region
      // Predicated region
      $region41: #{decoder_forward.7} parent=39 // pred_check
        %p228 = pneg %p33
      $region42: #{decoder_forward.7} parent=39 // pred_check_branch
        %230 = sbr.rel (%p228) target = $region44
      $region43: #{decoder_forward.7} parent=39 // pred_region
        %s231 = smul.u32 2, %s13
        %p232 = scmp.lt.s32.totalorder %s231, 3
        %s233 = scalar_select %p232, %s231, 3
        %s234 = smul.addr %s233, 4
        %s235 = scalar_lea.vmem %s0, %s234
        %s236 = smul.u32 2, %s13
      $region44: #{decoder_forward.7} parent=39 // pred_fallthru
        _
    $region40: #{decoder_forward.7} parent=5 // pred_fallthru
      _
    %p237 = scmp.le.s32.totalorder 1, %s13
    %p238 = scmp.lt.s32.totalorder %s13, 3
    %p239 = pnand %p237, %p238
    %p240 = pneg %p239
    // Predicated region
    $region45: #{decoder_forward.7} parent=5 // pred_check
      _
    $region46: #{decoder_forward.7} parent=5 // pred_check_branch
      %242 = sbr.rel (%p239) target = $region48
    $region47: #{decoder_forward.7} parent=5 // pred_region
      %s243 = ssub.s32 %s13, 1
      %s244 = smul.u32 2, %s18
      %p245 = scmp.lt.s32.totalorder %s244, 3
      %s246 = scalar_select %p245, %s244, 3
      %s247 = smul.addr %s246, 4
      %s248 = scalar_lea.vmem %s0, %s247
      %p249 = pneg %p39
      %p250 = pneg %p36
      %p251 = pneg %p60
      %p252 = pneg %p57
      %p253 = pneg %p81
      %p254 = pneg %p78
      %p255 = pneg %p102
      %p256 = pneg %p99
      %p257 = pneg %p123
      %p258 = pneg %p120
      %p259 = pneg %p144
      %p260 = pneg %p141
      %p261 = pneg %p165
      %p262 = pneg %p162
      %p263 = pneg %p191
      %p264 = pneg %p188
      %s265 = smul.u32 2, %s18
      %p266 = scmp.lt.s32.totalorder %s265, 3
      %s267 = scalar_select %p266, %s265, 3
      %s268 = smul.addr %s267, 4
      %s269 = scalar_lea.vmem %s7, %s268
      %s270 = smul.u32 2, %s18
      %p271 = scmp.lt.s32.totalorder %s270, 3
      %s272 = scalar_select %p271, %s270, 3
      %s273 = smul.addr %s272, 4
      %s274 = scalar_lea.vmem %s0, %s273
      %s275 = smul.u32 2, %s18
      %s276 = smul.u32 2, %s18
      %p277 = scmp.lt.s32.totalorder %s276, 3
      %s278 = scalar_select %p277, %s276, 3
      %s279 = smul.addr %s278, 4
      %s280 = scalar_lea.vmem %s7, %s279
      %s281 = smul.u32 2, %s18
      %v283 = vld [vmem:[%s274] sm:$0xf]
      %v284 = vld [vmem:[%s274 + $0x4] sm:$0xf]
      %v285 = vld [vmem:[%s1] sm:$0xff]
      %v286 = vld [vmem:[%s1 + $0x8] sm:$0xf]
      %v287 = vld [vmem:[%s1 + $0xc] sm:$0xff]
      %v288 = vld [vmem:[%s1 + $0x14] sm:$0xf]
      %v289 = vld [vmem:[%s1 + $0x18] sm:$0xff]
      %v290 = vld [vmem:[%s1 + $0x20] sm:$0xf]
      %v291 = vld [vmem:[%s1 + $0x24] sm:$0xff]
      %v292 = vld [vmem:[%s1 + $0x2c] sm:$0xf]
      %v293 = vld [vmem:[%s1 + $0x30] sm:$0xff]
      %v294 = vld [vmem:[%s1 + $0x38] sm:$0xf]
      %v295 = vld [vmem:[%s1 + $0x3c] sm:$0xff]
      %v296 = vld [vmem:[%s1 + $0x44] sm:$0xf]
      %v297 = vld [vmem:[%s1 + $0x48] sm:$0xff]
      %v298 = vld [vmem:[%s1 + $0x50] sm:$0xf]
      %v299 = vld [vmem:[%s1 + $0x54] sm:$0xff]
      %v300 = vld [vmem:[%s1 + $0x5c] sm:$0xf]
      %v301 = vld [vmem:[%s1 + $0x60] sm:$0xff]
      %v302 = vld [vmem:[%s1 + $0x68] sm:$0xf]
      %v303 = vld [vmem:[%s1 + $0x6c] sm:$0xff]
      %v304 = vld [vmem:[%s1 + $0x74] sm:$0xf]
      %v305 = vld [vmem:[%s1 + $0x78] sm:$0xff]
      %v306 = vld [vmem:[%s1 + $0x80] sm:$0xf]
      %v307 = vld [vmem:[%s1 + $0x84] sm:$0xff]
      %v308 = vld [vmem:[%s1 + $0x8c] sm:$0xf]
      %v309 = vld [vmem:[%s1 + $0x90] sm:$0xff]
      %v310 = vld [vmem:[%s1 + $0x98] sm:$0xf]
      %v311 = vld [vmem:[%s1 + $0x9c] sm:$0xff]
      %v312 = vld [vmem:[%s1 + $0xa4] sm:$0xf]
      %v313 = vld [vmem:[%s1 + $0xa8] sm:$0xff]
      %v314 = vld [vmem:[%s1 + $0xb0] sm:$0xf]
      %v315 = vld [vmem:[%s1 + $0xb4] sm:$0xff]
      %v316 = vld [vmem:[%s1 + $0xbc] sm:$0xf]
      %v317 = vld [vmem:[%s2] sm:$0x7]
      %v319 = vlaneseq
      %v320 = vshrl.u32 %v319, 7
      %v321 = vsub.s32 0, %v320
      %v322 = vrot.slane %v317, %v321
      %v323 = vlaneseq
      %v324 = vshrl.u32 %v323, 7
      %v325 = vsub.s32 1, %v324
      %v326 = vrot.slane %v317, %v325
      %v327 = vlaneseq
      %v328 = vshrl.u32 %v327, 7
      %v329 = vsub.s32 2, %v328
      %v330 = vrot.slane %v317, %v329
      %v336 = vunpack.c.l.b16 %v283
      %v337 = vunpack.c.l.b16 %v284
      %v338 = vpack.c.b16 %v337, %v336
      %v372 = vunpack.c.l.b16 %v285
      %v373 = vunpack.c.h.b16 %v285
      %v374 = vunpack.c.l.b16 %v286
      %v375 = vunpack.c.l.b16 %v287
      %v376 = vunpack.c.h.b16 %v287
      %v377 = vunpack.c.l.b16 %v288
      %v378 = vunpack.c.l.b16 %v289
      %v379 = vunpack.c.h.b16 %v289
      %v380 = vunpack.c.l.b16 %v290
      %v381 = vunpack.c.l.b16 %v291
      %v382 = vunpack.c.h.b16 %v291
      %v383 = vunpack.c.l.b16 %v292
      %v384 = vunpack.c.l.b16 %v293
      %v385 = vunpack.c.h.b16 %v293
      %v386 = vunpack.c.l.b16 %v294
      %v387 = vunpack.c.l.b16 %v295
      %v388 = vunpack.c.h.b16 %v295
      %v389 = vunpack.c.l.b16 %v296
      %v390 = vunpack.c.l.b16 %v297
      %v391 = vunpack.c.h.b16 %v297
      %v392 = vunpack.c.l.b16 %v298
      %v393 = vunpack.c.l.b16 %v299
      %v394 = vunpack.c.h.b16 %v299
      %v395 = vunpack.c.l.b16 %v300
      %v396 = vunpack.c.l.b16 %v301
      %v397 = vunpack.c.h.b16 %v301
      %v398 = vunpack.c.l.b16 %v302
      %v399 = vunpack.c.l.b16 %v303
      %v400 = vunpack.c.h.b16 %v303
      %v401 = vunpack.c.l.b16 %v304
      %v402 = vunpack.c.l.b16 %v305
      %v403 = vunpack.c.h.b16 %v305
      %v404 = vunpack.c.l.b16 %v306
      %v405 = vunpack.c.l.b16 %v307
      %v406 = vunpack.c.h.b16 %v307
      %v407 = vunpack.c.l.b16 %v308
      %v408 = vunpack.c.l.b16 %v309
      %v409 = vunpack.c.h.b16 %v309
      %v410 = vunpack.c.l.b16 %v310
      %v411 = vunpack.c.l.b16 %v311
      %v412 = vunpack.c.h.b16 %v311
      %v413 = vunpack.c.l.b16 %v312
      %v414 = vunpack.c.l.b16 %v313
      %v415 = vunpack.c.h.b16 %v313
      %v416 = vunpack.c.l.b16 %v314
      %v417 = vunpack.c.l.b16 %v315
      %v418 = vunpack.c.h.b16 %v315
      %v419 = vunpack.c.l.b16 %v316
      %v420 = vpack.c.b16 %v375, %v372
      %v421 = vpack.c.b16 %v376, %v373
      %v422 = vpack.c.b16 %v377, %v374
      %v423 = vpack.c.b16 %v381, %v378
      %v424 = vpack.c.b16 %v382, %v379
      %v425 = vpack.c.b16 %v383, %v380
      %v426 = vpack.c.b16 %v387, %v384
      %v427 = vpack.c.b16 %v388, %v385
      %v428 = vpack.c.b16 %v389, %v386
      %v429 = vpack.c.b16 %v393, %v390
      %v430 = vpack.c.b16 %v394, %v391
      %v431 = vpack.c.b16 %v395, %v392
      %v432 = vpack.c.b16 %v399, %v396
      %v433 = vpack.c.b16 %v400, %v397
      %v434 = vpack.c.b16 %v401, %v398
      %v435 = vpack.c.b16 %v405, %v402
      %v436 = vpack.c.b16 %v406, %v403
      %v437 = vpack.c.b16 %v407, %v404
      %v438 = vpack.c.b16 %v411, %v408
      %v439 = vpack.c.b16 %v412, %v409
      %v440 = vpack.c.b16 %v413, %v410
      %v441 = vpack.c.b16 %v417, %v414
      %v442 = vpack.c.b16 %v418, %v415
      %v443 = vpack.c.b16 %v419, %v416
      %468 = vmatprep.subr.bf16.mxu0 %v442
      %469 = vmatpush1.bf16.msra.mxu0 %v441
      %470 = vmatprep.subr.bf16.mxu0 %v439
      %471 = vmatpush1.bf16.msra.mxu0 %v438
      %472 = vmatprep.subr.bf16.mxu0 %v436
      %473 = vmatpush1.bf16.msra.mxu0 %v435
      %474 = vmatprep.subr.bf16.mxu0 %v433
      %475 = vmatpush1.bf16.msra.mxu0 %v432
      %476 = vmatprep.subr.bf16.mxu0 %v430
      %477 = vmatpush1.bf16.msra.mxu0 %v429
      %478 = vmatprep.subr.bf16.mxu0 %v427
      %479 = vmatpush1.bf16.msra.mxu0 %v426
      %480 = vmatprep.subr.bf16.mxu0 %v424
      %481 = vmatpush1.bf16.msra.mxu0 %v423
      %482 = vmatprep.subr.bf16.mxu0 %v421
      %483 = vmatpush1.bf16.msra.mxu0 %v420
      %484 = vmatprep.subr.bf16.mxu0 0
      %485 = vmatpush2.bf16.msra.mxu0 0
      %486 = vmatprep.subr.bf16.mxu0 0
      %487 = vmatpush2.bf16.msra.mxu0 0
      %488 = vmatprep.subr.bf16.mxu0 0
      %489 = vmatpush2.bf16.msra.mxu0 0
      %490 = vmatprep.subr.bf16.mxu0 0
      %491 = vmatpush2.bf16.msra.mxu0 0
      %492 = vmatprep.subr.bf16.mxu0 0
      %493 = vmatpush2.bf16.msra.mxu0 0
      %494 = vmatprep.subr.bf16.mxu0 0
      %495 = vmatpush2.bf16.msra.mxu0 0
      %496 = vmatprep.subr.bf16.mxu0 0
      %497 = vmatpush2.bf16.msra.mxu0 0
      %498 = vmatprep.subr.bf16.mxu0 0
      %499 = vmatpush2.bf16.msra.mxu0 0
      %500 = vmatprep.mubr.bf16.mxu0 0
      %501 = vmatmul.mubr.bf16.gmra.mxu0 %v338
      %v502 = vpop.f32.mrf.mxu0
      %v503 = vadd.f32 %v322, %v502
      %v504 = vpop.f32.mrf.mxu0
      %v505 = vadd.f32 %v326, %v504
      %v506 = vpop.f32.mrf.mxu0
      %v507 = vadd.f32 %v322, %v506
      %v508 = vpop.f32.mrf.mxu0
      %v509 = vadd.f32 %v326, %v508
      %510 = vdwg.mxu0
      %511 = vmatprep.subr.bf16.mxu0 0
      %512 = vmatpush1.bf16.msra.mxu0 %v443
      %513 = vmatprep.subr.bf16.mxu0 0
      %514 = vmatpush1.bf16.msra.mxu0 %v440
      %515 = vmatprep.subr.bf16.mxu0 0
      %516 = vmatpush1.bf16.msra.mxu0 %v437
      %517 = vmatprep.subr.bf16.mxu0 0
      %518 = vmatpush1.bf16.msra.mxu0 %v434
      %519 = vmatprep.subr.bf16.mxu0 0
      %520 = vmatpush1.bf16.msra.mxu0 %v431
      %521 = vmatprep.subr.bf16.mxu0 0
      %522 = vmatpush1.bf16.msra.mxu0 %v428
      %523 = vmatprep.subr.bf16.mxu0 0
      %524 = vmatpush1.bf16.msra.mxu0 %v425
      %525 = vmatprep.subr.bf16.mxu0 0
      %526 = vmatpush1.bf16.msra.mxu0 %v422
      %527 = vmatprep.subr.bf16.mxu0 0
      %528 = vmatpush2.bf16.msra.mxu0 0
      %529 = vmatprep.subr.bf16.mxu0 0
      %530 = vmatpush2.bf16.msra.mxu0 0
      %531 = vmatprep.subr.bf16.mxu0 0
      %532 = vmatpush2.bf16.msra.mxu0 0
      %533 = vmatprep.subr.bf16.mxu0 0
      %534 = vmatpush2.bf16.msra.mxu0 0
      %535 = vmatprep.subr.bf16.mxu0 0
      %536 = vmatpush2.bf16.msra.mxu0 0
      %537 = vmatprep.subr.bf16.mxu0 0
      %538 = vmatpush2.bf16.msra.mxu0 0
      %539 = vmatprep.subr.bf16.mxu0 0
      %540 = vmatpush2.bf16.msra.mxu0 0
      %541 = vmatprep.subr.bf16.mxu0 0
      %542 = vmatpush2.bf16.msra.mxu0 0
      %543 = vmatprep.mubr.bf16.mxu0 0
      %544 = vmatmul.mubr.bf16.gmra.mxu0 %v338
      %v545 = vpop.f32.mrf.mxu0
      %v546 = vadd.f32 %v330, %v545
      %v547 = vpop.f32.mrf.mxu0
      %v548 = vpop.f32.mrf.mxu0
      %v549 = vadd.f32 %v330, %v548
      %v550 = vpop.f32.mrf.mxu0
      %551 = vdwg.mxu0
      %v552 = vmul.f32 %v503, 0.17677669
      %v553 = vmul.f32 %v507, 0.17677669
      %v554 = vpack.c.bf16 %v509, %v505
      %v555 = vlaneseq
      %v556 = vand.u32 %v555, 127
      %v557 = vlaneseq
      %v558 = vshrl.u32 %v557, 7
      %v559 = vadd.s32 %v558, 8
      %vm560 = vcmp.ge.s32.totalorder %v556, 0
      %vm561 = vcmp.lt.s32.totalorder %v556, 32
      %vm562 = vmand %vm560, %vm561
      %v563 = vsel %vm562, %v552, 0.0
      %v564 = vsel %vm562, %v553, 0.0
      %v565 = vpack.c.bf16 %v564, %v563
      %566 = vmatprep.subr.bf16.mxu0 0
      %567 = vmatpush1.bf16.xpose.msra.mxu0 0
      %568 = vmatprep.subr.bf16.mxu0 0
      %569 = vmatpush1.bf16.xpose.msra.mxu0 0
      %570 = vmatprep.subr.bf16.mxu0 0
      %571 = vmatpush1.bf16.xpose.msra.mxu0 0
      %572 = vmatprep.subr.bf16.mxu0 0
      %573 = vmatpush1.bf16.xpose.msra.mxu0 0
      %574 = vmatprep.subr.bf16.mxu0 0
      %575 = vmatpush1.bf16.xpose.msra.mxu0 0
      %576 = vmatprep.subr.bf16.mxu0 0
      %577 = vmatpush1.bf16.xpose.msra.mxu0 0
      %578 = vmatprep.subr.bf16.mxu0 0
      %579 = vmatpush1.bf16.xpose.msra.mxu0 0
      %580 = vmatprep.subr.bf16.mxu0 0
      %581 = vmatpush1.bf16.xpose.msra.mxu0 %v554
      %582 = vmatprep.subr.bf16.mxu0 0
      %583 = vmatpush2.bf16.xpose.msra.mxu0 0
      %584 = vmatprep.subr.bf16.mxu0 0
      %585 = vmatpush2.bf16.xpose.msra.mxu0 0
      %586 = vmatprep.subr.bf16.mxu0 0
      %587 = vmatpush2.bf16.xpose.msra.mxu0 0
      %588 = vmatprep.subr.bf16.mxu0 0
      %589 = vmatpush2.bf16.xpose.msra.mxu0 0
      %590 = vmatprep.subr.bf16.mxu0 0
      %591 = vmatpush2.bf16.xpose.msra.mxu0 0
      %592 = vmatprep.subr.bf16.mxu0 0
      %593 = vmatpush2.bf16.xpose.msra.mxu0 0
      %594 = vmatprep.subr.bf16.mxu0 0
      %595 = vmatpush2.bf16.xpose.msra.mxu0 0
      %596 = vmatprep.subr.bf16.mxu0 0
      %597 = vmatpush2.bf16.xpose.msra.mxu0 0
      %598 = vmatprep.mubr.bf16.mxu0 0
      %599 = vmatmul.mubr.bf16.gmra.mxu0 %v565
      %v600 = vpop.f32.mrf.mxu0
      %v601 = vadd.f32 0.0, %v600
      %v602 = vpop.f32.mrf.mxu0
      %v603 = vpop.f32.mrf.mxu0
      %v604 = vadd.f32 0.0, %v603
      %v605 = vpop.f32.mrf.mxu0
      %606 = vdwg.mxu0
      %vm607 = vcmp.gt.s32.totalorder %v556, %v558
      %vm608 = vcmp.gt.s32.totalorder %v556, %v559
      %v609 = vsel %vm607, -1e+30, %v601
      %v610 = vsel %vm608, -1e+30, %v604
      %vm611 = vcmask 130048
      %v612 = vsel %vm611, %v609, -inf
      %613 = vmax.xlane.f32.xlu0 %v612
      %v614 = vpop.xlane.xlu0 %613
      %v615 = vsel %vm611, %v610, -inf
      %616 = vmax.xlane.f32.xlu0 %v615
      %v617 = vpop.xlane.xlu0 %616
      %v618 = vsub.f32 %v609, %v614
      %v619 = vsub.f32 %v610, %v617
      %v620 = vmul.f32 %v618, 1.442695
      %v621 = vpow.pop %v620
      %v622 = vmul.f32 %v619, 1.442695
      %v623 = vpow.pop %v622
      %v624 = vsel %vm611, %v621, 0.0
      %625 = vadd.xlane.f32.xlu0 %v624
      %v626 = vpop.xlane.xlu0 %625
      %v627 = vsel %vm611, %v623, 0.0
      %628 = vadd.xlane.f32.xlu0 %v627
      %v629 = vpop.xlane.xlu0 %628
      %v630 = vrcp.pop %v626
      %v631 = vrcp.pop %v629
      %v632 = vmul.f32 %v621, %v630
      %v633 = vmul.f32 %v623, %v631
      %v634 = vsel %vm562, %v546, 0.0
      %v635 = vsel %vm562, %v549, 0.0
      %v636 = vpack.c.bf16 %v635, %v634
      %v637 = vpack.c.bf16 %v633, %v632
      %vm638 = vcmp.ge.s32.totalorder %v556, 32
      %vm639 = vcmp.lt.s32.totalorder %v556, 64
      %vm640 = vmand %vm638, %vm639
      %v641 = vsel %vm640, %v552, 0.0
      %v642 = vsel %vm640, %v553, 0.0
      %v643 = vpack.c.bf16 %v642, %v641
      %644 = vmatprep.subr.bf16.mxu0 0
      %645 = vmatpush1.bf16.xpose.msra.mxu0 0
      %646 = vmatprep.subr.bf16.mxu0 0
      %647 = vmatpush1.bf16.xpose.msra.mxu0 0
      %648 = vmatprep.subr.bf16.mxu0 0
      %649 = vmatpush1.bf16.xpose.msra.mxu0 0
      %650 = vmatprep.subr.bf16.mxu0 0
      %651 = vmatpush1.bf16.xpose.msra.mxu0 0
      %652 = vmatprep.subr.bf16.mxu0 0
      %653 = vmatpush1.bf16.xpose.msra.mxu0 0
      %654 = vmatprep.subr.bf16.mxu0 0
      %655 = vmatpush1.bf16.xpose.msra.mxu0 0
      %656 = vmatprep.subr.bf16.mxu0 0
      %657 = vmatpush1.bf16.xpose.msra.mxu0 0
      %658 = vmatprep.subr.bf16.mxu0 0
      %659 = vmatpush1.bf16.xpose.msra.mxu0 %v554
      %660 = vmatprep.subr.bf16.mxu0 0
      %661 = vmatpush2.bf16.xpose.msra.mxu0 0
      %662 = vmatprep.subr.bf16.mxu0 0
      %663 = vmatpush2.bf16.xpose.msra.mxu0 0
      %664 = vmatprep.subr.bf16.mxu0 0
      %665 = vmatpush2.bf16.xpose.msra.mxu0 0
      %666 = vmatprep.subr.bf16.mxu0 0
      %667 = vmatpush2.bf16.xpose.msra.mxu0 0
      %668 = vmatprep.subr.bf16.mxu0 0
      %669 = vmatpush2.bf16.xpose.msra.mxu0 0
      %670 = vmatprep.subr.bf16.mxu0 0
      %671 = vmatpush2.bf16.xpose.msra.mxu0 0
      %672 = vmatprep.subr.bf16.mxu0 0
      %673 = vmatpush2.bf16.xpose.msra.mxu0 0
      %674 = vmatprep.subr.bf16.mxu0 0
      %675 = vmatpush2.bf16.xpose.msra.mxu0 0
      %676 = vmatprep.mubr.bf16.mxu0 0
      %677 = vmatmul.mubr.bf16.gmra.mxu0 %v643
      %v678 = vpop.f32.mrf.mxu0
      %v679 = vadd.f32 0.0, %v678
      %v680 = vpop.f32.mrf.mxu0
      %v681 = vpop.f32.mrf.mxu0
      %v682 = vadd.f32 0.0, %v681
      %v683 = vpop.f32.mrf.mxu0
      %684 = vdwg.mxu0
      %v685 = vsel %vm607, -1e+30, %v679
      %v686 = vsel %vm608, -1e+30, %v682
      %v687 = vsel %vm611, %v685, -inf
      %688 = vmax.xlane.f32.xlu0 %v687
      %v689 = vpop.xlane.xlu0 %688
      %v690 = vsel %vm611, %v686, -inf
      %691 = vmax.xlane.f32.xlu0 %v690
      %v692 = vpop.xlane.xlu0 %691
      %v693 = vsub.f32 %v685, %v689
      %v694 = vsub.f32 %v686, %v692
      %v695 = vmul.f32 %v693, 1.442695
      %v696 = vpow.pop %v695
      %v697 = vmul.f32 %v694, 1.442695
      %v698 = vpow.pop %v697
      %v699 = vsel %vm611, %v696, 0.0
      %700 = vadd.xlane.f32.xlu0 %v699
      %v701 = vpop.xlane.xlu0 %700
      %v702 = vsel %vm611, %v698, 0.0
      %703 = vadd.xlane.f32.xlu0 %v702
      %v704 = vpop.xlane.xlu0 %703
      %v705 = vrcp.pop %v701
      %v706 = vrcp.pop %v704
      %v707 = vmul.f32 %v696, %v705
      %v708 = vmul.f32 %v698, %v706
      %v709 = vsel %vm640, %v546, 0.0
      %v710 = vsel %vm640, %v549, 0.0
      %v711 = vpack.c.bf16 %v710, %v709
      %v712 = vpack.c.bf16 %v708, %v707
      %v714 = vsel %vm611, %v712, 0
      %716 = vmatprep.subr.bf16.mxu0 0
      %717 = vmatpush1.bf16.msra.mxu0 0
      %718 = vmatprep.subr.bf16.mxu0 0
      %719 = vmatpush1.bf16.msra.mxu0 0
      %720 = vmatprep.subr.bf16.mxu0 0
      %721 = vmatpush1.bf16.msra.mxu0 0
      %722 = vmatprep.subr.bf16.mxu0 0
      %723 = vmatpush1.bf16.msra.mxu0 0
      %724 = vmatprep.subr.bf16.mxu0 0
      %725 = vmatpush1.bf16.msra.mxu0 0
      %726 = vmatprep.subr.bf16.mxu0 0
      %727 = vmatpush1.bf16.msra.mxu0 0
      %728 = vmatprep.subr.bf16.mxu0 0
      %729 = vmatpush1.bf16.msra.mxu0 0
      %730 = vmatprep.subr.bf16.mxu0 0
      %731 = vmatpush1.bf16.msra.mxu0 %v711
      %732 = vmatprep.subr.bf16.mxu0 0
      %733 = vmatpush2.bf16.msra.mxu0 0
      %734 = vmatprep.subr.bf16.mxu0 0
      %735 = vmatpush2.bf16.msra.mxu0 0
      %736 = vmatprep.subr.bf16.mxu0 0
      %737 = vmatpush2.bf16.msra.mxu0 0
      %738 = vmatprep.subr.bf16.mxu0 0
      %739 = vmatpush2.bf16.msra.mxu0 0
      %740 = vmatprep.subr.bf16.mxu0 0
      %741 = vmatpush2.bf16.msra.mxu0 0
      %742 = vmatprep.subr.bf16.mxu0 0
      %743 = vmatpush2.bf16.msra.mxu0 0
      %744 = vmatprep.subr.bf16.mxu0 0
      %745 = vmatpush2.bf16.msra.mxu0 0
      %746 = vmatprep.subr.bf16.mxu0 0
      %747 = vmatpush2.bf16.msra.mxu0 0
      %748 = vmatprep.mubr.bf16.mxu0 0
      %749 = vmatmul.mubr.bf16.gmra.mxu0 %v714
      %v750 = vpop.f32.mrf.mxu0
      %v751 = vadd.f32 0.0, %v750
      %v752 = vpop.f32.mrf.mxu0
      %v753 = vpop.f32.mrf.mxu0
      %v754 = vadd.f32 0.0, %v753
      %v755 = vpop.f32.mrf.mxu0
      %756 = vdwg.mxu0
      %v758 = vsel %vm611, %v637, 0
      %760 = vmatprep.subr.bf16.mxu0 0
      %761 = vmatpush1.bf16.msra.mxu0 0
      %762 = vmatprep.subr.bf16.mxu0 0
      %763 = vmatpush1.bf16.msra.mxu0 0
      %764 = vmatprep.subr.bf16.mxu0 0
      %765 = vmatpush1.bf16.msra.mxu0 0
      %766 = vmatprep.subr.bf16.mxu0 0
      %767 = vmatpush1.bf16.msra.mxu0 0
      %768 = vmatprep.subr.bf16.mxu0 0
      %769 = vmatpush1.bf16.msra.mxu0 0
      %770 = vmatprep.subr.bf16.mxu0 0
      %771 = vmatpush1.bf16.msra.mxu0 0
      %772 = vmatprep.subr.bf16.mxu0 0
      %773 = vmatpush1.bf16.msra.mxu0 0
      %774 = vmatprep.subr.bf16.mxu0 0
      %775 = vmatpush1.bf16.msra.mxu0 %v636
      %776 = vmatprep.subr.bf16.mxu0 0
      %777 = vmatpush2.bf16.msra.mxu0 0
      %778 = vmatprep.subr.bf16.mxu0 0
      %779 = vmatpush2.bf16.msra.mxu0 0
      %780 = vmatprep.subr.bf16.mxu0 0
      %781 = vmatpush2.bf16.msra.mxu0 0
      %782 = vmatprep.subr.bf16.mxu0 0
      %783 = vmatpush2.bf16.msra.mxu0 0
      %784 = vmatprep.subr.bf16.mxu0 0
      %785 = vmatpush2.bf16.msra.mxu0 0
      %786 = vmatprep.subr.bf16.mxu0 0
      %787 = vmatpush2.bf16.msra.mxu0 0
      %788 = vmatprep.subr.bf16.mxu0 0
      %789 = vmatpush2.bf16.msra.mxu0 0
      %790 = vmatprep.subr.bf16.mxu0 0
      %791 = vmatpush2.bf16.msra.mxu0 0
      %792 = vmatprep.mubr.bf16.mxu0 0
      %793 = vmatmul.mubr.bf16.gmra.mxu0 %v758
      %v794 = vpop.f32.mrf.mxu0
      %v795 = vadd.f32 %v751, %v794
      %v796 = vpop.f32.mrf.mxu0
      %v797 = vpop.f32.mrf.mxu0
      %v798 = vadd.f32 %v754, %v797
      %v799 = vpop.f32.mrf.mxu0
      %800 = vdwg.mxu0
      %vm801 = vcmp.ge.s32.totalorder %v556, 64
      %vm802 = vcmp.lt.s32.totalorder %v556, 96
      %vm803 = vmand %vm801, %vm802
      %v804 = vsel %vm803, %v552, 0.0
      %v805 = vsel %vm803, %v553, 0.0
      %v806 = vpack.c.bf16 %v805, %v804
      %807 = vmatprep.subr.bf16.mxu0 0
      %808 = vmatpush1.bf16.xpose.msra.mxu0 0
      %809 = vmatprep.subr.bf16.mxu0 0
      %810 = vmatpush1.bf16.xpose.msra.mxu0 0
      %811 = vmatprep.subr.bf16.mxu0 0
      %812 = vmatpush1.bf16.xpose.msra.mxu0 0
      %813 = vmatprep.subr.bf16.mxu0 0
      %814 = vmatpush1.bf16.xpose.msra.mxu0 0
      %815 = vmatprep.subr.bf16.mxu0 0
      %816 = vmatpush1.bf16.xpose.msra.mxu0 0
      %817 = vmatprep.subr.bf16.mxu0 0
      %818 = vmatpush1.bf16.xpose.msra.mxu0 0
      %819 = vmatprep.subr.bf16.mxu0 0
      %820 = vmatpush1.bf16.xpose.msra.mxu0 0
      %821 = vmatprep.subr.bf16.mxu0 0
      %822 = vmatpush1.bf16.xpose.msra.mxu0 %v554
      %823 = vmatprep.subr.bf16.mxu0 0
      %824 = vmatpush2.bf16.xpose.msra.mxu0 0
      %825 = vmatprep.subr.bf16.mxu0 0
      %826 = vmatpush2.bf16.xpose.msra.mxu0 0
      %827 = vmatprep.subr.bf16.mxu0 0
      %828 = vmatpush2.bf16.xpose.msra.mxu0 0
      %829 = vmatprep.subr.bf16.mxu0 0
      %830 = vmatpush2.bf16.xpose.msra.mxu0 0
      %831 = vmatprep.subr.bf16.mxu0 0
      %832 = vmatpush2.bf16.xpose.msra.mxu0 0
      %833 = vmatprep.subr.bf16.mxu0 0
      %834 = vmatpush2.bf16.xpose.msra.mxu0 0
      %835 = vmatprep.subr.bf16.mxu0 0
      %836 = vmatpush2.bf16.xpose.msra.mxu0 0
      %837 = vmatprep.subr.bf16.mxu0 0
      %838 = vmatpush2.bf16.xpose.msra.mxu0 0
      %839 = vmatprep.mubr.bf16.mxu0 0
      %840 = vmatmul.mubr.bf16.gmra.mxu0 %v806
      %v841 = vpop.f32.mrf.mxu0
      %v842 = vadd.f32 0.0, %v841
      %v843 = vpop.f32.mrf.mxu0
      %v844 = vpop.f32.mrf.mxu0
      %v845 = vadd.f32 0.0, %v844
      %v846 = vpop.f32.mrf.mxu0
      %847 = vdwg.mxu0
      %v848 = vsel %vm607, -1e+30, %v842
      %v849 = vsel %vm608, -1e+30, %v845
      %v850 = vsel %vm611, %v848, -inf
      %851 = vmax.xlane.f32.xlu0 %v850
      %v852 = vpop.xlane.xlu0 %851
      %v853 = vsel %vm611, %v849, -inf
      %854 = vmax.xlane.f32.xlu0 %v853
      %v855 = vpop.xlane.xlu0 %854
      %v856 = vsub.f32 %v848, %v852
      %v857 = vsub.f32 %v849, %v855
      %v858 = vmul.f32 %v856, 1.442695
      %v859 = vpow.pop %v858
      %v860 = vmul.f32 %v857, 1.442695
      %v861 = vpow.pop %v860
      %v862 = vsel %vm611, %v859, 0.0
      %863 = vadd.xlane.f32.xlu0 %v862
      %v864 = vpop.xlane.xlu0 %863
      %v865 = vsel %vm611, %v861, 0.0
      %866 = vadd.xlane.f32.xlu0 %v865
      %v867 = vpop.xlane.xlu0 %866
      %v868 = vrcp.pop %v864
      %v869 = vrcp.pop %v867
      %v870 = vmul.f32 %v859, %v868
      %v871 = vmul.f32 %v861, %v869
      %v872 = vsel %vm803, %v546, 0.0
      %v873 = vsel %vm803, %v549, 0.0
      %v874 = vpack.c.bf16 %v873, %v872
      %v875 = vpack.c.bf16 %v871, %v870
      %v877 = vsel %vm611, %v875, 0
      %879 = vmatprep.subr.bf16.mxu0 0
      %880 = vmatpush1.bf16.msra.mxu0 0
      %881 = vmatprep.subr.bf16.mxu0 0
      %882 = vmatpush1.bf16.msra.mxu0 0
      %883 = vmatprep.subr.bf16.mxu0 0
      %884 = vmatpush1.bf16.msra.mxu0 0
      %885 = vmatprep.subr.bf16.mxu0 0
      %886 = vmatpush1.bf16.msra.mxu0 0
      %887 = vmatprep.subr.bf16.mxu0 0
      %888 = vmatpush1.bf16.msra.mxu0 0
      %889 = vmatprep.subr.bf16.mxu0 0
      %890 = vmatpush1.bf16.msra.mxu0 0
      %891 = vmatprep.subr.bf16.mxu0 0
      %892 = vmatpush1.bf16.msra.mxu0 0
      %893 = vmatprep.subr.bf16.mxu0 0
      %894 = vmatpush1.bf16.msra.mxu0 %v874
      %895 = vmatprep.subr.bf16.mxu0 0
      %896 = vmatpush2.bf16.msra.mxu0 0
      %897 = vmatprep.subr.bf16.mxu0 0
      %898 = vmatpush2.bf16.msra.mxu0 0
      %899 = vmatprep.subr.bf16.mxu0 0
      %900 = vmatpush2.bf16.msra.mxu0 0
      %901 = vmatprep.subr.bf16.mxu0 0
      %902 = vmatpush2.bf16.msra.mxu0 0
      %903 = vmatprep.subr.bf16.mxu0 0
      %904 = vmatpush2.bf16.msra.mxu0 0
      %905 = vmatprep.subr.bf16.mxu0 0
      %906 = vmatpush2.bf16.msra.mxu0 0
      %907 = vmatprep.subr.bf16.mxu0 0
      %908 = vmatpush2.bf16.msra.mxu0 0
      %909 = vmatprep.subr.bf16.mxu0 0
      %910 = vmatpush2.bf16.msra.mxu0 0
      %911 = vmatprep.mubr.bf16.mxu0 0
      %912 = vmatmul.mubr.bf16.gmra.mxu0 %v877
      %v913 = vpop.f32.mrf.mxu0
      %v914 = vadd.f32 0.0, %v913
      %v915 = vpop.f32.mrf.mxu0
      %v916 = vpop.f32.mrf.mxu0
      %v917 = vadd.f32 0.0, %v916
      %v918 = vpop.f32.mrf.mxu0
      %919 = vdwg.mxu0
      %v920 = vadd.f32 %v795, %v914
      %v921 = vadd.f32 %v798, %v917
      %vm922 = vcmp.ge.s32.totalorder %v556, 96
      %vm923 = vcmp.lt.s32.totalorder %v556, 128
      %vm924 = vmand %vm922, %vm923
      %v925 = vsel %vm924, %v552, 0.0
      %v926 = vsel %vm924, %v553, 0.0
      %v927 = vpack.c.bf16 %v926, %v925
      %928 = vmatprep.subr.bf16.mxu0 0
      %929 = vmatpush1.bf16.xpose.msra.mxu0 0
      %930 = vmatprep.subr.bf16.mxu0 0
      %931 = vmatpush1.bf16.xpose.msra.mxu0 0
      %932 = vmatprep.subr.bf16.mxu0 0
      %933 = vmatpush1.bf16.xpose.msra.mxu0 0
      %934 = vmatprep.subr.bf16.mxu0 0
      %935 = vmatpush1.bf16.xpose.msra.mxu0 0
      %936 = vmatprep.subr.bf16.mxu0 0
      %937 = vmatpush1.bf16.xpose.msra.mxu0 0
      %938 = vmatprep.subr.bf16.mxu0 0
      %939 = vmatpush1.bf16.xpose.msra.mxu0 0
      %940 = vmatprep.subr.bf16.mxu0 0
      %941 = vmatpush1.bf16.xpose.msra.mxu0 0
      %942 = vmatprep.subr.bf16.mxu0 0
      %943 = vmatpush1.bf16.xpose.msra.mxu0 %v554
      %944 = vmatprep.subr.bf16.mxu0 0
      %945 = vmatpush2.bf16.xpose.msra.mxu0 0
      %946 = vmatprep.subr.bf16.mxu0 0
      %947 = vmatpush2.bf16.xpose.msra.mxu0 0
      %948 = vmatprep.subr.bf16.mxu0 0
      %949 = vmatpush2.bf16.xpose.msra.mxu0 0
      %950 = vmatprep.subr.bf16.mxu0 0
      %951 = vmatpush2.bf16.xpose.msra.mxu0 0
      %952 = vmatprep.subr.bf16.mxu0 0
      %953 = vmatpush2.bf16.xpose.msra.mxu0 0
      %954 = vmatprep.subr.bf16.mxu0 0
      %955 = vmatpush2.bf16.xpose.msra.mxu0 0
      %956 = vmatprep.subr.bf16.mxu0 0
      %957 = vmatpush2.bf16.xpose.msra.mxu0 0
      %958 = vmatprep.subr.bf16.mxu0 0
      %959 = vmatpush2.bf16.xpose.msra.mxu0 0
      %960 = vmatprep.mubr.bf16.mxu0 0
      %961 = vmatmul.mubr.bf16.gmra.mxu0 %v927
      %v962 = vpop.f32.mrf.mxu0
      %v963 = vadd.f32 0.0, %v962
      %v964 = vpop.f32.mrf.mxu0
      %v965 = vpop.f32.mrf.mxu0
      %v966 = vadd.f32 0.0, %v965
      %v967 = vpop.f32.mrf.mxu0
      %968 = vdwg.mxu0
      %v969 = vsel %vm607, -1e+30, %v963
      %v970 = vsel %vm608, -1e+30, %v966
      %v971 = vsel %vm611, %v969, -inf
      %972 = vmax.xlane.f32.xlu0 %v971
      %v973 = vpop.xlane.xlu0 %972
      %v974 = vsel %vm611, %v970, -inf
      %975 = vmax.xlane.f32.xlu0 %v974
      %v976 = vpop.xlane.xlu0 %975
      %v977 = vsub.f32 %v969, %v973
      %v978 = vsub.f32 %v970, %v976
      %v979 = vmul.f32 %v977, 1.442695
      %v980 = vpow.pop %v979
      %v981 = vmul.f32 %v978, 1.442695
      %v982 = vpow.pop %v981
      %v983 = vsel %vm611, %v980, 0.0
      %984 = vadd.xlane.f32.xlu0 %v983
      %v985 = vpop.xlane.xlu0 %984
      %v986 = vsel %vm611, %v982, 0.0
      %987 = vadd.xlane.f32.xlu0 %v986
      %v988 = vpop.xlane.xlu0 %987
      %v989 = vrcp.pop %v985
      %v990 = vrcp.pop %v988
      %v991 = vmul.f32 %v980, %v989
      %v992 = vmul.f32 %v982, %v990
      %v993 = vsel %vm924, %v546, 0.0
      %v994 = vsel %vm924, %v549, 0.0
      %v995 = vpack.c.bf16 %v994, %v993
      %v996 = vpack.c.bf16 %v992, %v991
      %v998 = vsel %vm611, %v996, 0
      %1000 = vmatprep.subr.bf16.mxu0 0
      %1001 = vmatpush1.bf16.msra.mxu0 0
      %1002 = vmatprep.subr.bf16.mxu0 0
      %1003 = vmatpush1.bf16.msra.mxu0 0
      %1004 = vmatprep.subr.bf16.mxu0 0
      %1005 = vmatpush1.bf16.msra.mxu0 0
      %1006 = vmatprep.subr.bf16.mxu0 0
      %1007 = vmatpush1.bf16.msra.mxu0 0
      %1008 = vmatprep.subr.bf16.mxu0 0
      %1009 = vmatpush1.bf16.msra.mxu0 0
      %1010 = vmatprep.subr.bf16.mxu0 0
      %1011 = vmatpush1.bf16.msra.mxu0 0
      %1012 = vmatprep.subr.bf16.mxu0 0
      %1013 = vmatpush1.bf16.msra.mxu0 0
      %1014 = vmatprep.subr.bf16.mxu0 0
      %1015 = vmatpush1.bf16.msra.mxu0 %v995
      %1016 = vmatprep.subr.bf16.mxu0 0
      %1017 = vmatpush2.bf16.msra.mxu0 0
      %1018 = vmatprep.subr.bf16.mxu0 0
      %1019 = vmatpush2.bf16.msra.mxu0 0
      %1020 = vmatprep.subr.bf16.mxu0 0
      %1021 = vmatpush2.bf16.msra.mxu0 0
      %1022 = vmatprep.subr.bf16.mxu0 0
      %1023 = vmatpush2.bf16.msra.mxu0 0
      %1024 = vmatprep.subr.bf16.mxu0 0
      %1025 = vmatpush2.bf16.msra.mxu0 0
      %1026 = vmatprep.subr.bf16.mxu0 0
      %1027 = vmatpush2.bf16.msra.mxu0 0
      %1028 = vmatprep.subr.bf16.mxu0 0
      %1029 = vmatpush2.bf16.msra.mxu0 0
      %1030 = vmatprep.subr.bf16.mxu0 0
      %1031 = vmatpush2.bf16.msra.mxu0 0
      %1032 = vmatprep.mubr.bf16.mxu0 0
      %1033 = vmatmul.mubr.bf16.gmra.mxu0 %v998
      %v1034 = vpop.f32.mrf.mxu0
      %v1035 = vadd.f32 0.0, %v1034
      %v1036 = vpop.f32.mrf.mxu0
      %v1037 = vpop.f32.mrf.mxu0
      %v1038 = vadd.f32 0.0, %v1037
      %v1039 = vpop.f32.mrf.mxu0
      %1040 = vdwg.mxu0
      %v1041 = vadd.f32 %v920, %v1035
      %v1042 = vadd.f32 %v921, %v1038
      %v1043 = vpack.c.bf16 %v1042, %v1041
      %v1044 = vld [vmem:[%s3] sm:$0xf]
      %v1045 = vld [vmem:[%s3 + $0x4] sm:$0xf]
      %v1046 = vld [vmem:[%s3 + $0x8] sm:$0xf]
      %v1047 = vld [vmem:[%s3 + $0xc] sm:$0xf]
      %v1048 = vld [vmem:[%s3 + $0x10] sm:$0xf]
      %v1049 = vld [vmem:[%s3 + $0x14] sm:$0xf]
      %v1050 = vld [vmem:[%s3 + $0x18] sm:$0xf]
      %v1051 = vld [vmem:[%s3 + $0x1c] sm:$0xf]
      %v1052 = vld [vmem:[%s3 + $0x20] sm:$0xf]
      %v1053 = vld [vmem:[%s3 + $0x24] sm:$0xf]
      %v1054 = vld [vmem:[%s3 + $0x28] sm:$0xf]
      %v1055 = vld [vmem:[%s3 + $0x2c] sm:$0xf]
      %v1056 = vld [vmem:[%s3 + $0x30] sm:$0xf]
      %v1057 = vld [vmem:[%s3 + $0x34] sm:$0xf]
      %v1058 = vld [vmem:[%s3 + $0x38] sm:$0xf]
      %v1059 = vld [vmem:[%s3 + $0x3c] sm:$0xf]
      %v1060 = vld [vmem:[%s4] sm:$0x1]
      %v1062 = vlaneseq
      %v1063 = vshrl.u32 %v1062, 7
      %v1064 = vsub.s32 0, %v1063
      %v1065 = vrot.slane %v1060, %v1064
      %v1083 = vunpack.c.l.b16 %v1044
      %v1084 = vunpack.c.l.b16 %v1045
      %v1085 = vunpack.c.l.b16 %v1046
      %v1086 = vunpack.c.l.b16 %v1047
      %v1087 = vunpack.c.l.b16 %v1048
      %v1088 = vunpack.c.l.b16 %v1049
      %v1089 = vunpack.c.l.b16 %v1050
      %v1090 = vunpack.c.l.b16 %v1051
      %v1091 = vunpack.c.l.b16 %v1052
      %v1092 = vunpack.c.l.b16 %v1053
      %v1093 = vunpack.c.l.b16 %v1054
      %v1094 = vunpack.c.l.b16 %v1055
      %v1095 = vunpack.c.l.b16 %v1056
      %v1096 = vunpack.c.l.b16 %v1057
      %v1097 = vunpack.c.l.b16 %v1058
      %v1098 = vunpack.c.l.b16 %v1059
      %v1099 = vpack.c.b16 %v1084, %v1083
      %v1100 = vpack.c.b16 %v1086, %v1085
      %v1101 = vpack.c.b16 %v1088, %v1087
      %v1102 = vpack.c.b16 %v1090, %v1089
      %v1103 = vpack.c.b16 %v1092, %v1091
      %v1104 = vpack.c.b16 %v1094, %v1093
      %v1105 = vpack.c.b16 %v1096, %v1095
      %v1106 = vpack.c.b16 %v1098, %v1097
      %1115 = vmatprep.subr.bf16.mxu0 0
      %1116 = vmatpush1.bf16.msra.mxu0 %v1106
      %1117 = vmatprep.subr.bf16.mxu0 0
      %1118 = vmatpush1.bf16.msra.mxu0 %v1105
      %1119 = vmatprep.subr.bf16.mxu0 0
      %1120 = vmatpush1.bf16.msra.mxu0 %v1104
      %1121 = vmatprep.subr.bf16.mxu0 0
      %1122 = vmatpush1.bf16.msra.mxu0 %v1103
      %1123 = vmatprep.subr.bf16.mxu0 0
      %1124 = vmatpush1.bf16.msra.mxu0 %v1102
      %1125 = vmatprep.subr.bf16.mxu0 0
      %1126 = vmatpush1.bf16.msra.mxu0 %v1101
      %1127 = vmatprep.subr.bf16.mxu0 0
      %1128 = vmatpush1.bf16.msra.mxu0 %v1100
      %1129 = vmatprep.subr.bf16.mxu0 0
      %1130 = vmatpush1.bf16.msra.mxu0 %v1099
      %1131 = vmatprep.subr.bf16.mxu0 0
      %1132 = vmatpush2.bf16.msra.mxu0 0
      %1133 = vmatprep.subr.bf16.mxu0 0
      %1134 = vmatpush2.bf16.msra.mxu0 0
      %1135 = vmatprep.subr.bf16.mxu0 0
      %1136 = vmatpush2.bf16.msra.mxu0 0
      %1137 = vmatprep.subr.bf16.mxu0 0
      %1138 = vmatpush2.bf16.msra.mxu0 0
      %1139 = vmatprep.subr.bf16.mxu0 0
      %1140 = vmatpush2.bf16.msra.mxu0 0
      %1141 = vmatprep.subr.bf16.mxu0 0
      %1142 = vmatpush2.bf16.msra.mxu0 0
      %1143 = vmatprep.subr.bf16.mxu0 0
      %1144 = vmatpush2.bf16.msra.mxu0 0
      %1145 = vmatprep.subr.bf16.mxu0 0
      %1146 = vmatpush2.bf16.msra.mxu0 0
      %1147 = vmatprep.mubr.bf16.mxu0 0
      %1148 = vmatmul.mubr.bf16.gmra.mxu0 %v1043
      %v1149 = vpop.f32.mrf.mxu0
      %v1150 = vadd.f32 %v1065, %v1149
      %v1151 = vpop.f32.mrf.mxu0
      %v1152 = vpop.f32.mrf.mxu0
      %v1153 = vadd.f32 %v1065, %v1152
      %v1154 = vpop.f32.mrf.mxu0
      %1155 = vdwg.mxu0
      %v1156 = vunpack.c.l.bf16 %v283
      %v1157 = vunpack.c.l.bf16 %v284
      %v1158 = vadd.f32 %v1150, %v1156
      %v1159 = vadd.f32 %v1153, %v1157
      %v1160 = vld [vmem:[%s5] sm:$0x1]
      %v1161 = vld [vmem:[%s6] sm:$0x1]
      %1162 = vadd.xlane.f32.xlu0 %v1158
      %v1163 = vpop.xlane.xlu0 %1162
      %1164 = vadd.xlane.f32.xlu0 %v1159
      %v1165 = vpop.xlane.xlu0 %1164
      %v1166 = vrcp.pop 128.0
      %v1167 = vmul.f32 %v1163, %v1166
      %v1168 = vmul.f32 %v1165, %v1166
      %v1169 = vsub.f32 %v1158, %v1167
      %v1170 = vsub.f32 %v1159, %v1168
      %v1171 = vmul.f32 %v1169, %v1169
      %v1172 = vmul.f32 %v1170, %v1170
      %1173 = vadd.xlane.f32.xlu0 %v1171
      %v1174 = vpop.xlane.xlu0 %1173
      %1175 = vadd.xlane.f32.xlu0 %v1172
      %v1176 = vpop.xlane.xlu0 %1175
      %v1177 = vmul.f32 %v1174, %v1166
      %v1178 = vmul.f32 %v1176, %v1166
      %v1179 = vadd.f32 %v1177, 1e-05
      %v1180 = vadd.f32 %v1178, 1e-05
      %v1181 = vrsqrt.pop %v1179
      %v1182 = vrsqrt.pop %v1180
      %v1183 = vmul.f32 %v1169, %v1181
      %v1184 = vmul.f32 %v1170, %v1182
      %v1186 = vlaneseq
      %v1187 = vshrl.u32 %v1186, 7
      %v1188 = vsub.s32 0, %v1187
      %v1189 = vrot.slane %v1160, %v1188
      %v1191 = vmul.f32 %v1183, %v1189
      %v1192 = vmul.f32 %v1184, %v1189
      %v1194 = vlaneseq
      %v1195 = vshrl.u32 %v1194, 7
      %v1196 = vsub.s32 0, %v1195
      %v1197 = vrot.slane %v1161, %v1196
      %v1199 = vadd.f32 %v1191, %v1197
      %v1200 = vadd.f32 %v1192, %v1197
      %v1201 = vpack.c.bf16 %v1200, %v1199
      %v1203 = vunpack.c.l.b16 %v1201
      %v1204 = vunpack.c.h.b16 %v1201
      %v1205 = vpack.c.b16 %v1203, %v1203
      %v1206 = vpack.c.b16 %v1204, %v1204
      %1209 = vst [vmem:[%s280] sm:$0xf] %v1205
      %1210 = vst [vmem:[%s280 + $0x4] sm:$0xf] %v1206
      %s1211 = smul.u32 2, %s18
      %p1212 = scmp.lt.s32.totalorder %s1211, 3
      %s1213 = scalar_select %p1212, %s1211, 3
      %s1214 = smul.addr %s1213, 4
      %s1215 = scalar_lea.vmem %s7, %s1214
      // Predicated region
      $region49: #{decoder_forward.7} parent=47 // pred_check
        %p1216 = pneg %p188
      $region50: #{decoder_forward.7} parent=47 // pred_check_branch
        %1218 = sbr.rel (%p1216) target = $region52
      $region51: #{decoder_forward.7} parent=47 // pred_region
        %s1219 = smul.u32 2, %s18
      $region52: #{decoder_forward.7} parent=47 // pred_fallthru
        _
    $region48: #{decoder_forward.7} parent=5 // pred_fallthru
      _
    %p1220 = scmp.le.s32.totalorder 2, %s13
    // Predicated region
    $region53: #{decoder_forward.7} parent=5 // pred_check
      %p1221 = pneg %p1220
    $region54: #{decoder_forward.7} parent=5 // pred_check_branch
      %1223 = sbr.rel (%p1221) target = $region56
    $region55: #{decoder_forward.7} parent=5 // pred_region
      %s1224 = ssub.s32 %s13, 2
      // Predicated region
      $region57: #{decoder_forward.7} parent=55 // pred_check
        %p1225 = pneg %p194
      $region58: #{decoder_forward.7} parent=55 // pred_check_branch
        %1227 = sbr.rel (%p1225) target = $region60
      $region59: #{decoder_forward.7} parent=55 // pred_region
        %s1228 = smul.u32 2, %s19
        %p1229 = scmp.lt.s32.totalorder %s1228, 3
        %s1230 = scalar_select %p1229, %s1228, 3
        %s1231 = smul.addr %s1230, 4
        %s1232 = scalar_lea.vmem %s7, %s1231
      $region60: #{decoder_forward.7} parent=55 // pred_fallthru
        _
    $region56: #{decoder_forward.7} parent=5 // pred_fallthru
      _
  $region6: #{decoder_forward.7} parent=0 // loop_footer
    %s17 = sadd.s32 1, %s13
  $region7: #{decoder_forward.7} parent=0 // loop_footer_branch
    %12 = sbr.rel target = $region3
  $region8: #{decoder_forward.7} parent=0 // loop_exit
    _

</llo_original>
